<compile_context>
chip_gen: v6e
topology: v6e:2x2x1
jax: 0.10.0
libtpu: 0.0.40
codegen_flags: <defaults>
</compile_context>

<pallas_src>
import functools
import math

import numpy as np
import jax
import jax.numpy as jnp
from jax.experimental import pallas as pl
from jax.experimental.pallas import tpu as pltpu


def _round_up(x: int, m: int) -> int:
    return ((x + m - 1) // m) * m


def _gaussian_smearing_kernel(d_ref, o_ref, *, rb, g, scale, off0, doff):
    # d_ref: (rb, 128) lane-major distances; flat row index = group*128 + lane.
    # o_ref: (rb*128, g) output block (rows on sublanes, gaussians on lanes).
    # Scaled offsets, built from a 2-D iota (compile-time constants, no DMA).
    gi = jax.lax.broadcasted_iota(jnp.int32, (1, g), 1).astype(jnp.float32)
    s_off = off0 + doff * gi                         # (1, g)  == scale * offset
    off_b = jnp.broadcast_to(s_off, (128, g))        # hoisted out of the loop

    d = d_ref[...].astype(jnp.float32) * scale       # (rb, 128)
    dt = jnp.transpose(d)                            # (128, rb): rows -> sublanes

    for i in range(rb):                              # static unroll over 128-row groups
        z = dt[:, i:i + 1] - off_b                   # (128, g)
        o_ref[pl.ds(i * 128, 128), :] = jnp.exp(-(z * z)).astype(o_ref.dtype)


class GaussianSmearing:
    """Pallas TPU equivalent of the PyTorch GaussianSmearing module."""

    def __init__(self, start: float = 0.0, stop: float = 5.0,
                 num_gaussians: int = 50, rows_per_block: int = 4096,
                 out_dtype=None):
        offset = np.linspace(start, stop, num_gaussians, dtype=np.float32)
        step = float(offset[1] - offset[0])
        self.coeff = -0.5 / step ** 2                  # matches torch module
        self.offset = jnp.asarray(offset)              # kept for reference/API parity
        # Algebraic fold: exp(coeff*(d-off)^2) == exp(-(s*d - s*off)^2), s=sqrt(-coeff)
        self.scale = math.sqrt(0.5) / step
        self.off0 = self.scale * float(start)          # scaled offset[0]
        self.doff = self.scale * step                  # scaled offset spacing
        self.num_gaussians = num_gaussians
        self.rows_per_block = _round_up(max(int(rows_per_block), 1024), 1024)
        self.out_dtype = out_dtype                     # e.g. jnp.bfloat16 to halve writeback

    def __call__(self, dist: jax.Array) -> jax.Array:
        n = dist.size
        g = self.num_gaussians
        out_dtype = self.out_dtype if self.out_dtype is not None else dist.dtype

        # Lane-major input: pad the flat distances to a whole number of
        # 128-row groups (tiny: <512 B of padding) and view as (m, 128).
        flat = dist.reshape(-1)
        m = pl.cdiv(n, 128)                            # number of 128-row groups
        n_pad = m * 128
        if n_pad != n:
            flat = jnp.pad(flat, (0, n_pad - n))       # padded rows are masked on writeback
        d2 = flat.reshape(m, 128)

        # Groups per block: multiple of 8 (sublane tile), capped by rows_per_block,
        # and small enough that there are >=2 grid blocks whenever possible
        # (keeps both v7x TensorCores busy; VMEM stays well under the 32 MiB
        # scoped default on v5e/v6e/v7x).
        rb_cap = self.rows_per_block // 128
        rb = min(rb_cap, max(8, _round_up(pl.cdiv(m, 2), 8)))
        num_blocks = pl.cdiv(m, rb)

        itemsize = jnp.dtype(out_dtype).itemsize
        cost = pl.CostEstimate(
            flops=3 * n * g,
            transcendentals=n * g,
            bytes_accessed=n * jnp.dtype(dist.dtype).itemsize + n * g * itemsize,
        )

        # TODO(synk): if the downstream consumer ever accepts a (G, N) layout or a
        # G padded to 128 (folded into the next matmul's weights), switch to a fully
        # lane-dense output; with the (N, 50) contract the stores stay 50/128 masked.
        return pl.pallas_call(
            functools.partial(_gaussian_smearing_kernel, rb=rb, g=g,
                              scale=self.scale, off0=self.off0, doff=self.doff),
            out_shape=jax.ShapeDtypeStruct((n, g), out_dtype),
            grid_spec=pltpu.PrefetchScalarGridSpec(
                num_scalar_prefetch=0,
                grid=(num_blocks,),
                in_specs=[pl.BlockSpec((rb, 128), lambda i: (i, 0))],    # dense lane-major DMA
                out_specs=pl.BlockSpec((rb * 128, g), lambda i: (i, 0)),
            ),
            compiler_params=pltpu.CompilerParams(
                dimension_semantics=("parallel",),
            ),
            cost_estimate=cost,
        )(d2)


def _reference(dist, offset, coeff):
    d = dist.reshape(-1, 1).astype(jnp.float32) - offset.reshape(1, -1).astype(jnp.float32)
    return jnp.exp(coeff * d * d)


if __name__ == "__main__":
    key = jax.random.PRNGKey(0)
    # 16*130 = 2080 distances: exercises multiple grid blocks, a ragged final
    # input group and masked output writeback.
    dist = jax.random.uniform(key, (16, 130), dtype=jnp.float32, minval=0.0, maxval=5.0)

    module = GaussianSmearing(start=0.0, stop=5.0, num_gaussians=50)
    y = module(dist)
    jax.block_until_ready(y)

    y_ref = _reference(dist, module.offset, module.coeff)
    assert y.shape == (dist.size, 50) and y.dtype == dist.dtype
    assert jnp.allclose(y, y_ref, atol=5e-5, rtol=1e-4), "mismatch vs reference"

    print("KERNEL_OK")
</pallas_src>

<mosaic_0001>
module attributes {stable_mosaic.version = 11 : i64} {
  func.func @_gaussian_smearing_kernel(%arg0: i32, %arg1: memref<16x128xf32, #tpu.memory_space<vmem>>, %arg2: memref<2048x50xf32, #tpu.memory_space<vmem>>) attributes {dimension_semantics = [#tpu.dimension_semantics<parallel>], iteration_bounds = array<i64: 2>, scalar_prefetch = 0 : i64, scratch_operands = 0 : i64, tpu.core_type = #tpu.core_type<tc>, window_params = [{transform_indices = @transform_0, window_bounds = array<i64: 16, 128>}, {transform_indices = @transform_1, window_bounds = array<i64: 2048, 50>}]} {
    %0 = tpu.iota {dimensions = array<i32: 1>} : vector<1x50xi32>
    %1 = arith.sitofp %0 : vector<1x50xi32> to vector<1x50xf32>
    %cst = arith.constant 0.707106769 : f32
    %2 = vector.broadcast %cst : f32 to vector<1x50xf32>
    %3 = arith.mulf %2, %1 : vector<1x50xf32>
    %cst_0 = arith.constant 0.000000e+00 : f32
    %4 = vector.broadcast %cst_0 : f32 to vector<1x50xf32>
    %5 = arith.addf %4, %3 : vector<1x50xf32>
    %6 = vector.shape_cast %5 : vector<1x50xf32> to vector<1x50xf32>
    %7 = vector.broadcast %6 : vector<1x50xf32> to vector<128x50xf32>
    %c0 = arith.constant 0 : index
    %c0_1 = arith.constant 0 : index
    %8 = vector.load %arg1[%c0, %c0_1] : memref<16x128xf32, #tpu.memory_space<vmem>>, vector<16x128xf32>
    %cst_2 = arith.constant 6.92964602 : f32
    %9 = vector.broadcast %cst_2 : f32 to vector<16x128xf32>
    %10 = arith.mulf %8, %9 : vector<16x128xf32>
    %11 = tpu.transpose %10, [1, 0] : vector<16x128xf32> -> vector<128x16xf32>
    %12 = vector.extract_strided_slice %11 {offsets = [0, 0], sizes = [128, 1], strides = [1, 1]} : vector<128x16xf32> to vector<128x1xf32>
    %13 = vector.broadcast %12 : vector<128x1xf32> to vector<128x50xf32>
    %14 = arith.subf %13, %7 : vector<128x50xf32>
    %15 = arith.mulf %14, %14 : vector<128x50xf32>
    %cst_3 = arith.constant 0.000000e+00 : f32
    %16 = vector.broadcast %cst_3 : f32 to vector<128x50xf32>
    %17 = arith.subf %16, %15 : vector<128x50xf32>
    %18 = math.exp %17 : vector<128x50xf32>
    %c0_4 = arith.constant 0 : index
    %c0_5 = arith.constant 0 : index
    %19 = vector.load %arg2[%c0_4, %c0_5] : memref<2048x50xf32, #tpu.memory_space<vmem>>, vector<128x50xf32>
    tpu.vector_store %arg2[%c0_4, %c0_5], %18 {strides = array<i32>} : memref<2048x50xf32, #tpu.memory_space<vmem>>, vector<128x50xf32>,
    %20 = vector.extract_strided_slice %11 {offsets = [0, 1], sizes = [128, 1], strides = [1, 1]} : vector<128x16xf32> to vector<128x1xf32>
    %21 = vector.broadcast %20 : vector<128x1xf32> to vector<128x50xf32>
    %22 = arith.subf %21, %7 : vector<128x50xf32>
    %23 = arith.mulf %22, %22 : vector<128x50xf32>
    %cst_6 = arith.constant 0.000000e+00 : f32
    %24 = vector.broadcast %cst_6 : f32 to vector<128x50xf32>
    %25 = arith.subf %24, %23 : vector<128x50xf32>
    %26 = math.exp %25 : vector<128x50xf32>
    %c128 = arith.constant 128 : index
    %c0_7 = arith.constant 0 : index
    %27 = vector.load %arg2[%c128, %c0_7] : memref<2048x50xf32, #tpu.memory_space<vmem>>, vector<128x50xf32>
    tpu.vector_store %arg2[%c128, %c0_7], %26 {strides = array<i32>} : memref<2048x50xf32, #tpu.memory_space<vmem>>, vector<128x50xf32>,
    %28 = vector.extract_strided_slice %11 {offsets = [0, 2], sizes = [128, 1], strides = [1, 1]} : vector<128x16xf32> to vector<128x1xf32>
    %29 = vector.broadcast %28 : vector<128x1xf32> to vector<128x50xf32>
    %30 = arith.subf %29, %7 : vector<128x50xf32>
    %31 = arith.mulf %30, %30 : vector<128x50xf32>
    %cst_8 = arith.constant 0.000000e+00 : f32
    %32 = vector.broadcast %cst_8 : f32 to vector<128x50xf32>
    %33 = arith.subf %32, %31 : vector<128x50xf32>
    %34 = math.exp %33 : vector<128x50xf32>
    %c256 = arith.constant 256 : index
    %c0_9 = arith.constant 0 : index
    %35 = vector.load %arg2[%c256, %c0_9] : memref<2048x50xf32, #tpu.memory_space<vmem>>, vector<128x50xf32>
    tpu.vector_store %arg2[%c256, %c0_9], %34 {strides = array<i32>} : memref<2048x50xf32, #tpu.memory_space<vmem>>, vector<128x50xf32>,
    %36 = vector.extract_strided_slice %11 {offsets = [0, 3], sizes = [128, 1], strides = [1, 1]} : vector<128x16xf32> to vector<128x1xf32>
    %37 = vector.broadcast %36 : vector<128x1xf32> to vector<128x50xf32>
    %38 = arith.subf %37, %7 : vector<128x50xf32>
    %39 = arith.mulf %38, %38 : vector<128x50xf32>
    %cst_10 = arith.constant 0.000000e+00 : f32
    %40 = vector.broadcast %cst_10 : f32 to vector<128x50xf32>
    %41 = arith.subf %40, %39 : vector<128x50xf32>
    %42 = math.exp %41 : vector<128x50xf32>
    %c384 = arith.constant 384 : index
    %c0_11 = arith.constant 0 : index
    %43 = vector.load %arg2[%c384, %c0_11] : memref<2048x50xf32, #tpu.memory_space<vmem>>, vector<128x50xf32>
    tpu.vector_store %arg2[%c384, %c0_11], %42 {strides = array<i32>} : memref<2048x50xf32, #tpu.memory_space<vmem>>, vector<128x50xf32>,
    %44 = vector.extract_strided_slice %11 {offsets = [0, 4], sizes = [128, 1], strides = [1, 1]} : vector<128x16xf32> to vector<128x1xf32>
    %45 = vector.broadcast %44 : vector<128x1xf32> to vector<128x50xf32>
    %46 = arith.subf %45, %7 : vector<128x50xf32>
    %47 = arith.mulf %46, %46 : vector<128x50xf32>
    %cst_12 = arith.constant 0.000000e+00 : f32
    %48 = vector.broadcast %cst_12 : f32 to vector<128x50xf32>
    %49 = arith.subf %48, %47 : vector<128x50xf32>
    %50 = math.exp %49 : vector<128x50xf32>
    %c512 = arith.constant 512 : index
    %c0_13 = arith.constant 0 : index
    %51 = vector.load %arg2[%c512, %c0_13] : memref<2048x50xf32, #tpu.memory_space<vmem>>, vector<128x50xf32>
    tpu.vector_store %arg2[%c512, %c0_13], %50 {strides = array<i32>} : memref<2048x50xf32, #tpu.memory_space<vmem>>, vector<128x50xf32>,
    %52 = vector.extract_strided_slice %11 {offsets = [0, 5], sizes = [128, 1], strides = [1, 1]} : vector<128x16xf32> to vector<128x1xf32>
    %53 = vector.broadcast %52 : vector<128x1xf32> to vector<128x50xf32>
    %54 = arith.subf %53, %7 : vector<128x50xf32>
    %55 = arith.mulf %54, %54 : vector<128x50xf32>
    %cst_14 = arith.constant 0.000000e+00 : f32
    %56 = vector.broadcast %cst_14 : f32 to vector<128x50xf32>
    %57 = arith.subf %56, %55 : vector<128x50xf32>
    %58 = math.exp %57 : vector<128x50xf32>
    %c640 = arith.constant 640 : index
    %c0_15 = arith.constant 0 : index
    %59 = vector.load %arg2[%c640, %c0_15] : memref<2048x50xf32, #tpu.memory_space<vmem>>, vector<128x50xf32>
    tpu.vector_store %arg2[%c640, %c0_15], %58 {strides = array<i32>} : memref<2048x50xf32, #tpu.memory_space<vmem>>, vector<128x50xf32>,
    %60 = vector.extract_strided_slice %11 {offsets = [0, 6], sizes = [128, 1], strides = [1, 1]} : vector<128x16xf32> to vector<128x1xf32>
    %61 = vector.broadcast %60 : vector<128x1xf32> to vector<128x50xf32>
    %62 = arith.subf %61, %7 : vector<128x50xf32>
    %63 = arith.mulf %62, %62 : vector<128x50xf32>
    %cst_16 = arith.constant 0.000000e+00 : f32
    %64 = vector.broadcast %cst_16 : f32 to vector<128x50xf32>
    %65 = arith.subf %64, %63 : vector<128x50xf32>
    %66 = math.exp %65 : vector<128x50xf32>
    %c768 = arith.constant 768 : index
    %c0_17 = arith.constant 0 : index
    %67 = vector.load %arg2[%c768, %c0_17] : memref<2048x50xf32, #tpu.memory_space<vmem>>, vector<128x50xf32>
    tpu.vector_store %arg2[%c768, %c0_17], %66 {strides = array<i32>} : memref<2048x50xf32, #tpu.memory_space<vmem>>, vector<128x50xf32>,
    %68 = vector.extract_strided_slice %11 {offsets = [0, 7], sizes = [128, 1], strides = [1, 1]} : vector<128x16xf32> to vector<128x1xf32>
    %69 = vector.broadcast %68 : vector<128x1xf32> to vector<128x50xf32>
    %70 = arith.subf %69, %7 : vector<128x50xf32>
    %71 = arith.mulf %70, %70 : vector<128x50xf32>
    %cst_18 = arith.constant 0.000000e+00 : f32
    %72 = vector.broadcast %cst_18 : f32 to vector<128x50xf32>
    %73 = arith.subf %72, %71 : vector<128x50xf32>
    %74 = math.exp %73 : vector<128x50xf32>
    %c896 = arith.constant 896 : index
    %c0_19 = arith.constant 0 : index
    %75 = vector.load %arg2[%c896, %c0_19] : memref<2048x50xf32, #tpu.memory_space<vmem>>, vector<128x50xf32>
    tpu.vector_store %arg2[%c896, %c0_19], %74 {strides = array<i32>} : memref<2048x50xf32, #tpu.memory_space<vmem>>, vector<128x50xf32>,
    %76 = vector.extract_strided_slice %11 {offsets = [0, 8], sizes = [128, 1], strides = [1, 1]} : vector<128x16xf32> to vector<128x1xf32>
    %77 = vector.broadcast %76 : vector<128x1xf32> to vector<128x50xf32>
    %78 = arith.subf %77, %7 : vector<128x50xf32>
    %79 = arith.mulf %78, %78 : vector<128x50xf32>
    %cst_20 = arith.constant 0.000000e+00 : f32
    %80 = vector.broadcast %cst_20 : f32 to vector<128x50xf32>
    %81 = arith.subf %80, %79 : vector<128x50xf32>
    %82 = math.exp %81 : vector<128x50xf32>
    %c1024 = arith.constant 1024 : index
    %c0_21 = arith.constant 0 : index
    %83 = vector.load %arg2[%c1024, %c0_21] : memref<2048x50xf32, #tpu.memory_space<vmem>>, vector<128x50xf32>
    tpu.vector_store %arg2[%c1024, %c0_21], %82 {strides = array<i32>} : memref<2048x50xf32, #tpu.memory_space<vmem>>, vector<128x50xf32>,
    %84 = vector.extract_strided_slice %11 {offsets = [0, 9], sizes = [128, 1], strides = [1, 1]} : vector<128x16xf32> to vector<128x1xf32>
    %85 = vector.broadcast %84 : vector<128x1xf32> to vector<128x50xf32>
    %86 = arith.subf %85, %7 : vector<128x50xf32>
    %87 = arith.mulf %86, %86 : vector<128x50xf32>
    %cst_22 = arith.constant 0.000000e+00 : f32
    %88 = vector.broadcast %cst_22 : f32 to vector<128x50xf32>
    %89 = arith.subf %88, %87 : vector<128x50xf32>
    %90 = math.exp %89 : vector<128x50xf32>
    %c1152 = arith.constant 1152 : index
    %c0_23 = arith.constant 0 : index
    %91 = vector.load %arg2[%c1152, %c0_23] : memref<2048x50xf32, #tpu.memory_space<vmem>>, vector<128x50xf32>
    tpu.vector_store %arg2[%c1152, %c0_23], %90 {strides = array<i32>} : memref<2048x50xf32, #tpu.memory_space<vmem>>, vector<128x50xf32>,
    %92 = vector.extract_strided_slice %11 {offsets = [0, 10], sizes = [128, 1], strides = [1, 1]} : vector<128x16xf32> to vector<128x1xf32>
    %93 = vector.broadcast %92 : vector<128x1xf32> to vector<128x50xf32>
    %94 = arith.subf %93, %7 : vector<128x50xf32>
    %95 = arith.mulf %94, %94 : vector<128x50xf32>
    %cst_24 = arith.constant 0.000000e+00 : f32
    %96 = vector.broadcast %cst_24 : f32 to vector<128x50xf32>
    %97 = arith.subf %96, %95 : vector<128x50xf32>
    %98 = math.exp %97 : vector<128x50xf32>
    %c1280 = arith.constant 1280 : index
    %c0_25 = arith.constant 0 : index
    %99 = vector.load %arg2[%c1280, %c0_25] : memref<2048x50xf32, #tpu.memory_space<vmem>>, vector<128x50xf32>
    tpu.vector_store %arg2[%c1280, %c0_25], %98 {strides = array<i32>} : memref<2048x50xf32, #tpu.memory_space<vmem>>, vector<128x50xf32>,
    %100 = vector.extract_strided_slice %11 {offsets = [0, 11], sizes = [128, 1], strides = [1, 1]} : vector<128x16xf32> to vector<128x1xf32>
    %101 = vector.broadcast %100 : vector<128x1xf32> to vector<128x50xf32>
    %102 = arith.subf %101, %7 : vector<128x50xf32>
    %103 = arith.mulf %102, %102 : vector<128x50xf32>
    %cst_26 = arith.constant 0.000000e+00 : f32
    %104 = vector.broadcast %cst_26 : f32 to vector<128x50xf32>
    %105 = arith.subf %104, %103 : vector<128x50xf32>
    %106 = math.exp %105 : vector<128x50xf32>
    %c1408 = arith.constant 1408 : index
    %c0_27 = arith.constant 0 : index
    %107 = vector.load %arg2[%c1408, %c0_27] : memref<2048x50xf32, #tpu.memory_space<vmem>>, vector<128x50xf32>
    tpu.vector_store %arg2[%c1408, %c0_27], %106 {strides = array<i32>} : memref<2048x50xf32, #tpu.memory_space<vmem>>, vector<128x50xf32>,
    %108 = vector.extract_strided_slice %11 {offsets = [0, 12], sizes = [128, 1], strides = [1, 1]} : vector<128x16xf32> to vector<128x1xf32>
    %109 = vector.broadcast %108 : vector<128x1xf32> to vector<128x50xf32>
    %110 = arith.subf %109, %7 : vector<128x50xf32>
    %111 = arith.mulf %110, %110 : vector<128x50xf32>
    %cst_28 = arith.constant 0.000000e+00 : f32
    %112 = vector.broadcast %cst_28 : f32 to vector<128x50xf32>
    %113 = arith.subf %112, %111 : vector<128x50xf32>
    %114 = math.exp %113 : vector<128x50xf32>
    %c1536 = arith.constant 1536 : index
    %c0_29 = arith.constant 0 : index
    %115 = vector.load %arg2[%c1536, %c0_29] : memref<2048x50xf32, #tpu.memory_space<vmem>>, vector<128x50xf32>
    tpu.vector_store %arg2[%c1536, %c0_29], %114 {strides = array<i32>} : memref<2048x50xf32, #tpu.memory_space<vmem>>, vector<128x50xf32>,
    %116 = vector.extract_strided_slice %11 {offsets = [0, 13], sizes = [128, 1], strides = [1, 1]} : vector<128x16xf32> to vector<128x1xf32>
    %117 = vector.broadcast %116 : vector<128x1xf32> to vector<128x50xf32>
    %118 = arith.subf %117, %7 : vector<128x50xf32>
    %119 = arith.mulf %118, %118 : vector<128x50xf32>
    %cst_30 = arith.constant 0.000000e+00 : f32
    %120 = vector.broadcast %cst_30 : f32 to vector<128x50xf32>
    %121 = arith.subf %120, %119 : vector<128x50xf32>
    %122 = math.exp %121 : vector<128x50xf32>
    %c1664 = arith.constant 1664 : index
    %c0_31 = arith.constant 0 : index
    %123 = vector.load %arg2[%c1664, %c0_31] : memref<2048x50xf32, #tpu.memory_space<vmem>>, vector<128x50xf32>
    tpu.vector_store %arg2[%c1664, %c0_31], %122 {strides = array<i32>} : memref<2048x50xf32, #tpu.memory_space<vmem>>, vector<128x50xf32>,
    %124 = vector.extract_strided_slice %11 {offsets = [0, 14], sizes = [128, 1], strides = [1, 1]} : vector<128x16xf32> to vector<128x1xf32>
    %125 = vector.broadcast %124 : vector<128x1xf32> to vector<128x50xf32>
    %126 = arith.subf %125, %7 : vector<128x50xf32>
    %127 = arith.mulf %126, %126 : vector<128x50xf32>
    %cst_32 = arith.constant 0.000000e+00 : f32
    %128 = vector.broadcast %cst_32 : f32 to vector<128x50xf32>
    %129 = arith.subf %128, %127 : vector<128x50xf32>
    %130 = math.exp %129 : vector<128x50xf32>
    %c1792 = arith.constant 1792 : index
    %c0_33 = arith.constant 0 : index
    %131 = vector.load %arg2[%c1792, %c0_33] : memref<2048x50xf32, #tpu.memory_space<vmem>>, vector<128x50xf32>
    tpu.vector_store %arg2[%c1792, %c0_33], %130 {strides = array<i32>} : memref<2048x50xf32, #tpu.memory_space<vmem>>, vector<128x50xf32>,
    %132 = vector.extract_strided_slice %11 {offsets = [0, 15], sizes = [128, 1], strides = [1, 1]} : vector<128x16xf32> to vector<128x1xf32>
    %133 = vector.broadcast %132 : vector<128x1xf32> to vector<128x50xf32>
    %134 = arith.subf %133, %7 : vector<128x50xf32>
    %135 = arith.mulf %134, %134 : vector<128x50xf32>
    %cst_34 = arith.constant 0.000000e+00 : f32
    %136 = vector.broadcast %cst_34 : f32 to vector<128x50xf32>
    %137 = arith.subf %136, %135 : vector<128x50xf32>
    %138 = math.exp %137 : vector<128x50xf32>
    %c1920 = arith.constant 1920 : index
    %c0_35 = arith.constant 0 : index
    %139 = vector.load %arg2[%c1920, %c0_35] : memref<2048x50xf32, #tpu.memory_space<vmem>>, vector<128x50xf32>
    tpu.vector_store %arg2[%c1920, %c0_35], %138 {strides = array<i32>} : memref<2048x50xf32, #tpu.memory_space<vmem>>, vector<128x50xf32>,
    return
  }
  func.func @transform_0(%arg0: i32) -> (i32, i32) {
    %c0_i32 = arith.constant 0 : i32
    %c0_i32_0 = arith.constant 0 : i32
    return %arg0, %c0_i32 : i32, i32
  }
  func.func @transform_1(%arg0: i32) -> (i32, i32) {
    %c0_i32 = arith.constant 0 : i32
    %c0_i32_0 = arith.constant 0 : i32
    return %arg0, %c0_i32 : i32, i32
  }
}

</mosaic_0001>

<llo_original>
// kernel: tpu_custom_call.1
$region0: #{tpu_custom_call.1}
  #allocation0 [shape = 'u32[]', space=smem, size = 0x4, offset = 0x4, fixed_abs, tag = 'smem constant byte address 0x4 - core index']
  #allocation1 [shape = 'u32[144,128]{1,0:T(1,128)}', space=vmem, size = 0x12000, scoped, tag = 'internal scratch']
  %s0 = inlined_call_operand.hbm [shape: f32[17,128], index: 0, kind: input, shape index: {}]
  %s1 = inlined_call_operand.vmem [shape: f32[2080,50], index: 1, kind: output, shape index: {}]
  %s2 = sld [smem:[#allocation0]]
  $region89: #{tpu_custom_call.1} parent=0
    _
  %s4 = ssub.s32 1, %s2
  %s5 = scalar_select 0, %s4, %s2
  $region1: #{tpu_custom_call.1} parent=0
    #allocation2 [shape = 'u8[16384]{0}', space=vmem, size = 0x4000, scoped, tag = 'input window, operand 0']
    #allocation3 [shape = 's32[2]{0}', space=sflag, size = 0x8, scoped, tag = 'scoped memory for tpu_custom_call.1']
    #allocation4 [shape = 'u8[2097152]{0}', space=vmem, size = 0x200000, scoped, tag = 'output window, operand 0']
    %6 = vsyncpa [#allocation3], 0
    %s7 = scalar_lea.sflag [#allocation3], 1
    %8 = vsyncpa %s7, 0
    loop: start=0, step=1, limit=4
    $region2: #{tpu_custom_call.1} parent=1 // loop_pre_header
      _
    $region3: #{tpu_custom_call.1} parent=1 // loop_header
      %s10 = sphi 0, %s14
      %p11 = scmp.ge.s32.totalorder %s10, 4
      %s20 = sphi 0, %s22
      %s23 = sphi 0, %s20
      %s24 = sphi 0, %s23
      %s40 = sphi 0, %s24
      %s46 = sphi 0, %s48
      %s49 = sphi 0, %s46
      %s50 = sphi 0, %s49
      %s66 = sphi 0, %s50
    $region4: #{tpu_custom_call.1} parent=1 // loop_header_branch
      %13 = sbr.rel (%p11) target = $region8
    $region5: #{tpu_custom_call.1} parent=1 // loop_body
      %s15 = ssub.s32 %s10, 1
      %s16 = ssub.s32 %s10, 2
      %s17 = sadd.s32 %s10, 1
      %s18 = ssub.s32 %s10, %s17
      %p19 = scmp.eq.s32.totalorder %s18, 0
      %s21 = sadd.s32 %s20, 1
      %s22 = scalar_select %p19, %s20, %s21
      %p25 = pneg %p19
      %p26 = scmp.eq.s32.totalorder %s10, 1
      %p27 = por %p25, %p26
      %p28 = scmp.ne.s32.totalorder %s20, %s23
      %p29 = scmp.eq.s32.totalorder %s10, 0
      %p30 = por %p28, %p29
      %p31 = scmp.ne.s32.totalorder %s20, %s23
      %p32 = scmp.eq.s32.totalorder %s15, 1
      %p33 = por %p31, %p32
      %p34 = scmp.ne.s32.totalorder %s23, %s24
      %p35 = scmp.eq.s32.totalorder %s15, 0
      %p36 = por %p34, %p35
      %p37 = scmp.ne.s32.totalorder %s23, %s24
      %p38 = scmp.eq.s32.totalorder %s16, 1
      %p39 = por %p37, %p38
      %p41 = scmp.ne.s32.totalorder %s24, %s40
      %p42 = scmp.eq.s32.totalorder %s16, 0
      %p43 = por %p41, %p42
      %s44 = ssub.s32 %s10, %s17
      %p45 = scmp.eq.s32.totalorder %s44, 0
      %s47 = sadd.s32 %s46, 1
      %s48 = scalar_select %p45, %s46, %s47
      %p51 = pneg %p45
      %p52 = scmp.eq.s32.totalorder %s10, 1
      %p53 = por %p51, %p52
      %p54 = scmp.ne.s32.totalorder %s46, %s49
      %p55 = scmp.eq.s32.totalorder %s10, 0
      %p56 = por %p54, %p55
      %p57 = scmp.ne.s32.totalorder %s46, %s49
      %p58 = scmp.eq.s32.totalorder %s15, 1
      %p59 = por %p57, %p58
      %p60 = scmp.ne.s32.totalorder %s49, %s50
      %p61 = scmp.eq.s32.totalorder %s15, 0
      %p62 = por %p60, %p61
      %p63 = scmp.ne.s32.totalorder %s49, %s50
      %p64 = scmp.eq.s32.totalorder %s16, 1
      %p65 = por %p63, %p64
      %p67 = scmp.ne.s32.totalorder %s50, %s66
      %p68 = scmp.eq.s32.totalorder %s16, 0
      %p69 = por %p67, %p68
      %p70 = scmp.le.s32.totalorder 1, %s10
      %p71 = scmp.lt.s32.totalorder %s10, 3
      %p72 = pnand %p70, %p71
      %p73 = pneg %p72
      // Predicated region
      $region9: #{tpu_custom_call.1} parent=5 // pred_check
        _
      $region10: #{tpu_custom_call.1} parent=5 // pred_check_branch
        %75 = sbr.rel (%p72) target = $region12
      $region11: #{tpu_custom_call.1} parent=5 // pred_region
        %s76 = ssub.s32 %s10, 1
      $region12: #{tpu_custom_call.1} parent=5 // pred_fallthru
        _
      %p77 = scmp.lt.s32.totalorder %s10, 2
      // Predicated region
      $region13: #{tpu_custom_call.1} parent=5 // pred_check
        %p78 = pneg %p77
      $region14: #{tpu_custom_call.1} parent=5 // pred_check_branch
        %80 = sbr.rel (%p78) target = $region16
      $region15: #{tpu_custom_call.1} parent=5 // pred_region
        // Predicated region
        $region17: #{tpu_custom_call.1} parent=15 // pred_check
          %p81 = pneg %p30
        $region18: #{tpu_custom_call.1} parent=15 // pred_check_branch
          %83 = sbr.rel (%p81) target = $region20
        $region19: #{tpu_custom_call.1} parent=15 // pred_region
          %s84 = sand.u32 %s20, 1
          %s85 = scalar_lea.sflag [#allocation3], %s84
          %s86 = sand.u32 %s20, 1
          %s87 = smul.addr %s86, 16
          %s88 = scalar_lea.vmem [#allocation2], %s87
          %s89 = smul.u32 2, %s10
          %s90 = ssub.s32 3, %s89
          %p91 = scmp.lt.s32.totalorder %s90, 2
          %s92 = scalar_select %p91, %s90, 2
          %s93 = smul.u32 128, %s92
          %s95 = ssub.s32 256, %s93
          %96 = vsyncadd %s85, %s95
          %p97 = scmp.ne.s32.totalorder 0, %s93
          %s98 = smul.addr %s89, 128
          %s99 = scalar_lea.hbm %s0, %s98
          %s100 = smul.u32 8, %s92
          %s101 = sshll.u32 %s88, 4
          %s102 = int_to_ptr.vmem [resolvable:$true] %s101
          %s103 = sshll.u32 %s100, 4
          %107 = dma.hbm_to_vmem [thread:$0]  (%p97), %s99, %s103, %s102, %s85, 128, 128, 8
        $region20: #{tpu_custom_call.1} parent=15 // pred_fallthru
          _
      $region16: #{tpu_custom_call.1} parent=5 // pred_fallthru
        _
      %p108 = scmp.le.s32.totalorder 1, %s10
      %p109 = scmp.lt.s32.totalorder %s10, 3
      %p110 = pnand %p108, %p109
      %p111 = pneg %p110
      // Predicated region
      $region21: #{tpu_custom_call.1} parent=5 // pred_check
        _
      $region22: #{tpu_custom_call.1} parent=5 // pred_check_branch
        %113 = sbr.rel (%p110) target = $region24
      $region23: #{tpu_custom_call.1} parent=5 // pred_region
        %s114 = ssub.s32 %s10, 1
        %s115 = sand.u32 %s23, 1
        %s116 = scalar_lea.sflag [#allocation3], %s115
        %s117 = sand.u32 %s23, 1
        %s118 = smul.addr %s117, 16
        %s119 = scalar_lea.vmem [#allocation2], %s118
        // Predicated region
        $region25: #{tpu_custom_call.1} parent=23 // pred_check
          %p120 = pneg %p36
        $region26: #{tpu_custom_call.1} parent=23 // pred_check_branch
          %122 = sbr.rel (%p120) target = $region28
        $region27: #{tpu_custom_call.1} parent=23 // pred_region
          %123 = dma.done %s116, 256
        $region28: #{tpu_custom_call.1} parent=23 // pred_fallthru
          _
        %s124 = sand.u32 %s23, 1
        %s125 = scalar_lea.sflag [#allocation3], %s124
        %s126 = sand.u32 %s23, 1
        %s127 = smul.addr %s126, 16
        %s128 = scalar_lea.vmem [#allocation2], %s127
        %p129 = pneg %p36
        %p130 = pneg %p33
        %p131 = pneg %p62
        %p132 = pneg %p59
        %s133 = sand.u32 %s49, 1
        %s134 = sand.u32 %s49, 1
        %s135 = smul.addr %s134, 2048
        %s136 = scalar_lea.vmem [#allocation4], %s135
        %s137 = smul.u32 2, %s15
        %s138 = ssub.s32 3, %s137
        %p139 = scmp.lt.s32.totalorder %s138, 2
        %s140 = scalar_select %p139, %s138, 2
        %s141 = smul.u32 128, %s140
        %s142 = smul.u32 256, %s15
        %s143 = ssub.s32 260, %s142
        %p144 = scmp.lt.s32.totalorder %s143, 256
        %s145 = scalar_select %p144, %s143, 256
        %s146 = smul.u32 128, %s145
        %v147 = vlaneseq
        %v148 = vand.u32 %v147, 127
        %v149 = vcvt.s32.f32 %v148
        %v150 = vmul.f32 %v149, 0.70710677
        %v151 = vadd.f32 %v150, 0.0
        %v152 = vld [vmem:[%s119] sm:$0xff]
        %v153 = vld [vmem:[%s119 + $0x8] sm:$0xff]
        %v154 = vmul.f32 %v152, 6.929646
        %v155 = vmul.f32 %v153, 6.929646
        %156 = vxpose.xlu0.b32.start [1/16] %v154, 128
        %157 = vxpose.xlu0.b32.cont [2/16] %v155, 128
        %158 = vxpose.xlu0.b32.cont [3/16] 0.0, 128
        %159 = vxpose.xlu0.b32.cont [4/16] 0.0, 128
        %160 = vxpose.xlu0.b32.cont [5/16] 0.0, 128
        %161 = vxpose.xlu0.b32.cont [6/16] 0.0, 128
        %162 = vxpose.xlu0.b32.cont [7/16] 0.0, 128
        %163 = vxpose.xlu0.b32.cont [8/16] 0.0, 128
        %164 = vxpose.xlu0.b32.cont [9/16] 0.0, 128
        %165 = vxpose.xlu0.b32.cont [10/16] 0.0, 128
        %166 = vxpose.xlu0.b32.cont [11/16] 0.0, 128
        %167 = vxpose.xlu0.b32.cont [12/16] 0.0, 128
        %168 = vxpose.xlu0.b32.cont [13/16] 0.0, 128
        %169 = vxpose.xlu0.b32.cont [14/16] 0.0, 128
        %170 = vxpose.xlu0.b32.cont [15/16] 0.0, 128
        %171 = vxpose.xlu0.b32.end [16/16] 0.0, 128
        %v172 = vpop.trf.xlu0
        %v173 = vpop.trf.xlu0
        %v174 = vpop.trf.xlu0
        %v175 = vpop.trf.xlu0
        %v176 = vpop.trf.xlu0
        %v177 = vpop.trf.xlu0
        %v178 = vpop.trf.xlu0
        %v179 = vpop.trf.xlu0
        %v180 = vpop.trf.xlu0
        %v181 = vpop.trf.xlu0
        %v182 = vpop.trf.xlu0
        %v183 = vpop.trf.xlu0
        %v184 = vpop.trf.xlu0
        %v185 = vpop.trf.xlu0
        %v186 = vpop.trf.xlu0
        %v187 = vpop.trf.xlu0
        %189 = vset.pattern.permute.xlu0 0
        %190 = vperm.xlu0 %189, %v172
        %v191 = vpop.permute.xlu0 %190
        %194 = vset.pattern.permute.xlu0 0
        %195 = vperm.xlu0 %194, %v173
        %v196 = vpop.permute.xlu0 %195
        %199 = vset.pattern.permute.xlu0 0
        %200 = vperm.xlu0 %199, %v174
        %v201 = vpop.permute.xlu0 %200
        %204 = vset.pattern.permute.xlu0 0
        %205 = vperm.xlu0 %204, %v175
        %v206 = vpop.permute.xlu0 %205
        %209 = vset.pattern.permute.xlu0 0
        %210 = vperm.xlu0 %209, %v176
        %v211 = vpop.permute.xlu0 %210
        %214 = vset.pattern.permute.xlu0 0
        %215 = vperm.xlu0 %214, %v177
        %v216 = vpop.permute.xlu0 %215
        %219 = vset.pattern.permute.xlu0 0
        %220 = vperm.xlu0 %219, %v178
        %v221 = vpop.permute.xlu0 %220
        %224 = vset.pattern.permute.xlu0 0
        %225 = vperm.xlu0 %224, %v179
        %v226 = vpop.permute.xlu0 %225
        %229 = vset.pattern.permute.xlu0 0
        %230 = vperm.xlu0 %229, %v180
        %v231 = vpop.permute.xlu0 %230
        %234 = vset.pattern.permute.xlu0 0
        %235 = vperm.xlu0 %234, %v181
        %v236 = vpop.permute.xlu0 %235
        %239 = vset.pattern.permute.xlu0 0
        %240 = vperm.xlu0 %239, %v182
        %v241 = vpop.permute.xlu0 %240
        %244 = vset.pattern.permute.xlu0 0
        %245 = vperm.xlu0 %244, %v183
        %v246 = vpop.permute.xlu0 %245
        %249 = vset.pattern.permute.xlu0 0
        %250 = vperm.xlu0 %249, %v184
        %v251 = vpop.permute.xlu0 %250
        %254 = vset.pattern.permute.xlu0 0
        %255 = vperm.xlu0 %254, %v185
        %v256 = vpop.permute.xlu0 %255
        %259 = vset.pattern.permute.xlu0 0
        %260 = vperm.xlu0 %259, %v186
        %v261 = vpop.permute.xlu0 %260
        %264 = vset.pattern.permute.xlu0 0
        %265 = vperm.xlu0 %264, %v187
        %v266 = vpop.permute.xlu0 %265
        %v268 = vsub.f32 %v191, %v151
        %v269 = vsub.f32 %v196, %v151
        %v270 = vsub.f32 %v201, %v151
        %v271 = vsub.f32 %v206, %v151
        %v272 = vsub.f32 %v211, %v151
        %v273 = vsub.f32 %v216, %v151
        %v274 = vsub.f32 %v221, %v151
        %v275 = vsub.f32 %v226, %v151
        %v276 = vsub.f32 %v231, %v151
        %v277 = vsub.f32 %v236, %v151
        %v278 = vsub.f32 %v241, %v151
        %v279 = vsub.f32 %v246, %v151
        %v280 = vsub.f32 %v251, %v151
        %v281 = vsub.f32 %v256, %v151
        %v282 = vsub.f32 %v261, %v151
        %v283 = vsub.f32 %v266, %v151
        %v284 = vmul.f32 %v268, %v268
        %v285 = vmul.f32 %v269, %v269
        %v286 = vmul.f32 %v270, %v270
        %v287 = vmul.f32 %v271, %v271
        %v288 = vmul.f32 %v272, %v272
        %v289 = vmul.f32 %v273, %v273
        %v290 = vmul.f32 %v274, %v274
        %v291 = vmul.f32 %v275, %v275
        %v292 = vmul.f32 %v276, %v276
        %v293 = vmul.f32 %v277, %v277
        %v294 = vmul.f32 %v278, %v278
        %v295 = vmul.f32 %v279, %v279
        %v296 = vmul.f32 %v280, %v280
        %v297 = vmul.f32 %v281, %v281
        %v298 = vmul.f32 %v282, %v282
        %v299 = vmul.f32 %v283, %v283
        %v300 = vsub.f32 0.0, %v284
        %v301 = vsub.f32 0.0, %v285
        %v302 = vsub.f32 0.0, %v286
        %v303 = vsub.f32 0.0, %v287
        %v304 = vsub.f32 0.0, %v288
        %v305 = vsub.f32 0.0, %v289
        %v306 = vsub.f32 0.0, %v290
        %v307 = vsub.f32 0.0, %v291
        %v308 = vsub.f32 0.0, %v292
        %v309 = vsub.f32 0.0, %v293
        %v310 = vsub.f32 0.0, %v294
        %v311 = vsub.f32 0.0, %v295
        %v312 = vsub.f32 0.0, %v296
        %v313 = vsub.f32 0.0, %v297
        %v314 = vsub.f32 0.0, %v298
        %v315 = vsub.f32 0.0, %v299
        %v316 = vmul.f32 %v300, 1.442695
        %v317 = vpow.pop %v316
        %v318 = vmul.f32 %v301, 1.442695
        %v319 = vpow.pop %v318
        %v320 = vmul.f32 %v302, 1.442695
        %v321 = vpow.pop %v320
        %v322 = vmul.f32 %v303, 1.442695
        %v323 = vpow.pop %v322
        %v324 = vmul.f32 %v304, 1.442695
        %v325 = vpow.pop %v324
        %v326 = vmul.f32 %v305, 1.442695
        %v327 = vpow.pop %v326
        %v328 = vmul.f32 %v306, 1.442695
        %v329 = vpow.pop %v328
        %v330 = vmul.f32 %v307, 1.442695
        %v331 = vpow.pop %v330
        %v332 = vmul.f32 %v308, 1.442695
        %v333 = vpow.pop %v332
        %v334 = vmul.f32 %v309, 1.442695
        %v335 = vpow.pop %v334
        %v336 = vmul.f32 %v310, 1.442695
        %v337 = vpow.pop %v336
        %v338 = vmul.f32 %v311, 1.442695
        %v339 = vpow.pop %v338
        %v340 = vmul.f32 %v312, 1.442695
        %v341 = vpow.pop %v340
        %v342 = vmul.f32 %v313, 1.442695
        %v343 = vpow.pop %v342
        %v344 = vmul.f32 %v314, 1.442695
        %v345 = vpow.pop %v344
        %v346 = vmul.f32 %v315, 1.442695
        %v347 = vpow.pop %v346
        %vm348 = vcmask 408576
        %349 = vst.msk [vmem:[%s136] sm:$0xff] %vm348, %v317
        %350 = vst.msk [vmem:[%s136 + $0x8] sm:$0xff] %vm348, %v319
        %351 = vst.msk [vmem:[%s136 + $0x10] sm:$0xff] %vm348, %v321
        %352 = vst.msk [vmem:[%s136 + $0x18] sm:$0xff] %vm348, %v323
        %353 = vst.msk [vmem:[%s136 + $0x20] sm:$0xff] %vm348, %v325
        %354 = vst.msk [vmem:[%s136 + $0x28] sm:$0xff] %vm348, %v327
        %355 = vst.msk [vmem:[%s136 + $0x30] sm:$0xff] %vm348, %v329
        %356 = vst.msk [vmem:[%s136 + $0x38] sm:$0xff] %vm348, %v331
        %357 = vst.msk [vmem:[%s136 + $0x40] sm:$0xff] %vm348, %v333
        %358 = vst.msk [vmem:[%s136 + $0x48] sm:$0xff] %vm348, %v335
        %359 = vst.msk [vmem:[%s136 + $0x50] sm:$0xff] %vm348, %v337
        %360 = vst.msk [vmem:[%s136 + $0x58] sm:$0xff] %vm348, %v339
        %361 = vst.msk [vmem:[%s136 + $0x60] sm:$0xff] %vm348, %v341
        %362 = vst.msk [vmem:[%s136 + $0x68] sm:$0xff] %vm348, %v343
        %363 = vst.msk [vmem:[%s136 + $0x70] sm:$0xff] %vm348, %v345
        %364 = vst.msk [vmem:[%s136 + $0x78] sm:$0xff] %vm348, %v347
        %365 = vset.pattern.permute.xlu0 1
        %366 = vperm.xlu0 %365, %v172
        %v367 = vpop.permute.xlu0 %366
        %369 = vset.pattern.permute.xlu0 1
        %370 = vperm.xlu0 %369, %v173
        %v371 = vpop.permute.xlu0 %370
        %373 = vset.pattern.permute.xlu0 1
        %374 = vperm.xlu0 %373, %v174
        %v375 = vpop.permute.xlu0 %374
        %377 = vset.pattern.permute.xlu0 1
        %378 = vperm.xlu0 %377, %v175
        %v379 = vpop.permute.xlu0 %378
        %381 = vset.pattern.permute.xlu0 1
        %382 = vperm.xlu0 %381, %v176
        %v383 = vpop.permute.xlu0 %382
        %385 = vset.pattern.permute.xlu0 1
        %386 = vperm.xlu0 %385, %v177
        %v387 = vpop.permute.xlu0 %386
        %389 = vset.pattern.permute.xlu0 1
        %390 = vperm.xlu0 %389, %v178
        %v391 = vpop.permute.xlu0 %390
        %393 = vset.pattern.permute.xlu0 1
        %394 = vperm.xlu0 %393, %v179
        %v395 = vpop.permute.xlu0 %394
        %397 = vset.pattern.permute.xlu0 1
        %398 = vperm.xlu0 %397, %v180
        %v399 = vpop.permute.xlu0 %398
        %401 = vset.pattern.permute.xlu0 1
        %402 = vperm.xlu0 %401, %v181
        %v403 = vpop.permute.xlu0 %402
        %405 = vset.pattern.permute.xlu0 1
        %406 = vperm.xlu0 %405, %v182
        %v407 = vpop.permute.xlu0 %406
        %409 = vset.pattern.permute.xlu0 1
        %410 = vperm.xlu0 %409, %v183
        %v411 = vpop.permute.xlu0 %410
        %413 = vset.pattern.permute.xlu0 1
        %414 = vperm.xlu0 %413, %v184
        %v415 = vpop.permute.xlu0 %414
        %417 = vset.pattern.permute.xlu0 1
        %418 = vperm.xlu0 %417, %v185
        %v419 = vpop.permute.xlu0 %418
        %421 = vset.pattern.permute.xlu0 1
        %422 = vperm.xlu0 %421, %v186
        %v423 = vpop.permute.xlu0 %422
        %425 = vset.pattern.permute.xlu0 1
        %426 = vperm.xlu0 %425, %v187
        %v427 = vpop.permute.xlu0 %426
        %v429 = vsub.f32 %v367, %v151
        %v430 = vsub.f32 %v371, %v151
        %v431 = vsub.f32 %v375, %v151
        %v432 = vsub.f32 %v379, %v151
        %v433 = vsub.f32 %v383, %v151
        %v434 = vsub.f32 %v387, %v151
        %v435 = vsub.f32 %v391, %v151
        %v436 = vsub.f32 %v395, %v151
        %v437 = vsub.f32 %v399, %v151
        %v438 = vsub.f32 %v403, %v151
        %v439 = vsub.f32 %v407, %v151
        %v440 = vsub.f32 %v411, %v151
        %v441 = vsub.f32 %v415, %v151
        %v442 = vsub.f32 %v419, %v151
        %v443 = vsub.f32 %v423, %v151
        %v444 = vsub.f32 %v427, %v151
        %v445 = vmul.f32 %v429, %v429
        %v446 = vmul.f32 %v430, %v430
        %v447 = vmul.f32 %v431, %v431
        %v448 = vmul.f32 %v432, %v432
        %v449 = vmul.f32 %v433, %v433
        %v450 = vmul.f32 %v434, %v434
        %v451 = vmul.f32 %v435, %v435
        %v452 = vmul.f32 %v436, %v436
        %v453 = vmul.f32 %v437, %v437
        %v454 = vmul.f32 %v438, %v438
        %v455 = vmul.f32 %v439, %v439
        %v456 = vmul.f32 %v440, %v440
        %v457 = vmul.f32 %v441, %v441
        %v458 = vmul.f32 %v442, %v442
        %v459 = vmul.f32 %v443, %v443
        %v460 = vmul.f32 %v444, %v444
        %v461 = vsub.f32 0.0, %v445
        %v462 = vsub.f32 0.0, %v446
        %v463 = vsub.f32 0.0, %v447
        %v464 = vsub.f32 0.0, %v448
        %v465 = vsub.f32 0.0, %v449
        %v466 = vsub.f32 0.0, %v450
        %v467 = vsub.f32 0.0, %v451
        %v468 = vsub.f32 0.0, %v452
        %v469 = vsub.f32 0.0, %v453
        %v470 = vsub.f32 0.0, %v454
        %v471 = vsub.f32 0.0, %v455
        %v472 = vsub.f32 0.0, %v456
        %v473 = vsub.f32 0.0, %v457
        %v474 = vsub.f32 0.0, %v458
        %v475 = vsub.f32 0.0, %v459
        %v476 = vsub.f32 0.0, %v460
        %v477 = vmul.f32 %v461, 1.442695
        %v478 = vpow.pop %v477
        %v479 = vmul.f32 %v462, 1.442695
        %v480 = vpow.pop %v479
        %v481 = vmul.f32 %v463, 1.442695
        %v482 = vpow.pop %v481
        %v483 = vmul.f32 %v464, 1.442695
        %v484 = vpow.pop %v483
        %v485 = vmul.f32 %v465, 1.442695
        %v486 = vpow.pop %v485
        %v487 = vmul.f32 %v466, 1.442695
        %v488 = vpow.pop %v487
        %v489 = vmul.f32 %v467, 1.442695
        %v490 = vpow.pop %v489
        %v491 = vmul.f32 %v468, 1.442695
        %v492 = vpow.pop %v491
        %v493 = vmul.f32 %v469, 1.442695
        %v494 = vpow.pop %v493
        %v495 = vmul.f32 %v470, 1.442695
        %v496 = vpow.pop %v495
        %v497 = vmul.f32 %v471, 1.442695
        %v498 = vpow.pop %v497
        %v499 = vmul.f32 %v472, 1.442695
        %v500 = vpow.pop %v499
        %v501 = vmul.f32 %v473, 1.442695
        %v502 = vpow.pop %v501
        %v503 = vmul.f32 %v474, 1.442695
        %v504 = vpow.pop %v503
        %v505 = vmul.f32 %v475, 1.442695
        %v506 = vpow.pop %v505
        %v507 = vmul.f32 %v476, 1.442695
        %v508 = vpow.pop %v507
        %509 = vst.msk [vmem:[%s136 + $0x80] sm:$0xff] %vm348, %v478
        %510 = vst.msk [vmem:[%s136 + $0x88] sm:$0xff] %vm348, %v480
        %511 = vst.msk [vmem:[%s136 + $0x90] sm:$0xff] %vm348, %v482
        %512 = vst.msk [vmem:[%s136 + $0x98] sm:$0xff] %vm348, %v484
        %513 = vst.msk [vmem:[%s136 + $0xa0] sm:$0xff] %vm348, %v486
        %514 = vst.msk [vmem:[%s136 + $0xa8] sm:$0xff] %vm348, %v488
        %515 = vst.msk [vmem:[%s136 + $0xb0] sm:$0xff] %vm348, %v490
        %516 = vst.msk [vmem:[%s136 + $0xb8] sm:$0xff] %vm348, %v492
        %517 = vst.msk [vmem:[%s136 + $0xc0] sm:$0xff] %vm348, %v494
        %518 = vst.msk [vmem:[%s136 + $0xc8] sm:$0xff] %vm348, %v496
        %519 = vst.msk [vmem:[%s136 + $0xd0] sm:$0xff] %vm348, %v498
        %520 = vst.msk [vmem:[%s136 + $0xd8] sm:$0xff] %vm348, %v500
        %521 = vst.msk [vmem:[%s136 + $0xe0] sm:$0xff] %vm348, %v502
        %522 = vst.msk [vmem:[%s136 + $0xe8] sm:$0xff] %vm348, %v504
        %523 = vst.msk [vmem:[%s136 + $0xf0] sm:$0xff] %vm348, %v506
        %524 = vst.msk [vmem:[%s136 + $0xf8] sm:$0xff] %vm348, %v508
        %525 = vset.pattern.permute.xlu0 2
        %526 = vperm.xlu0 %525, %v172
        %v527 = vpop.permute.xlu0 %526
        %529 = vset.pattern.permute.xlu0 2
        %530 = vperm.xlu0 %529, %v173
        %v531 = vpop.permute.xlu0 %530
        %533 = vset.pattern.permute.xlu0 2
        %534 = vperm.xlu0 %533, %v174
        %v535 = vpop.permute.xlu0 %534
        %537 = vset.pattern.permute.xlu0 2
        %538 = vperm.xlu0 %537, %v175
        %v539 = vpop.permute.xlu0 %538
        %541 = vset.pattern.permute.xlu0 2
        %542 = vperm.xlu0 %541, %v176
        %v543 = vpop.permute.xlu0 %542
        %545 = vset.pattern.permute.xlu0 2
        %546 = vperm.xlu0 %545, %v177
        %v547 = vpop.permute.xlu0 %546
        %549 = vset.pattern.permute.xlu0 2
        %550 = vperm.xlu0 %549, %v178
        %v551 = vpop.permute.xlu0 %550
        %553 = vset.pattern.permute.xlu0 2
        %554 = vperm.xlu0 %553, %v179
        %v555 = vpop.permute.xlu0 %554
        %557 = vset.pattern.permute.xlu0 2
        %558 = vperm.xlu0 %557, %v180
        %v559 = vpop.permute.xlu0 %558
        %561 = vset.pattern.permute.xlu0 2
        %562 = vperm.xlu0 %561, %v181
        %v563 = vpop.permute.xlu0 %562
        %565 = vset.pattern.permute.xlu0 2
        %566 = vperm.xlu0 %565, %v182
        %v567 = vpop.permute.xlu0 %566
        %569 = vset.pattern.permute.xlu0 2
        %570 = vperm.xlu0 %569, %v183
        %v571 = vpop.permute.xlu0 %570
        %573 = vset.pattern.permute.xlu0 2
        %574 = vperm.xlu0 %573, %v184
        %v575 = vpop.permute.xlu0 %574
        %577 = vset.pattern.permute.xlu0 2
        %578 = vperm.xlu0 %577, %v185
        %v579 = vpop.permute.xlu0 %578
        %581 = vset.pattern.permute.xlu0 2
        %582 = vperm.xlu0 %581, %v186
        %v583 = vpop.permute.xlu0 %582
        %585 = vset.pattern.permute.xlu0 2
        %586 = vperm.xlu0 %585, %v187
        %v587 = vpop.permute.xlu0 %586
        %v589 = vsub.f32 %v527, %v151
        %v590 = vsub.f32 %v531, %v151
        %v591 = vsub.f32 %v535, %v151
        %v592 = vsub.f32 %v539, %v151
        %v593 = vsub.f32 %v543, %v151
        %v594 = vsub.f32 %v547, %v151
        %v595 = vsub.f32 %v551, %v151
        %v596 = vsub.f32 %v555, %v151
        %v597 = vsub.f32 %v559, %v151
        %v598 = vsub.f32 %v563, %v151
        %v599 = vsub.f32 %v567, %v151
        %v600 = vsub.f32 %v571, %v151
        %v601 = vsub.f32 %v575, %v151
        %v602 = vsub.f32 %v579, %v151
        %v603 = vsub.f32 %v583, %v151
        %v604 = vsub.f32 %v587, %v151
        %v605 = vmul.f32 %v589, %v589
        %v606 = vmul.f32 %v590, %v590
        %v607 = vmul.f32 %v591, %v591
        %v608 = vmul.f32 %v592, %v592
        %v609 = vmul.f32 %v593, %v593
        %v610 = vmul.f32 %v594, %v594
        %v611 = vmul.f32 %v595, %v595
        %v612 = vmul.f32 %v596, %v596
        %v613 = vmul.f32 %v597, %v597
        %v614 = vmul.f32 %v598, %v598
        %v615 = vmul.f32 %v599, %v599
        %v616 = vmul.f32 %v600, %v600
        %v617 = vmul.f32 %v601, %v601
        %v618 = vmul.f32 %v602, %v602
        %v619 = vmul.f32 %v603, %v603
        %v620 = vmul.f32 %v604, %v604
        %v621 = vsub.f32 0.0, %v605
        %v622 = vsub.f32 0.0, %v606
        %v623 = vsub.f32 0.0, %v607
        %v624 = vsub.f32 0.0, %v608
        %v625 = vsub.f32 0.0, %v609
        %v626 = vsub.f32 0.0, %v610
        %v627 = vsub.f32 0.0, %v611
        %v628 = vsub.f32 0.0, %v612
        %v629 = vsub.f32 0.0, %v613
        %v630 = vsub.f32 0.0, %v614
        %v631 = vsub.f32 0.0, %v615
        %v632 = vsub.f32 0.0, %v616
        %v633 = vsub.f32 0.0, %v617
        %v634 = vsub.f32 0.0, %v618
        %v635 = vsub.f32 0.0, %v619
        %v636 = vsub.f32 0.0, %v620
        %v637 = vmul.f32 %v621, 1.442695
        %v638 = vpow.pop %v637
        %v639 = vmul.f32 %v622, 1.442695
        %v640 = vpow.pop %v639
        %v641 = vmul.f32 %v623, 1.442695
        %v642 = vpow.pop %v641
        %v643 = vmul.f32 %v624, 1.442695
        %v644 = vpow.pop %v643
        %v645 = vmul.f32 %v625, 1.442695
        %v646 = vpow.pop %v645
        %v647 = vmul.f32 %v626, 1.442695
        %v648 = vpow.pop %v647
        %v649 = vmul.f32 %v627, 1.442695
        %v650 = vpow.pop %v649
        %v651 = vmul.f32 %v628, 1.442695
        %v652 = vpow.pop %v651
        %v653 = vmul.f32 %v629, 1.442695
        %v654 = vpow.pop %v653
        %v655 = vmul.f32 %v630, 1.442695
        %v656 = vpow.pop %v655
        %v657 = vmul.f32 %v631, 1.442695
        %v658 = vpow.pop %v657
        %v659 = vmul.f32 %v632, 1.442695
        %v660 = vpow.pop %v659
        %v661 = vmul.f32 %v633, 1.442695
        %v662 = vpow.pop %v661
        %v663 = vmul.f32 %v634, 1.442695
        %v664 = vpow.pop %v663
        %v665 = vmul.f32 %v635, 1.442695
        %v666 = vpow.pop %v665
        %v667 = vmul.f32 %v636, 1.442695
        %v668 = vpow.pop %v667
        %669 = vst.msk [vmem:[%s136 + $0x100] sm:$0xff] %vm348, %v638
        %670 = vst.msk [vmem:[%s136 + $0x108] sm:$0xff] %vm348, %v640
        %671 = vst.msk [vmem:[%s136 + $0x110] sm:$0xff] %vm348, %v642
        %672 = vst.msk [vmem:[%s136 + $0x118] sm:$0xff] %vm348, %v644
        %673 = vst.msk [vmem:[%s136 + $0x120] sm:$0xff] %vm348, %v646
        %674 = vst.msk [vmem:[%s136 + $0x128] sm:$0xff] %vm348, %v648
        %675 = vst.msk [vmem:[%s136 + $0x130] sm:$0xff] %vm348, %v650
        %676 = vst.msk [vmem:[%s136 + $0x138] sm:$0xff] %vm348, %v652
        %677 = vst.msk [vmem:[%s136 + $0x140] sm:$0xff] %vm348, %v654
        %678 = vst.msk [vmem:[%s136 + $0x148] sm:$0xff] %vm348, %v656
        %679 = vst.msk [vmem:[%s136 + $0x150] sm:$0xff] %vm348, %v658
        %680 = vst.msk [vmem:[%s136 + $0x158] sm:$0xff] %vm348, %v660
        %681 = vst.msk [vmem:[%s136 + $0x160] sm:$0xff] %vm348, %v662
        %682 = vst.msk [vmem:[%s136 + $0x168] sm:$0xff] %vm348, %v664
        %683 = vst.msk [vmem:[%s136 + $0x170] sm:$0xff] %vm348, %v666
        %684 = vst.msk [vmem:[%s136 + $0x178] sm:$0xff] %vm348, %v668
        %685 = vset.pattern.permute.xlu0 3
        %686 = vperm.xlu0 %685, %v172
        %v687 = vpop.permute.xlu0 %686
        %689 = vset.pattern.permute.xlu0 3
        %690 = vperm.xlu0 %689, %v173
        %v691 = vpop.permute.xlu0 %690
        %693 = vset.pattern.permute.xlu0 3
        %694 = vperm.xlu0 %693, %v174
        %v695 = vpop.permute.xlu0 %694
        %697 = vset.pattern.permute.xlu0 3
        %698 = vperm.xlu0 %697, %v175
        %v699 = vpop.permute.xlu0 %698
        %701 = vset.pattern.permute.xlu0 3
        %702 = vperm.xlu0 %701, %v176
        %v703 = vpop.permute.xlu0 %702
        %705 = vset.pattern.permute.xlu0 3
        %706 = vperm.xlu0 %705, %v177
        %v707 = vpop.permute.xlu0 %706
        %709 = vset.pattern.permute.xlu0 3
        %710 = vperm.xlu0 %709, %v178
        %v711 = vpop.permute.xlu0 %710
        %713 = vset.pattern.permute.xlu0 3
        %714 = vperm.xlu0 %713, %v179
        %v715 = vpop.permute.xlu0 %714
        %717 = vset.pattern.permute.xlu0 3
        %718 = vperm.xlu0 %717, %v180
        %v719 = vpop.permute.xlu0 %718
        %721 = vset.pattern.permute.xlu0 3
        %722 = vperm.xlu0 %721, %v181
        %v723 = vpop.permute.xlu0 %722
        %725 = vset.pattern.permute.xlu0 3
        %726 = vperm.xlu0 %725, %v182
        %v727 = vpop.permute.xlu0 %726
        %729 = vset.pattern.permute.xlu0 3
        %730 = vperm.xlu0 %729, %v183
        %v731 = vpop.permute.xlu0 %730
        %733 = vset.pattern.permute.xlu0 3
        %734 = vperm.xlu0 %733, %v184
        %v735 = vpop.permute.xlu0 %734
        %737 = vset.pattern.permute.xlu0 3
        %738 = vperm.xlu0 %737, %v185
        %v739 = vpop.permute.xlu0 %738
        %741 = vset.pattern.permute.xlu0 3
        %742 = vperm.xlu0 %741, %v186
        %v743 = vpop.permute.xlu0 %742
        %745 = vset.pattern.permute.xlu0 3
        %746 = vperm.xlu0 %745, %v187
        %v747 = vpop.permute.xlu0 %746
        %v749 = vsub.f32 %v687, %v151
        %v750 = vsub.f32 %v691, %v151
        %v751 = vsub.f32 %v695, %v151
        %v752 = vsub.f32 %v699, %v151
        %v753 = vsub.f32 %v703, %v151
        %v754 = vsub.f32 %v707, %v151
        %v755 = vsub.f32 %v711, %v151
        %v756 = vsub.f32 %v715, %v151
        %v757 = vsub.f32 %v719, %v151
        %v758 = vsub.f32 %v723, %v151
        %v759 = vsub.f32 %v727, %v151
        %v760 = vsub.f32 %v731, %v151
        %v761 = vsub.f32 %v735, %v151
        %v762 = vsub.f32 %v739, %v151
        %v763 = vsub.f32 %v743, %v151
        %v764 = vsub.f32 %v747, %v151
        %v765 = vmul.f32 %v749, %v749
        %v766 = vmul.f32 %v750, %v750
        %v767 = vmul.f32 %v751, %v751
        %v768 = vmul.f32 %v752, %v752
        %v769 = vmul.f32 %v753, %v753
        %v770 = vmul.f32 %v754, %v754
        %v771 = vmul.f32 %v755, %v755
        %v772 = vmul.f32 %v756, %v756
        %v773 = vmul.f32 %v757, %v757
        %v774 = vmul.f32 %v758, %v758
        %v775 = vmul.f32 %v759, %v759
        %v776 = vmul.f32 %v760, %v760
        %v777 = vmul.f32 %v761, %v761
        %v778 = vmul.f32 %v762, %v762
        %v779 = vmul.f32 %v763, %v763
        %v780 = vmul.f32 %v764, %v764
        %v781 = vsub.f32 0.0, %v765
        %v782 = vsub.f32 0.0, %v766
        %v783 = vsub.f32 0.0, %v767
        %v784 = vsub.f32 0.0, %v768
        %v785 = vsub.f32 0.0, %v769
        %v786 = vsub.f32 0.0, %v770
        %v787 = vsub.f32 0.0, %v771
        %v788 = vsub.f32 0.0, %v772
        %v789 = vsub.f32 0.0, %v773
        %v790 = vsub.f32 0.0, %v774
        %v791 = vsub.f32 0.0, %v775
        %v792 = vsub.f32 0.0, %v776
        %v793 = vsub.f32 0.0, %v777
        %v794 = vsub.f32 0.0, %v778
        %v795 = vsub.f32 0.0, %v779
        %v796 = vsub.f32 0.0, %v780
        %v797 = vmul.f32 %v781, 1.442695
        %v798 = vpow.pop %v797
        %v799 = vmul.f32 %v782, 1.442695
        %v800 = vpow.pop %v799
        %v801 = vmul.f32 %v783, 1.442695
        %v802 = vpow.pop %v801
        %v803 = vmul.f32 %v784, 1.442695
        %v804 = vpow.pop %v803
        %v805 = vmul.f32 %v785, 1.442695
        %v806 = vpow.pop %v805
        %v807 = vmul.f32 %v786, 1.442695
        %v808 = vpow.pop %v807
        %v809 = vmul.f32 %v787, 1.442695
        %v810 = vpow.pop %v809
        %v811 = vmul.f32 %v788, 1.442695
        %v812 = vpow.pop %v811
        %v813 = vmul.f32 %v789, 1.442695
        %v814 = vpow.pop %v813
        %v815 = vmul.f32 %v790, 1.442695
        %v816 = vpow.pop %v815
        %v817 = vmul.f32 %v791, 1.442695
        %v818 = vpow.pop %v817
        %v819 = vmul.f32 %v792, 1.442695
        %v820 = vpow.pop %v819
        %v821 = vmul.f32 %v793, 1.442695
        %v822 = vpow.pop %v821
        %v823 = vmul.f32 %v794, 1.442695
        %v824 = vpow.pop %v823
        %v825 = vmul.f32 %v795, 1.442695
        %v826 = vpow.pop %v825
        %v827 = vmul.f32 %v796, 1.442695
        %v828 = vpow.pop %v827
        %829 = vst.msk [vmem:[%s136 + $0x180] sm:$0xff] %vm348, %v798
        %830 = vst.msk [vmem:[%s136 + $0x188] sm:$0xff] %vm348, %v800
        %831 = vst.msk [vmem:[%s136 + $0x190] sm:$0xff] %vm348, %v802
        %832 = vst.msk [vmem:[%s136 + $0x198] sm:$0xff] %vm348, %v804
        %833 = vst.msk [vmem:[%s136 + $0x1a0] sm:$0xff] %vm348, %v806
        %834 = vst.msk [vmem:[%s136 + $0x1a8] sm:$0xff] %vm348, %v808
        %835 = vst.msk [vmem:[%s136 + $0x1b0] sm:$0xff] %vm348, %v810
        %836 = vst.msk [vmem:[%s136 + $0x1b8] sm:$0xff] %vm348, %v812
        %837 = vst.msk [vmem:[%s136 + $0x1c0] sm:$0xff] %vm348, %v814
        %838 = vst.msk [vmem:[%s136 + $0x1c8] sm:$0xff] %vm348, %v816
        %839 = vst.msk [vmem:[%s136 + $0x1d0] sm:$0xff] %vm348, %v818
        %840 = vst.msk [vmem:[%s136 + $0x1d8] sm:$0xff] %vm348, %v820
        %841 = vst.msk [vmem:[%s136 + $0x1e0] sm:$0xff] %vm348, %v822
        %842 = vst.msk [vmem:[%s136 + $0x1e8] sm:$0xff] %vm348, %v824
        %843 = vst.msk [vmem:[%s136 + $0x1f0] sm:$0xff] %vm348, %v826
        %844 = vst.msk [vmem:[%s136 + $0x1f8] sm:$0xff] %vm348, %v828
        %845 = vset.pattern.permute.xlu0 4
        %846 = vperm.xlu0 %845, %v172
        %v847 = vpop.permute.xlu0 %846
        %849 = vset.pattern.permute.xlu0 4
        %850 = vperm.xlu0 %849, %v173
        %v851 = vpop.permute.xlu0 %850
        %853 = vset.pattern.permute.xlu0 4
        %854 = vperm.xlu0 %853, %v174
        %v855 = vpop.permute.xlu0 %854
        %857 = vset.pattern.permute.xlu0 4
        %858 = vperm.xlu0 %857, %v175
        %v859 = vpop.permute.xlu0 %858
        %861 = vset.pattern.permute.xlu0 4
        %862 = vperm.xlu0 %861, %v176
        %v863 = vpop.permute.xlu0 %862
        %865 = vset.pattern.permute.xlu0 4
        %866 = vperm.xlu0 %865, %v177
        %v867 = vpop.permute.xlu0 %866
        %869 = vset.pattern.permute.xlu0 4
        %870 = vperm.xlu0 %869, %v178
        %v871 = vpop.permute.xlu0 %870
        %873 = vset.pattern.permute.xlu0 4
        %874 = vperm.xlu0 %873, %v179
        %v875 = vpop.permute.xlu0 %874
        %877 = vset.pattern.permute.xlu0 4
        %878 = vperm.xlu0 %877, %v180
        %v879 = vpop.permute.xlu0 %878
        %881 = vset.pattern.permute.xlu0 4
        %882 = vperm.xlu0 %881, %v181
        %v883 = vpop.permute.xlu0 %882
        %885 = vset.pattern.permute.xlu0 4
        %886 = vperm.xlu0 %885, %v182
        %v887 = vpop.permute.xlu0 %886
        %889 = vset.pattern.permute.xlu0 4
        %890 = vperm.xlu0 %889, %v183
        %v891 = vpop.permute.xlu0 %890
        %893 = vset.pattern.permute.xlu0 4
        %894 = vperm.xlu0 %893, %v184
        %v895 = vpop.permute.xlu0 %894
        %897 = vset.pattern.permute.xlu0 4
        %898 = vperm.xlu0 %897, %v185
        %v899 = vpop.permute.xlu0 %898
        %901 = vset.pattern.permute.xlu0 4
        %902 = vperm.xlu0 %901, %v186
        %v903 = vpop.permute.xlu0 %902
        %905 = vset.pattern.permute.xlu0 4
        %906 = vperm.xlu0 %905, %v187
        %v907 = vpop.permute.xlu0 %906
        %v909 = vsub.f32 %v847, %v151
        %v910 = vsub.f32 %v851, %v151
        %v911 = vsub.f32 %v855, %v151
        %v912 = vsub.f32 %v859, %v151
        %v913 = vsub.f32 %v863, %v151
        %v914 = vsub.f32 %v867, %v151
        %v915 = vsub.f32 %v871, %v151
        %v916 = vsub.f32 %v875, %v151
        %v917 = vsub.f32 %v879, %v151
        %v918 = vsub.f32 %v883, %v151
        %v919 = vsub.f32 %v887, %v151
        %v920 = vsub.f32 %v891, %v151
        %v921 = vsub.f32 %v895, %v151
        %v922 = vsub.f32 %v899, %v151
        %v923 = vsub.f32 %v903, %v151
        %v924 = vsub.f32 %v907, %v151
        %v925 = vmul.f32 %v909, %v909
        %v926 = vmul.f32 %v910, %v910
        %v927 = vmul.f32 %v911, %v911
        %v928 = vmul.f32 %v912, %v912
        %v929 = vmul.f32 %v913, %v913
        %v930 = vmul.f32 %v914, %v914
        %v931 = vmul.f32 %v915, %v915
        %v932 = vmul.f32 %v916, %v916
        %v933 = vmul.f32 %v917, %v917
        %v934 = vmul.f32 %v918, %v918
        %v935 = vmul.f32 %v919, %v919
        %v936 = vmul.f32 %v920, %v920
        %v937 = vmul.f32 %v921, %v921
        %v938 = vmul.f32 %v922, %v922
        %v939 = vmul.f32 %v923, %v923
        %v940 = vmul.f32 %v924, %v924
        %v941 = vsub.f32 0.0, %v925
        %v942 = vsub.f32 0.0, %v926
        %v943 = vsub.f32 0.0, %v927
        %v944 = vsub.f32 0.0, %v928
        %v945 = vsub.f32 0.0, %v929
        %v946 = vsub.f32 0.0, %v930
        %v947 = vsub.f32 0.0, %v931
        %v948 = vsub.f32 0.0, %v932
        %v949 = vsub.f32 0.0, %v933
        %v950 = vsub.f32 0.0, %v934
        %v951 = vsub.f32 0.0, %v935
        %v952 = vsub.f32 0.0, %v936
        %v953 = vsub.f32 0.0, %v937
        %v954 = vsub.f32 0.0, %v938
        %v955 = vsub.f32 0.0, %v939
        %v956 = vsub.f32 0.0, %v940
        %v957 = vmul.f32 %v941, 1.442695
        %v958 = vpow.pop %v957
        %v959 = vmul.f32 %v942, 1.442695
        %v960 = vpow.pop %v959
        %v961 = vmul.f32 %v943, 1.442695
        %v962 = vpow.pop %v961
        %v963 = vmul.f32 %v944, 1.442695
        %v964 = vpow.pop %v963
        %v965 = vmul.f32 %v945, 1.442695
        %v966 = vpow.pop %v965
        %v967 = vmul.f32 %v946, 1.442695
        %v968 = vpow.pop %v967
        %v969 = vmul.f32 %v947, 1.442695
        %v970 = vpow.pop %v969
        %v971 = vmul.f32 %v948, 1.442695
        %v972 = vpow.pop %v971
        %v973 = vmul.f32 %v949, 1.442695
        %v974 = vpow.pop %v973
        %v975 = vmul.f32 %v950, 1.442695
        %v976 = vpow.pop %v975
        %v977 = vmul.f32 %v951, 1.442695
        %v978 = vpow.pop %v977
        %v979 = vmul.f32 %v952, 1.442695
        %v980 = vpow.pop %v979
        %v981 = vmul.f32 %v953, 1.442695
        %v982 = vpow.pop %v981
        %v983 = vmul.f32 %v954, 1.442695
        %v984 = vpow.pop %v983
        %v985 = vmul.f32 %v955, 1.442695
        %v986 = vpow.pop %v985
        %v987 = vmul.f32 %v956, 1.442695
        %v988 = vpow.pop %v987
        %989 = vst.msk [vmem:[%s136 + $0x200] sm:$0xff] %vm348, %v958
        %990 = vst.msk [vmem:[%s136 + $0x208] sm:$0xff] %vm348, %v960
        %991 = vst.msk [vmem:[%s136 + $0x210] sm:$0xff] %vm348, %v962
        %992 = vst.msk [vmem:[%s136 + $0x218] sm:$0xff] %vm348, %v964
        %993 = vst.msk [vmem:[%s136 + $0x220] sm:$0xff] %vm348, %v966
        %994 = vst.msk [vmem:[%s136 + $0x228] sm:$0xff] %vm348, %v968
        %995 = vst.msk [vmem:[%s136 + $0x230] sm:$0xff] %vm348, %v970
        %996 = vst.msk [vmem:[%s136 + $0x238] sm:$0xff] %vm348, %v972
        %997 = vst.msk [vmem:[%s136 + $0x240] sm:$0xff] %vm348, %v974
        %998 = vst.msk [vmem:[%s136 + $0x248] sm:$0xff] %vm348, %v976
        %999 = vst.msk [vmem:[%s136 + $0x250] sm:$0xff] %vm348, %v978
        %1000 = vst.msk [vmem:[%s136 + $0x258] sm:$0xff] %vm348, %v980
        %1001 = vst.msk [vmem:[%s136 + $0x260] sm:$0xff] %vm348, %v982
        %1002 = vst.msk [vmem:[%s136 + $0x268] sm:$0xff] %vm348, %v984
        %1003 = vst.msk [vmem:[%s136 + $0x270] sm:$0xff] %vm348, %v986
        %1004 = vst.msk [vmem:[%s136 + $0x278] sm:$0xff] %vm348, %v988
        %1005 = vset.pattern.permute.xlu0 5
        %1006 = vperm.xlu0 %1005, %v172
        %v1007 = vpop.permute.xlu0 %1006
        %1009 = vset.pattern.permute.xlu0 5
        %1010 = vperm.xlu0 %1009, %v173
        %v1011 = vpop.permute.xlu0 %1010
        %1013 = vset.pattern.permute.xlu0 5
        %1014 = vperm.xlu0 %1013, %v174
        %v1015 = vpop.permute.xlu0 %1014
        %1017 = vset.pattern.permute.xlu0 5
        %1018 = vperm.xlu0 %1017, %v175
        %v1019 = vpop.permute.xlu0 %1018
        %1021 = vset.pattern.permute.xlu0 5
        %1022 = vperm.xlu0 %1021, %v176
        %v1023 = vpop.permute.xlu0 %1022
        %1025 = vset.pattern.permute.xlu0 5
        %1026 = vperm.xlu0 %1025, %v177
        %v1027 = vpop.permute.xlu0 %1026
        %1029 = vset.pattern.permute.xlu0 5
        %1030 = vperm.xlu0 %1029, %v178
        %v1031 = vpop.permute.xlu0 %1030
        %1033 = vset.pattern.permute.xlu0 5
        %1034 = vperm.xlu0 %1033, %v179
        %v1035 = vpop.permute.xlu0 %1034
        %1037 = vset.pattern.permute.xlu0 5
        %1038 = vperm.xlu0 %1037, %v180
        %v1039 = vpop.permute.xlu0 %1038
        %1041 = vset.pattern.permute.xlu0 5
        %1042 = vperm.xlu0 %1041, %v181
        %v1043 = vpop.permute.xlu0 %1042
        %1045 = vset.pattern.permute.xlu0 5
        %1046 = vperm.xlu0 %1045, %v182
        %v1047 = vpop.permute.xlu0 %1046
        %1049 = vset.pattern.permute.xlu0 5
        %1050 = vperm.xlu0 %1049, %v183
        %v1051 = vpop.permute.xlu0 %1050
        %1053 = vset.pattern.permute.xlu0 5
        %1054 = vperm.xlu0 %1053, %v184
        %v1055 = vpop.permute.xlu0 %1054
        %1057 = vset.pattern.permute.xlu0 5
        %1058 = vperm.xlu0 %1057, %v185
        %v1059 = vpop.permute.xlu0 %1058
        %1061 = vset.pattern.permute.xlu0 5
        %1062 = vperm.xlu0 %1061, %v186
        %v1063 = vpop.permute.xlu0 %1062
        %1065 = vset.pattern.permute.xlu0 5
        %1066 = vperm.xlu0 %1065, %v187
        %v1067 = vpop.permute.xlu0 %1066
        %v1069 = vsub.f32 %v1007, %v151
        %v1070 = vsub.f32 %v1011, %v151
        %v1071 = vsub.f32 %v1015, %v151
        %v1072 = vsub.f32 %v1019, %v151
        %v1073 = vsub.f32 %v1023, %v151
        %v1074 = vsub.f32 %v1027, %v151
        %v1075 = vsub.f32 %v1031, %v151
        %v1076 = vsub.f32 %v1035, %v151
        %v1077 = vsub.f32 %v1039, %v151
        %v1078 = vsub.f32 %v1043, %v151
        %v1079 = vsub.f32 %v1047, %v151
        %v1080 = vsub.f32 %v1051, %v151
        %v1081 = vsub.f32 %v1055, %v151
        %v1082 = vsub.f32 %v1059, %v151
        %v1083 = vsub.f32 %v1063, %v151
        %v1084 = vsub.f32 %v1067, %v151
        %v1085 = vmul.f32 %v1069, %v1069
        %v1086 = vmul.f32 %v1070, %v1070
        %v1087 = vmul.f32 %v1071, %v1071
        %v1088 = vmul.f32 %v1072, %v1072
        %v1089 = vmul.f32 %v1073, %v1073
        %v1090 = vmul.f32 %v1074, %v1074
        %v1091 = vmul.f32 %v1075, %v1075
        %v1092 = vmul.f32 %v1076, %v1076
        %v1093 = vmul.f32 %v1077, %v1077
        %v1094 = vmul.f32 %v1078, %v1078
        %v1095 = vmul.f32 %v1079, %v1079
        %v1096 = vmul.f32 %v1080, %v1080
        %v1097 = vmul.f32 %v1081, %v1081
        %v1098 = vmul.f32 %v1082, %v1082
        %v1099 = vmul.f32 %v1083, %v1083
        %v1100 = vmul.f32 %v1084, %v1084
        %v1101 = vsub.f32 0.0, %v1085
        %v1102 = vsub.f32 0.0, %v1086
        %v1103 = vsub.f32 0.0, %v1087
        %v1104 = vsub.f32 0.0, %v1088
        %v1105 = vsub.f32 0.0, %v1089
        %v1106 = vsub.f32 0.0, %v1090
        %v1107 = vsub.f32 0.0, %v1091
        %v1108 = vsub.f32 0.0, %v1092
        %v1109 = vsub.f32 0.0, %v1093
        %v1110 = vsub.f32 0.0, %v1094
        %v1111 = vsub.f32 0.0, %v1095
        %v1112 = vsub.f32 0.0, %v1096
        %v1113 = vsub.f32 0.0, %v1097
        %v1114 = vsub.f32 0.0, %v1098
        %v1115 = vsub.f32 0.0, %v1099
        %v1116 = vsub.f32 0.0, %v1100
        %v1117 = vmul.f32 %v1101, 1.442695
        %v1118 = vpow.pop %v1117
        %v1119 = vmul.f32 %v1102, 1.442695
        %v1120 = vpow.pop %v1119
        %v1121 = vmul.f32 %v1103, 1.442695
        %v1122 = vpow.pop %v1121
        %v1123 = vmul.f32 %v1104, 1.442695
        %v1124 = vpow.pop %v1123
        %v1125 = vmul.f32 %v1105, 1.442695
        %v1126 = vpow.pop %v1125
        %v1127 = vmul.f32 %v1106, 1.442695
        %v1128 = vpow.pop %v1127
        %v1129 = vmul.f32 %v1107, 1.442695
        %v1130 = vpow.pop %v1129
        %v1131 = vmul.f32 %v1108, 1.442695
        %v1132 = vpow.pop %v1131
        %v1133 = vmul.f32 %v1109, 1.442695
        %v1134 = vpow.pop %v1133
        %v1135 = vmul.f32 %v1110, 1.442695
        %v1136 = vpow.pop %v1135
        %v1137 = vmul.f32 %v1111, 1.442695
        %v1138 = vpow.pop %v1137
        %v1139 = vmul.f32 %v1112, 1.442695
        %v1140 = vpow.pop %v1139
        %v1141 = vmul.f32 %v1113, 1.442695
        %v1142 = vpow.pop %v1141
        %v1143 = vmul.f32 %v1114, 1.442695
        %v1144 = vpow.pop %v1143
        %v1145 = vmul.f32 %v1115, 1.442695
        %v1146 = vpow.pop %v1145
        %v1147 = vmul.f32 %v1116, 1.442695
        %v1148 = vpow.pop %v1147
        %1149 = vst.msk [vmem:[%s136 + $0x280] sm:$0xff] %vm348, %v1118
        %1150 = vst.msk [vmem:[%s136 + $0x288] sm:$0xff] %vm348, %v1120
        %1151 = vst.msk [vmem:[%s136 + $0x290] sm:$0xff] %vm348, %v1122
        %1152 = vst.msk [vmem:[%s136 + $0x298] sm:$0xff] %vm348, %v1124
        %1153 = vst.msk [vmem:[%s136 + $0x2a0] sm:$0xff] %vm348, %v1126
        %1154 = vst.msk [vmem:[%s136 + $0x2a8] sm:$0xff] %vm348, %v1128
        %1155 = vst.msk [vmem:[%s136 + $0x2b0] sm:$0xff] %vm348, %v1130
        %1156 = vst.msk [vmem:[%s136 + $0x2b8] sm:$0xff] %vm348, %v1132
        %1157 = vst.msk [vmem:[%s136 + $0x2c0] sm:$0xff] %vm348, %v1134
        %1158 = vst.msk [vmem:[%s136 + $0x2c8] sm:$0xff] %vm348, %v1136
        %1159 = vst.msk [vmem:[%s136 + $0x2d0] sm:$0xff] %vm348, %v1138
        %1160 = vst.msk [vmem:[%s136 + $0x2d8] sm:$0xff] %vm348, %v1140
        %1161 = vst.msk [vmem:[%s136 + $0x2e0] sm:$0xff] %vm348, %v1142
        %1162 = vst.msk [vmem:[%s136 + $0x2e8] sm:$0xff] %vm348, %v1144
        %1163 = vst.msk [vmem:[%s136 + $0x2f0] sm:$0xff] %vm348, %v1146
        %1164 = vst.msk [vmem:[%s136 + $0x2f8] sm:$0xff] %vm348, %v1148
        %1165 = vset.pattern.permute.xlu0 6
        %1166 = vperm.xlu0 %1165, %v172
        %v1167 = vpop.permute.xlu0 %1166
        %1169 = vset.pattern.permute.xlu0 6
        %1170 = vperm.xlu0 %1169, %v173
        %v1171 = vpop.permute.xlu0 %1170
        %1173 = vset.pattern.permute.xlu0 6
        %1174 = vperm.xlu0 %1173, %v174
        %v1175 = vpop.permute.xlu0 %1174
        %1177 = vset.pattern.permute.xlu0 6
        %1178 = vperm.xlu0 %1177, %v175
        %v1179 = vpop.permute.xlu0 %1178
        %1181 = vset.pattern.permute.xlu0 6
        %1182 = vperm.xlu0 %1181, %v176
        %v1183 = vpop.permute.xlu0 %1182
        %1185 = vset.pattern.permute.xlu0 6
        %1186 = vperm.xlu0 %1185, %v177
        %v1187 = vpop.permute.xlu0 %1186
        %1189 = vset.pattern.permute.xlu0 6
        %1190 = vperm.xlu0 %1189, %v178
        %v1191 = vpop.permute.xlu0 %1190
        %1193 = vset.pattern.permute.xlu0 6
        %1194 = vperm.xlu0 %1193, %v179
        %v1195 = vpop.permute.xlu0 %1194
        %1197 = vset.pattern.permute.xlu0 6
        %1198 = vperm.xlu0 %1197, %v180
        %v1199 = vpop.permute.xlu0 %1198
        %1201 = vset.pattern.permute.xlu0 6
        %1202 = vperm.xlu0 %1201, %v181
        %v1203 = vpop.permute.xlu0 %1202
        %1205 = vset.pattern.permute.xlu0 6
        %1206 = vperm.xlu0 %1205, %v182
        %v1207 = vpop.permute.xlu0 %1206
        %1209 = vset.pattern.permute.xlu0 6
        %1210 = vperm.xlu0 %1209, %v183
        %v1211 = vpop.permute.xlu0 %1210
        %1213 = vset.pattern.permute.xlu0 6
        %1214 = vperm.xlu0 %1213, %v184
        %v1215 = vpop.permute.xlu0 %1214
        %1217 = vset.pattern.permute.xlu0 6
        %1218 = vperm.xlu0 %1217, %v185
        %v1219 = vpop.permute.xlu0 %1218
        %1221 = vset.pattern.permute.xlu0 6
        %1222 = vperm.xlu0 %1221, %v186
        %v1223 = vpop.permute.xlu0 %1222
        %1225 = vset.pattern.permute.xlu0 6
        %1226 = vperm.xlu0 %1225, %v187
        %v1227 = vpop.permute.xlu0 %1226
        %v1229 = vsub.f32 %v1167, %v151
        %v1230 = vsub.f32 %v1171, %v151
        %v1231 = vsub.f32 %v1175, %v151
        %v1232 = vsub.f32 %v1179, %v151
        %v1233 = vsub.f32 %v1183, %v151
        %v1234 = vsub.f32 %v1187, %v151
        %v1235 = vsub.f32 %v1191, %v151
        %v1236 = vsub.f32 %v1195, %v151
        %v1237 = vsub.f32 %v1199, %v151
        %v1238 = vsub.f32 %v1203, %v151
        %v1239 = vsub.f32 %v1207, %v151
        %v1240 = vsub.f32 %v1211, %v151
        %v1241 = vsub.f32 %v1215, %v151
        %v1242 = vsub.f32 %v1219, %v151
        %v1243 = vsub.f32 %v1223, %v151
        %v1244 = vsub.f32 %v1227, %v151
        %v1245 = vmul.f32 %v1229, %v1229
        %v1246 = vmul.f32 %v1230, %v1230
        %v1247 = vmul.f32 %v1231, %v1231
        %v1248 = vmul.f32 %v1232, %v1232
        %v1249 = vmul.f32 %v1233, %v1233
        %v1250 = vmul.f32 %v1234, %v1234
        %v1251 = vmul.f32 %v1235, %v1235
        %v1252 = vmul.f32 %v1236, %v1236
        %v1253 = vmul.f32 %v1237, %v1237
        %v1254 = vmul.f32 %v1238, %v1238
        %v1255 = vmul.f32 %v1239, %v1239
        %v1256 = vmul.f32 %v1240, %v1240
        %v1257 = vmul.f32 %v1241, %v1241
        %v1258 = vmul.f32 %v1242, %v1242
        %v1259 = vmul.f32 %v1243, %v1243
        %v1260 = vmul.f32 %v1244, %v1244
        %v1261 = vsub.f32 0.0, %v1245
        %v1262 = vsub.f32 0.0, %v1246
        %v1263 = vsub.f32 0.0, %v1247
        %v1264 = vsub.f32 0.0, %v1248
        %v1265 = vsub.f32 0.0, %v1249
        %v1266 = vsub.f32 0.0, %v1250
        %v1267 = vsub.f32 0.0, %v1251
        %v1268 = vsub.f32 0.0, %v1252
        %v1269 = vsub.f32 0.0, %v1253
        %v1270 = vsub.f32 0.0, %v1254
        %v1271 = vsub.f32 0.0, %v1255
        %v1272 = vsub.f32 0.0, %v1256
        %v1273 = vsub.f32 0.0, %v1257
        %v1274 = vsub.f32 0.0, %v1258
        %v1275 = vsub.f32 0.0, %v1259
        %v1276 = vsub.f32 0.0, %v1260
        %v1277 = vmul.f32 %v1261, 1.442695
        %v1278 = vpow.pop %v1277
        %v1279 = vmul.f32 %v1262, 1.442695
        %v1280 = vpow.pop %v1279
        %v1281 = vmul.f32 %v1263, 1.442695
        %v1282 = vpow.pop %v1281
        %v1283 = vmul.f32 %v1264, 1.442695
        %v1284 = vpow.pop %v1283
        %v1285 = vmul.f32 %v1265, 1.442695
        %v1286 = vpow.pop %v1285
        %v1287 = vmul.f32 %v1266, 1.442695
        %v1288 = vpow.pop %v1287
        %v1289 = vmul.f32 %v1267, 1.442695
        %v1290 = vpow.pop %v1289
        %v1291 = vmul.f32 %v1268, 1.442695
        %v1292 = vpow.pop %v1291
        %v1293 = vmul.f32 %v1269, 1.442695
        %v1294 = vpow.pop %v1293
        %v1295 = vmul.f32 %v1270, 1.442695
        %v1296 = vpow.pop %v1295
        %v1297 = vmul.f32 %v1271, 1.442695
        %v1298 = vpow.pop %v1297
        %v1299 = vmul.f32 %v1272, 1.442695
        %v1300 = vpow.pop %v1299
        %v1301 = vmul.f32 %v1273, 1.442695
        %v1302 = vpow.pop %v1301
        %v1303 = vmul.f32 %v1274, 1.442695
        %v1304 = vpow.pop %v1303
        %v1305 = vmul.f32 %v1275, 1.442695
        %v1306 = vpow.pop %v1305
        %v1307 = vmul.f32 %v1276, 1.442695
        %v1308 = vpow.pop %v1307
        %1309 = vst.msk [vmem:[%s136 + $0x300] sm:$0xff] %vm348, %v1278
        %1310 = vst.msk [vmem:[%s136 + $0x308] sm:$0xff] %vm348, %v1280
        %1311 = vst.msk [vmem:[%s136 + $0x310] sm:$0xff] %vm348, %v1282
        %1312 = vst.msk [vmem:[%s136 + $0x318] sm:$0xff] %vm348, %v1284
        %1313 = vst.msk [vmem:[%s136 + $0x320] sm:$0xff] %vm348, %v1286
        %1314 = vst.msk [vmem:[%s136 + $0x328] sm:$0xff] %vm348, %v1288
        %1315 = vst.msk [vmem:[%s136 + $0x330] sm:$0xff] %vm348, %v1290
        %1316 = vst.msk [vmem:[%s136 + $0x338] sm:$0xff] %vm348, %v1292
        %1317 = vst.msk [vmem:[%s136 + $0x340] sm:$0xff] %vm348, %v1294
        %1318 = vst.msk [vmem:[%s136 + $0x348] sm:$0xff] %vm348, %v1296
        %1319 = vst.msk [vmem:[%s136 + $0x350] sm:$0xff] %vm348, %v1298
        %1320 = vst.msk [vmem:[%s136 + $0x358] sm:$0xff] %vm348, %v1300
        %1321 = vst.msk [vmem:[%s136 + $0x360] sm:$0xff] %vm348, %v1302
        %1322 = vst.msk [vmem:[%s136 + $0x368] sm:$0xff] %vm348, %v1304
        %1323 = vst.msk [vmem:[%s136 + $0x370] sm:$0xff] %vm348, %v1306
        %1324 = vst.msk [vmem:[%s136 + $0x378] sm:$0xff] %vm348, %v1308
        %1325 = vset.pattern.permute.xlu0 7
        %1326 = vperm.xlu0 %1325, %v172
        %v1327 = vpop.permute.xlu0 %1326
        %1329 = vset.pattern.permute.xlu0 7
        %1330 = vperm.xlu0 %1329, %v173
        %v1331 = vpop.permute.xlu0 %1330
        %1333 = vset.pattern.permute.xlu0 7
        %1334 = vperm.xlu0 %1333, %v174
        %v1335 = vpop.permute.xlu0 %1334
        %1337 = vset.pattern.permute.xlu0 7
        %1338 = vperm.xlu0 %1337, %v175
        %v1339 = vpop.permute.xlu0 %1338
        %1341 = vset.pattern.permute.xlu0 7
        %1342 = vperm.xlu0 %1341, %v176
        %v1343 = vpop.permute.xlu0 %1342
        %1345 = vset.pattern.permute.xlu0 7
        %1346 = vperm.xlu0 %1345, %v177
        %v1347 = vpop.permute.xlu0 %1346
        %1349 = vset.pattern.permute.xlu0 7
        %1350 = vperm.xlu0 %1349, %v178
        %v1351 = vpop.permute.xlu0 %1350
        %1353 = vset.pattern.permute.xlu0 7
        %1354 = vperm.xlu0 %1353, %v179
        %v1355 = vpop.permute.xlu0 %1354
        %1357 = vset.pattern.permute.xlu0 7
        %1358 = vperm.xlu0 %1357, %v180
        %v1359 = vpop.permute.xlu0 %1358
        %1361 = vset.pattern.permute.xlu0 7
        %1362 = vperm.xlu0 %1361, %v181
        %v1363 = vpop.permute.xlu0 %1362
        %1365 = vset.pattern.permute.xlu0 7
        %1366 = vperm.xlu0 %1365, %v182
        %v1367 = vpop.permute.xlu0 %1366
        %1369 = vset.pattern.permute.xlu0 7
        %1370 = vperm.xlu0 %1369, %v183
        %v1371 = vpop.permute.xlu0 %1370
        %1373 = vset.pattern.permute.xlu0 7
        %1374 = vperm.xlu0 %1373, %v184
        %v1375 = vpop.permute.xlu0 %1374
        %1377 = vset.pattern.permute.xlu0 7
        %1378 = vperm.xlu0 %1377, %v185
        %v1379 = vpop.permute.xlu0 %1378
        %1381 = vset.pattern.permute.xlu0 7
        %1382 = vperm.xlu0 %1381, %v186
        %v1383 = vpop.permute.xlu0 %1382
        %1385 = vset.pattern.permute.xlu0 7
        %1386 = vperm.xlu0 %1385, %v187
        %v1387 = vpop.permute.xlu0 %1386
        %v1389 = vsub.f32 %v1327, %v151
        %v1390 = vsub.f32 %v1331, %v151
        %v1391 = vsub.f32 %v1335, %v151
        %v1392 = vsub.f32 %v1339, %v151
        %v1393 = vsub.f32 %v1343, %v151
        %v1394 = vsub.f32 %v1347, %v151
        %v1395 = vsub.f32 %v1351, %v151
        %v1396 = vsub.f32 %v1355, %v151
        %v1397 = vsub.f32 %v1359, %v151
        %v1398 = vsub.f32 %v1363, %v151
        %v1399 = vsub.f32 %v1367, %v151
        %v1400 = vsub.f32 %v1371, %v151
        %v1401 = vsub.f32 %v1375, %v151
        %v1402 = vsub.f32 %v1379, %v151
        %v1403 = vsub.f32 %v1383, %v151
        %v1404 = vsub.f32 %v1387, %v151
        %v1405 = vmul.f32 %v1389, %v1389
        %v1406 = vmul.f32 %v1390, %v1390
        %v1407 = vmul.f32 %v1391, %v1391
        %v1408 = vmul.f32 %v1392, %v1392
        %v1409 = vmul.f32 %v1393, %v1393
        %v1410 = vmul.f32 %v1394, %v1394
        %v1411 = vmul.f32 %v1395, %v1395
        %v1412 = vmul.f32 %v1396, %v1396
        %v1413 = vmul.f32 %v1397, %v1397
        %v1414 = vmul.f32 %v1398, %v1398
        %v1415 = vmul.f32 %v1399, %v1399
        %v1416 = vmul.f32 %v1400, %v1400
        %v1417 = vmul.f32 %v1401, %v1401
        %v1418 = vmul.f32 %v1402, %v1402
        %v1419 = vmul.f32 %v1403, %v1403
        %v1420 = vmul.f32 %v1404, %v1404
        %v1421 = vsub.f32 0.0, %v1405
        %v1422 = vsub.f32 0.0, %v1406
        %v1423 = vsub.f32 0.0, %v1407
        %v1424 = vsub.f32 0.0, %v1408
        %v1425 = vsub.f32 0.0, %v1409
        %v1426 = vsub.f32 0.0, %v1410
        %v1427 = vsub.f32 0.0, %v1411
        %v1428 = vsub.f32 0.0, %v1412
        %v1429 = vsub.f32 0.0, %v1413
        %v1430 = vsub.f32 0.0, %v1414
        %v1431 = vsub.f32 0.0, %v1415
        %v1432 = vsub.f32 0.0, %v1416
        %v1433 = vsub.f32 0.0, %v1417
        %v1434 = vsub.f32 0.0, %v1418
        %v1435 = vsub.f32 0.0, %v1419
        %v1436 = vsub.f32 0.0, %v1420
        %v1437 = vmul.f32 %v1421, 1.442695
        %v1438 = vpow.pop %v1437
        %v1439 = vmul.f32 %v1422, 1.442695
        %v1440 = vpow.pop %v1439
        %v1441 = vmul.f32 %v1423, 1.442695
        %v1442 = vpow.pop %v1441
        %v1443 = vmul.f32 %v1424, 1.442695
        %v1444 = vpow.pop %v1443
        %v1445 = vmul.f32 %v1425, 1.442695
        %v1446 = vpow.pop %v1445
        %v1447 = vmul.f32 %v1426, 1.442695
        %v1448 = vpow.pop %v1447
        %v1449 = vmul.f32 %v1427, 1.442695
        %v1450 = vpow.pop %v1449
        %v1451 = vmul.f32 %v1428, 1.442695
        %v1452 = vpow.pop %v1451
        %v1453 = vmul.f32 %v1429, 1.442695
        %v1454 = vpow.pop %v1453
        %v1455 = vmul.f32 %v1430, 1.442695
        %v1456 = vpow.pop %v1455
        %v1457 = vmul.f32 %v1431, 1.442695
        %v1458 = vpow.pop %v1457
        %v1459 = vmul.f32 %v1432, 1.442695
        %v1460 = vpow.pop %v1459
        %v1461 = vmul.f32 %v1433, 1.442695
        %v1462 = vpow.pop %v1461
        %v1463 = vmul.f32 %v1434, 1.442695
        %v1464 = vpow.pop %v1463
        %v1465 = vmul.f32 %v1435, 1.442695
        %v1466 = vpow.pop %v1465
        %v1467 = vmul.f32 %v1436, 1.442695
        %v1468 = vpow.pop %v1467
        %1469 = vst.msk [vmem:[%s136 + $0x380] sm:$0xff] %vm348, %v1438
        %1470 = vst.msk [vmem:[%s136 + $0x388] sm:$0xff] %vm348, %v1440
        %1471 = vst.msk [vmem:[%s136 + $0x390] sm:$0xff] %vm348, %v1442
        %1472 = vst.msk [vmem:[%s136 + $0x398] sm:$0xff] %vm348, %v1444
        %1473 = vst.msk [vmem:[%s136 + $0x3a0] sm:$0xff] %vm348, %v1446
        %1474 = vst.msk [vmem:[%s136 + $0x3a8] sm:$0xff] %vm348, %v1448
        %1475 = vst.msk [vmem:[%s136 + $0x3b0] sm:$0xff] %vm348, %v1450
        %1476 = vst.msk [vmem:[%s136 + $0x3b8] sm:$0xff] %vm348, %v1452
        %1477 = vst.msk [vmem:[%s136 + $0x3c0] sm:$0xff] %vm348, %v1454
        %1478 = vst.msk [vmem:[%s136 + $0x3c8] sm:$0xff] %vm348, %v1456
        %1479 = vst.msk [vmem:[%s136 + $0x3d0] sm:$0xff] %vm348, %v1458
        %1480 = vst.msk [vmem:[%s136 + $0x3d8] sm:$0xff] %vm348, %v1460
        %1481 = vst.msk [vmem:[%s136 + $0x3e0] sm:$0xff] %vm348, %v1462
        %1482 = vst.msk [vmem:[%s136 + $0x3e8] sm:$0xff] %vm348, %v1464
        %1483 = vst.msk [vmem:[%s136 + $0x3f0] sm:$0xff] %vm348, %v1466
        %1484 = vst.msk [vmem:[%s136 + $0x3f8] sm:$0xff] %vm348, %v1468
        %1485 = vset.pattern.permute.xlu0 8
        %1486 = vperm.xlu0 %1485, %v172
        %v1487 = vpop.permute.xlu0 %1486
        %1489 = vset.pattern.permute.xlu0 8
        %1490 = vperm.xlu0 %1489, %v173
        %v1491 = vpop.permute.xlu0 %1490
        %1493 = vset.pattern.permute.xlu0 8
        %1494 = vperm.xlu0 %1493, %v174
        %v1495 = vpop.permute.xlu0 %1494
        %1497 = vset.pattern.permute.xlu0 8
        %1498 = vperm.xlu0 %1497, %v175
        %v1499 = vpop.permute.xlu0 %1498
        %1501 = vset.pattern.permute.xlu0 8
        %1502 = vperm.xlu0 %1501, %v176
        %v1503 = vpop.permute.xlu0 %1502
        %1505 = vset.pattern.permute.xlu0 8
        %1506 = vperm.xlu0 %1505, %v177
        %v1507 = vpop.permute.xlu0 %1506
        %1509 = vset.pattern.permute.xlu0 8
        %1510 = vperm.xlu0 %1509, %v178
        %v1511 = vpop.permute.xlu0 %1510
        %1513 = vset.pattern.permute.xlu0 8
        %1514 = vperm.xlu0 %1513, %v179
        %v1515 = vpop.permute.xlu0 %1514
        %1517 = vset.pattern.permute.xlu0 8
        %1518 = vperm.xlu0 %1517, %v180
        %v1519 = vpop.permute.xlu0 %1518
        %1521 = vset.pattern.permute.xlu0 8
        %1522 = vperm.xlu0 %1521, %v181
        %v1523 = vpop.permute.xlu0 %1522
        %1525 = vset.pattern.permute.xlu0 8
        %1526 = vperm.xlu0 %1525, %v182
        %v1527 = vpop.permute.xlu0 %1526
        %1529 = vset.pattern.permute.xlu0 8
        %1530 = vperm.xlu0 %1529, %v183
        %v1531 = vpop.permute.xlu0 %1530
        %1533 = vset.pattern.permute.xlu0 8
        %1534 = vperm.xlu0 %1533, %v184
        %v1535 = vpop.permute.xlu0 %1534
        %1537 = vset.pattern.permute.xlu0 8
        %1538 = vperm.xlu0 %1537, %v185
        %v1539 = vpop.permute.xlu0 %1538
        %1541 = vset.pattern.permute.xlu0 8
        %1542 = vperm.xlu0 %1541, %v186
        %v1543 = vpop.permute.xlu0 %1542
        %1545 = vset.pattern.permute.xlu0 8
        %1546 = vperm.xlu0 %1545, %v187
        %v1547 = vpop.permute.xlu0 %1546
        %v1549 = vsub.f32 %v1487, %v151
        %v1550 = vsub.f32 %v1491, %v151
        %v1551 = vsub.f32 %v1495, %v151
        %v1552 = vsub.f32 %v1499, %v151
        %v1553 = vsub.f32 %v1503, %v151
        %v1554 = vsub.f32 %v1507, %v151
        %v1555 = vsub.f32 %v1511, %v151
        %v1556 = vsub.f32 %v1515, %v151
        %v1557 = vsub.f32 %v1519, %v151
        %v1558 = vsub.f32 %v1523, %v151
        %v1559 = vsub.f32 %v1527, %v151
        %v1560 = vsub.f32 %v1531, %v151
        %v1561 = vsub.f32 %v1535, %v151
        %v1562 = vsub.f32 %v1539, %v151
        %v1563 = vsub.f32 %v1543, %v151
        %v1564 = vsub.f32 %v1547, %v151
        %v1565 = vmul.f32 %v1549, %v1549
        %v1566 = vmul.f32 %v1550, %v1550
        %v1567 = vmul.f32 %v1551, %v1551
        %v1568 = vmul.f32 %v1552, %v1552
        %v1569 = vmul.f32 %v1553, %v1553
        %v1570 = vmul.f32 %v1554, %v1554
        %v1571 = vmul.f32 %v1555, %v1555
        %v1572 = vmul.f32 %v1556, %v1556
        %v1573 = vmul.f32 %v1557, %v1557
        %v1574 = vmul.f32 %v1558, %v1558
        %v1575 = vmul.f32 %v1559, %v1559
        %v1576 = vmul.f32 %v1560, %v1560
        %v1577 = vmul.f32 %v1561, %v1561
        %v1578 = vmul.f32 %v1562, %v1562
        %v1579 = vmul.f32 %v1563, %v1563
        %v1580 = vmul.f32 %v1564, %v1564
        %v1581 = vsub.f32 0.0, %v1565
        %v1582 = vsub.f32 0.0, %v1566
        %v1583 = vsub.f32 0.0, %v1567
        %v1584 = vsub.f32 0.0, %v1568
        %v1585 = vsub.f32 0.0, %v1569
        %v1586 = vsub.f32 0.0, %v1570
        %v1587 = vsub.f32 0.0, %v1571
        %v1588 = vsub.f32 0.0, %v1572
        %v1589 = vsub.f32 0.0, %v1573
        %v1590 = vsub.f32 0.0, %v1574
        %v1591 = vsub.f32 0.0, %v1575
        %v1592 = vsub.f32 0.0, %v1576
        %v1593 = vsub.f32 0.0, %v1577
        %v1594 = vsub.f32 0.0, %v1578
        %v1595 = vsub.f32 0.0, %v1579
        %v1596 = vsub.f32 0.0, %v1580
        %v1597 = vmul.f32 %v1581, 1.442695
        %v1598 = vpow.pop %v1597
        %v1599 = vmul.f32 %v1582, 1.442695
        %v1600 = vpow.pop %v1599
        %v1601 = vmul.f32 %v1583, 1.442695
        %v1602 = vpow.pop %v1601
        %v1603 = vmul.f32 %v1584, 1.442695
        %v1604 = vpow.pop %v1603
        %v1605 = vmul.f32 %v1585, 1.442695
        %v1606 = vpow.pop %v1605
        %v1607 = vmul.f32 %v1586, 1.442695
        %v1608 = vpow.pop %v1607
        %v1609 = vmul.f32 %v1587, 1.442695
        %v1610 = vpow.pop %v1609
        %v1611 = vmul.f32 %v1588, 1.442695
        %v1612 = vpow.pop %v1611
        %v1613 = vmul.f32 %v1589, 1.442695
        %v1614 = vpow.pop %v1613
        %v1615 = vmul.f32 %v1590, 1.442695
        %v1616 = vpow.pop %v1615
        %v1617 = vmul.f32 %v1591, 1.442695
        %v1618 = vpow.pop %v1617
        %v1619 = vmul.f32 %v1592, 1.442695
        %v1620 = vpow.pop %v1619
        %v1621 = vmul.f32 %v1593, 1.442695
        %v1622 = vpow.pop %v1621
        %v1623 = vmul.f32 %v1594, 1.442695
        %v1624 = vpow.pop %v1623
        %v1625 = vmul.f32 %v1595, 1.442695
        %v1626 = vpow.pop %v1625
        %v1627 = vmul.f32 %v1596, 1.442695
        %v1628 = vpow.pop %v1627
        %1629 = vst.msk [vmem:[%s136 + $0x400] sm:$0xff] %vm348, %v1598
        %1630 = vst.msk [vmem:[%s136 + $0x408] sm:$0xff] %vm348, %v1600
        %1631 = vst.msk [vmem:[%s136 + $0x410] sm:$0xff] %vm348, %v1602
        %1632 = vst.msk [vmem:[%s136 + $0x418] sm:$0xff] %vm348, %v1604
        %1633 = vst.msk [vmem:[%s136 + $0x420] sm:$0xff] %vm348, %v1606
        %1634 = vst.msk [vmem:[%s136 + $0x428] sm:$0xff] %vm348, %v1608
        %1635 = vst.msk [vmem:[%s136 + $0x430] sm:$0xff] %vm348, %v1610
        %1636 = vst.msk [vmem:[%s136 + $0x438] sm:$0xff] %vm348, %v1612
        %1637 = vst.msk [vmem:[%s136 + $0x440] sm:$0xff] %vm348, %v1614
        %1638 = vst.msk [vmem:[%s136 + $0x448] sm:$0xff] %vm348, %v1616
        %1639 = vst.msk [vmem:[%s136 + $0x450] sm:$0xff] %vm348, %v1618
        %1640 = vst.msk [vmem:[%s136 + $0x458] sm:$0xff] %vm348, %v1620
        %1641 = vst.msk [vmem:[%s136 + $0x460] sm:$0xff] %vm348, %v1622
        %1642 = vst.msk [vmem:[%s136 + $0x468] sm:$0xff] %vm348, %v1624
        %1643 = vst.msk [vmem:[%s136 + $0x470] sm:$0xff] %vm348, %v1626
        %1644 = vst.msk [vmem:[%s136 + $0x478] sm:$0xff] %vm348, %v1628
        %1645 = vset.pattern.permute.xlu0 9
        %1646 = vperm.xlu0 %1645, %v172
        %v1647 = vpop.permute.xlu0 %1646
        %1649 = vset.pattern.permute.xlu0 9
        %1650 = vperm.xlu0 %1649, %v173
        %v1651 = vpop.permute.xlu0 %1650
        %1653 = vset.pattern.permute.xlu0 9
        %1654 = vperm.xlu0 %1653, %v174
        %v1655 = vpop.permute.xlu0 %1654
        %1657 = vset.pattern.permute.xlu0 9
        %1658 = vperm.xlu0 %1657, %v175
        %v1659 = vpop.permute.xlu0 %1658
        %1661 = vset.pattern.permute.xlu0 9
        %1662 = vperm.xlu0 %1661, %v176
        %v1663 = vpop.permute.xlu0 %1662
        %1665 = vset.pattern.permute.xlu0 9
        %1666 = vperm.xlu0 %1665, %v177
        %v1667 = vpop.permute.xlu0 %1666
        %1669 = vset.pattern.permute.xlu0 9
        %1670 = vperm.xlu0 %1669, %v178
        %v1671 = vpop.permute.xlu0 %1670
        %1673 = vset.pattern.permute.xlu0 9
        %1674 = vperm.xlu0 %1673, %v179
        %v1675 = vpop.permute.xlu0 %1674
        %1677 = vset.pattern.permute.xlu0 9
        %1678 = vperm.xlu0 %1677, %v180
        %v1679 = vpop.permute.xlu0 %1678
        %1681 = vset.pattern.permute.xlu0 9
        %1682 = vperm.xlu0 %1681, %v181
        %v1683 = vpop.permute.xlu0 %1682
        %1685 = vset.pattern.permute.xlu0 9
        %1686 = vperm.xlu0 %1685, %v182
        %v1687 = vpop.permute.xlu0 %1686
        %1689 = vset.pattern.permute.xlu0 9
        %1690 = vperm.xlu0 %1689, %v183
        %v1691 = vpop.permute.xlu0 %1690
        %1693 = vset.pattern.permute.xlu0 9
        %1694 = vperm.xlu0 %1693, %v184
        %v1695 = vpop.permute.xlu0 %1694
        %1697 = vset.pattern.permute.xlu0 9
        %1698 = vperm.xlu0 %1697, %v185
        %v1699 = vpop.permute.xlu0 %1698
        %1701 = vset.pattern.permute.xlu0 9
        %1702 = vperm.xlu0 %1701, %v186
        %v1703 = vpop.permute.xlu0 %1702
        %1705 = vset.pattern.permute.xlu0 9
        %1706 = vperm.xlu0 %1705, %v187
        %v1707 = vpop.permute.xlu0 %1706
        %v1709 = vsub.f32 %v1647, %v151
        %v1710 = vsub.f32 %v1651, %v151
        %v1711 = vsub.f32 %v1655, %v151
        %v1712 = vsub.f32 %v1659, %v151
        %v1713 = vsub.f32 %v1663, %v151
        %v1714 = vsub.f32 %v1667, %v151
        %v1715 = vsub.f32 %v1671, %v151
        %v1716 = vsub.f32 %v1675, %v151
        %v1717 = vsub.f32 %v1679, %v151
        %v1718 = vsub.f32 %v1683, %v151
        %v1719 = vsub.f32 %v1687, %v151
        %v1720 = vsub.f32 %v1691, %v151
        %v1721 = vsub.f32 %v1695, %v151
        %v1722 = vsub.f32 %v1699, %v151
        %v1723 = vsub.f32 %v1703, %v151
        %v1724 = vsub.f32 %v1707, %v151
        %v1725 = vmul.f32 %v1709, %v1709
        %v1726 = vmul.f32 %v1710, %v1710
        %v1727 = vmul.f32 %v1711, %v1711
        %v1728 = vmul.f32 %v1712, %v1712
        %v1729 = vmul.f32 %v1713, %v1713
        %v1730 = vmul.f32 %v1714, %v1714
        %v1731 = vmul.f32 %v1715, %v1715
        %v1732 = vmul.f32 %v1716, %v1716
        %v1733 = vmul.f32 %v1717, %v1717
        %v1734 = vmul.f32 %v1718, %v1718
        %v1735 = vmul.f32 %v1719, %v1719
        %v1736 = vmul.f32 %v1720, %v1720
        %v1737 = vmul.f32 %v1721, %v1721
        %v1738 = vmul.f32 %v1722, %v1722
        %v1739 = vmul.f32 %v1723, %v1723
        %v1740 = vmul.f32 %v1724, %v1724
        %v1741 = vsub.f32 0.0, %v1725
        %v1742 = vsub.f32 0.0, %v1726
        %v1743 = vsub.f32 0.0, %v1727
        %v1744 = vsub.f32 0.0, %v1728
        %v1745 = vsub.f32 0.0, %v1729
        %v1746 = vsub.f32 0.0, %v1730
        %v1747 = vsub.f32 0.0, %v1731
        %v1748 = vsub.f32 0.0, %v1732
        %v1749 = vsub.f32 0.0, %v1733
        %v1750 = vsub.f32 0.0, %v1734
        %v1751 = vsub.f32 0.0, %v1735
        %v1752 = vsub.f32 0.0, %v1736
        %v1753 = vsub.f32 0.0, %v1737
        %v1754 = vsub.f32 0.0, %v1738
        %v1755 = vsub.f32 0.0, %v1739
        %v1756 = vsub.f32 0.0, %v1740
        %v1757 = vmul.f32 %v1741, 1.442695
        %v1758 = vpow.pop %v1757
        %v1759 = vmul.f32 %v1742, 1.442695
        %v1760 = vpow.pop %v1759
        %v1761 = vmul.f32 %v1743, 1.442695
        %v1762 = vpow.pop %v1761
        %v1763 = vmul.f32 %v1744, 1.442695
        %v1764 = vpow.pop %v1763
        %v1765 = vmul.f32 %v1745, 1.442695
        %v1766 = vpow.pop %v1765
        %v1767 = vmul.f32 %v1746, 1.442695
        %v1768 = vpow.pop %v1767
        %v1769 = vmul.f32 %v1747, 1.442695
        %v1770 = vpow.pop %v1769
        %v1771 = vmul.f32 %v1748, 1.442695
        %v1772 = vpow.pop %v1771
        %v1773 = vmul.f32 %v1749, 1.442695
        %v1774 = vpow.pop %v1773
        %v1775 = vmul.f32 %v1750, 1.442695
        %v1776 = vpow.pop %v1775
        %v1777 = vmul.f32 %v1751, 1.442695
        %v1778 = vpow.pop %v1777
        %v1779 = vmul.f32 %v1752, 1.442695
        %v1780 = vpow.pop %v1779
        %v1781 = vmul.f32 %v1753, 1.442695
        %v1782 = vpow.pop %v1781
        %v1783 = vmul.f32 %v1754, 1.442695
        %v1784 = vpow.pop %v1783
        %v1785 = vmul.f32 %v1755, 1.442695
        %v1786 = vpow.pop %v1785
        %v1787 = vmul.f32 %v1756, 1.442695
        %v1788 = vpow.pop %v1787
        %1789 = vst.msk [vmem:[%s136 + $0x480] sm:$0xff] %vm348, %v1758
        %1790 = vst.msk [vmem:[%s136 + $0x488] sm:$0xff] %vm348, %v1760
        %1791 = vst.msk [vmem:[%s136 + $0x490] sm:$0xff] %vm348, %v1762
        %1792 = vst.msk [vmem:[%s136 + $0x498] sm:$0xff] %vm348, %v1764
        %1793 = vst.msk [vmem:[%s136 + $0x4a0] sm:$0xff] %vm348, %v1766
        %1794 = vst.msk [vmem:[%s136 + $0x4a8] sm:$0xff] %vm348, %v1768
        %1795 = vst.msk [vmem:[%s136 + $0x4b0] sm:$0xff] %vm348, %v1770
        %1796 = vst.msk [vmem:[%s136 + $0x4b8] sm:$0xff] %vm348, %v1772
        %1797 = vst.msk [vmem:[%s136 + $0x4c0] sm:$0xff] %vm348, %v1774
        %1798 = vst.msk [vmem:[%s136 + $0x4c8] sm:$0xff] %vm348, %v1776
        %1799 = vst.msk [vmem:[%s136 + $0x4d0] sm:$0xff] %vm348, %v1778
        %1800 = vst.msk [vmem:[%s136 + $0x4d8] sm:$0xff] %vm348, %v1780
        %1801 = vst.msk [vmem:[%s136 + $0x4e0] sm:$0xff] %vm348, %v1782
        %1802 = vst.msk [vmem:[%s136 + $0x4e8] sm:$0xff] %vm348, %v1784
        %1803 = vst.msk [vmem:[%s136 + $0x4f0] sm:$0xff] %vm348, %v1786
        %1804 = vst.msk [vmem:[%s136 + $0x4f8] sm:$0xff] %vm348, %v1788
        %1805 = vset.pattern.permute.xlu0 10
        %1806 = vperm.xlu0 %1805, %v172
        %v1807 = vpop.permute.xlu0 %1806
        %1809 = vset.pattern.permute.xlu0 10
        %1810 = vperm.xlu0 %1809, %v173
        %v1811 = vpop.permute.xlu0 %1810
        %1813 = vset.pattern.permute.xlu0 10
        %1814 = vperm.xlu0 %1813, %v174
        %v1815 = vpop.permute.xlu0 %1814
        %1817 = vset.pattern.permute.xlu0 10
        %1818 = vperm.xlu0 %1817, %v175
        %v1819 = vpop.permute.xlu0 %1818
        %1821 = vset.pattern.permute.xlu0 10
        %1822 = vperm.xlu0 %1821, %v176
        %v1823 = vpop.permute.xlu0 %1822
        %1825 = vset.pattern.permute.xlu0 10
        %1826 = vperm.xlu0 %1825, %v177
        %v1827 = vpop.permute.xlu0 %1826
        %1829 = vset.pattern.permute.xlu0 10
        %1830 = vperm.xlu0 %1829, %v178
        %v1831 = vpop.permute.xlu0 %1830
        %1833 = vset.pattern.permute.xlu0 10
        %1834 = vperm.xlu0 %1833, %v179
        %v1835 = vpop.permute.xlu0 %1834
        %1837 = vset.pattern.permute.xlu0 10
        %1838 = vperm.xlu0 %1837, %v180
        %v1839 = vpop.permute.xlu0 %1838
        %1841 = vset.pattern.permute.xlu0 10
        %1842 = vperm.xlu0 %1841, %v181
        %v1843 = vpop.permute.xlu0 %1842
        %1845 = vset.pattern.permute.xlu0 10
        %1846 = vperm.xlu0 %1845, %v182
        %v1847 = vpop.permute.xlu0 %1846
        %1849 = vset.pattern.permute.xlu0 10
        %1850 = vperm.xlu0 %1849, %v183
        %v1851 = vpop.permute.xlu0 %1850
        %1853 = vset.pattern.permute.xlu0 10
        %1854 = vperm.xlu0 %1853, %v184
        %v1855 = vpop.permute.xlu0 %1854
        %1857 = vset.pattern.permute.xlu0 10
        %1858 = vperm.xlu0 %1857, %v185
        %v1859 = vpop.permute.xlu0 %1858
        %1861 = vset.pattern.permute.xlu0 10
        %1862 = vperm.xlu0 %1861, %v186
        %v1863 = vpop.permute.xlu0 %1862
        %1865 = vset.pattern.permute.xlu0 10
        %1866 = vperm.xlu0 %1865, %v187
        %v1867 = vpop.permute.xlu0 %1866
        %v1869 = vsub.f32 %v1807, %v151
        %v1870 = vsub.f32 %v1811, %v151
        %v1871 = vsub.f32 %v1815, %v151
        %v1872 = vsub.f32 %v1819, %v151
        %v1873 = vsub.f32 %v1823, %v151
        %v1874 = vsub.f32 %v1827, %v151
        %v1875 = vsub.f32 %v1831, %v151
        %v1876 = vsub.f32 %v1835, %v151
        %v1877 = vsub.f32 %v1839, %v151
        %v1878 = vsub.f32 %v1843, %v151
        %v1879 = vsub.f32 %v1847, %v151
        %v1880 = vsub.f32 %v1851, %v151
        %v1881 = vsub.f32 %v1855, %v151
        %v1882 = vsub.f32 %v1859, %v151
        %v1883 = vsub.f32 %v1863, %v151
        %v1884 = vsub.f32 %v1867, %v151
        %v1885 = vmul.f32 %v1869, %v1869
        %v1886 = vmul.f32 %v1870, %v1870
        %v1887 = vmul.f32 %v1871, %v1871
        %v1888 = vmul.f32 %v1872, %v1872
        %v1889 = vmul.f32 %v1873, %v1873
        %v1890 = vmul.f32 %v1874, %v1874
        %v1891 = vmul.f32 %v1875, %v1875
        %v1892 = vmul.f32 %v1876, %v1876
        %v1893 = vmul.f32 %v1877, %v1877
        %v1894 = vmul.f32 %v1878, %v1878
        %v1895 = vmul.f32 %v1879, %v1879
        %v1896 = vmul.f32 %v1880, %v1880
        %v1897 = vmul.f32 %v1881, %v1881
        %v1898 = vmul.f32 %v1882, %v1882
        %v1899 = vmul.f32 %v1883, %v1883
        %v1900 = vmul.f32 %v1884, %v1884
        %v1901 = vsub.f32 0.0, %v1885
        %v1902 = vsub.f32 0.0, %v1886
        %v1903 = vsub.f32 0.0, %v1887
        %v1904 = vsub.f32 0.0, %v1888
        %v1905 = vsub.f32 0.0, %v1889
        %v1906 = vsub.f32 0.0, %v1890
        %v1907 = vsub.f32 0.0, %v1891
        %v1908 = vsub.f32 0.0, %v1892
        %v1909 = vsub.f32 0.0, %v1893
        %v1910 = vsub.f32 0.0, %v1894
        %v1911 = vsub.f32 0.0, %v1895
        %v1912 = vsub.f32 0.0, %v1896
        %v1913 = vsub.f32 0.0, %v1897
        %v1914 = vsub.f32 0.0, %v1898
        %v1915 = vsub.f32 0.0, %v1899
        %v1916 = vsub.f32 0.0, %v1900
        %v1917 = vmul.f32 %v1901, 1.442695
        %v1918 = vpow.pop %v1917
        %v1919 = vmul.f32 %v1902, 1.442695
        %v1920 = vpow.pop %v1919
        %v1921 = vmul.f32 %v1903, 1.442695
        %v1922 = vpow.pop %v1921
        %v1923 = vmul.f32 %v1904, 1.442695
        %v1924 = vpow.pop %v1923
        %v1925 = vmul.f32 %v1905, 1.442695
        %v1926 = vpow.pop %v1925
        %v1927 = vmul.f32 %v1906, 1.442695
        %v1928 = vpow.pop %v1927
        %v1929 = vmul.f32 %v1907, 1.442695
        %v1930 = vpow.pop %v1929
        %v1931 = vmul.f32 %v1908, 1.442695
        %v1932 = vpow.pop %v1931
        %v1933 = vmul.f32 %v1909, 1.442695
        %v1934 = vpow.pop %v1933
        %v1935 = vmul.f32 %v1910, 1.442695
        %v1936 = vpow.pop %v1935
        %v1937 = vmul.f32 %v1911, 1.442695
        %v1938 = vpow.pop %v1937
        %v1939 = vmul.f32 %v1912, 1.442695
        %v1940 = vpow.pop %v1939
        %v1941 = vmul.f32 %v1913, 1.442695
        %v1942 = vpow.pop %v1941
        %v1943 = vmul.f32 %v1914, 1.442695
        %v1944 = vpow.pop %v1943
        %v1945 = vmul.f32 %v1915, 1.442695
        %v1946 = vpow.pop %v1945
        %v1947 = vmul.f32 %v1916, 1.442695
        %v1948 = vpow.pop %v1947
        %1949 = vst.msk [vmem:[%s136 + $0x500] sm:$0xff] %vm348, %v1918
        %1950 = vst.msk [vmem:[%s136 + $0x508] sm:$0xff] %vm348, %v1920
        %1951 = vst.msk [vmem:[%s136 + $0x510] sm:$0xff] %vm348, %v1922
        %1952 = vst.msk [vmem:[%s136 + $0x518] sm:$0xff] %vm348, %v1924
        %1953 = vst.msk [vmem:[%s136 + $0x520] sm:$0xff] %vm348, %v1926
        %1954 = vst.msk [vmem:[%s136 + $0x528] sm:$0xff] %vm348, %v1928
        %1955 = vst.msk [vmem:[%s136 + $0x530] sm:$0xff] %vm348, %v1930
        %1956 = vst.msk [vmem:[%s136 + $0x538] sm:$0xff] %vm348, %v1932
        %1957 = vst.msk [vmem:[%s136 + $0x540] sm:$0xff] %vm348, %v1934
        %1958 = vst.msk [vmem:[%s136 + $0x548] sm:$0xff] %vm348, %v1936
        %1959 = vst.msk [vmem:[%s136 + $0x550] sm:$0xff] %vm348, %v1938
        %1960 = vst.msk [vmem:[%s136 + $0x558] sm:$0xff] %vm348, %v1940
        %1961 = vst.msk [vmem:[%s136 + $0x560] sm:$0xff] %vm348, %v1942
        %1962 = vst.msk [vmem:[%s136 + $0x568] sm:$0xff] %vm348, %v1944
        %1963 = vst.msk [vmem:[%s136 + $0x570] sm:$0xff] %vm348, %v1946
        %1964 = vst.msk [vmem:[%s136 + $0x578] sm:$0xff] %vm348, %v1948
        %1965 = vset.pattern.permute.xlu0 11
        %1966 = vperm.xlu0 %1965, %v172
        %v1967 = vpop.permute.xlu0 %1966
        %1969 = vset.pattern.permute.xlu0 11
        %1970 = vperm.xlu0 %1969, %v173
        %v1971 = vpop.permute.xlu0 %1970
        %1973 = vset.pattern.permute.xlu0 11
        %1974 = vperm.xlu0 %1973, %v174
        %v1975 = vpop.permute.xlu0 %1974
        %1977 = vset.pattern.permute.xlu0 11
        %1978 = vperm.xlu0 %1977, %v175
        %v1979 = vpop.permute.xlu0 %1978
        %1981 = vset.pattern.permute.xlu0 11
        %1982 = vperm.xlu0 %1981, %v176
        %v1983 = vpop.permute.xlu0 %1982
        %1985 = vset.pattern.permute.xlu0 11
        %1986 = vperm.xlu0 %1985, %v177
        %v1987 = vpop.permute.xlu0 %1986
        %1989 = vset.pattern.permute.xlu0 11
        %1990 = vperm.xlu0 %1989, %v178
        %v1991 = vpop.permute.xlu0 %1990
        %1993 = vset.pattern.permute.xlu0 11
        %1994 = vperm.xlu0 %1993, %v179
        %v1995 = vpop.permute.xlu0 %1994
        %1997 = vset.pattern.permute.xlu0 11
        %1998 = vperm.xlu0 %1997, %v180
        %v1999 = vpop.permute.xlu0 %1998
        %2001 = vset.pattern.permute.xlu0 11
        %2002 = vperm.xlu0 %2001, %v181
        %v2003 = vpop.permute.xlu0 %2002
        %2005 = vset.pattern.permute.xlu0 11
        %2006 = vperm.xlu0 %2005, %v182
        %v2007 = vpop.permute.xlu0 %2006
        %2009 = vset.pattern.permute.xlu0 11
        %2010 = vperm.xlu0 %2009, %v183
        %v2011 = vpop.permute.xlu0 %2010
        %2013 = vset.pattern.permute.xlu0 11
        %2014 = vperm.xlu0 %2013, %v184
        %v2015 = vpop.permute.xlu0 %2014
        %2017 = vset.pattern.permute.xlu0 11
        %2018 = vperm.xlu0 %2017, %v185
        %v2019 = vpop.permute.xlu0 %2018
        %2021 = vset.pattern.permute.xlu0 11
        %2022 = vperm.xlu0 %2021, %v186
        %v2023 = vpop.permute.xlu0 %2022
        %2025 = vset.pattern.permute.xlu0 11
        %2026 = vperm.xlu0 %2025, %v187
        %v2027 = vpop.permute.xlu0 %2026
        %v2029 = vsub.f32 %v1967, %v151
        %v2030 = vsub.f32 %v1971, %v151
        %v2031 = vsub.f32 %v1975, %v151
        %v2032 = vsub.f32 %v1979, %v151
        %v2033 = vsub.f32 %v1983, %v151
        %v2034 = vsub.f32 %v1987, %v151
        %v2035 = vsub.f32 %v1991, %v151
        %v2036 = vsub.f32 %v1995, %v151
        %v2037 = vsub.f32 %v1999, %v151
        %v2038 = vsub.f32 %v2003, %v151
        %v2039 = vsub.f32 %v2007, %v151
        %v2040 = vsub.f32 %v2011, %v151
        %v2041 = vsub.f32 %v2015, %v151
        %v2042 = vsub.f32 %v2019, %v151
        %v2043 = vsub.f32 %v2023, %v151
        %v2044 = vsub.f32 %v2027, %v151
        %v2045 = vmul.f32 %v2029, %v2029
        %v2046 = vmul.f32 %v2030, %v2030
        %v2047 = vmul.f32 %v2031, %v2031
        %v2048 = vmul.f32 %v2032, %v2032
        %v2049 = vmul.f32 %v2033, %v2033
        %v2050 = vmul.f32 %v2034, %v2034
        %v2051 = vmul.f32 %v2035, %v2035
        %v2052 = vmul.f32 %v2036, %v2036
        %v2053 = vmul.f32 %v2037, %v2037
        %v2054 = vmul.f32 %v2038, %v2038
        %v2055 = vmul.f32 %v2039, %v2039
        %v2056 = vmul.f32 %v2040, %v2040
        %v2057 = vmul.f32 %v2041, %v2041
        %v2058 = vmul.f32 %v2042, %v2042
        %v2059 = vmul.f32 %v2043, %v2043
        %v2060 = vmul.f32 %v2044, %v2044
        %v2061 = vsub.f32 0.0, %v2045
        %v2062 = vsub.f32 0.0, %v2046
        %v2063 = vsub.f32 0.0, %v2047
        %v2064 = vsub.f32 0.0, %v2048
        %v2065 = vsub.f32 0.0, %v2049
        %v2066 = vsub.f32 0.0, %v2050
        %v2067 = vsub.f32 0.0, %v2051
        %v2068 = vsub.f32 0.0, %v2052
        %v2069 = vsub.f32 0.0, %v2053
        %v2070 = vsub.f32 0.0, %v2054
        %v2071 = vsub.f32 0.0, %v2055
        %v2072 = vsub.f32 0.0, %v2056
        %v2073 = vsub.f32 0.0, %v2057
        %v2074 = vsub.f32 0.0, %v2058
        %v2075 = vsub.f32 0.0, %v2059
        %v2076 = vsub.f32 0.0, %v2060
        %v2077 = vmul.f32 %v2061, 1.442695
        %v2078 = vpow.pop %v2077
        %v2079 = vmul.f32 %v2062, 1.442695
        %v2080 = vpow.pop %v2079
        %v2081 = vmul.f32 %v2063, 1.442695
        %v2082 = vpow.pop %v2081
        %v2083 = vmul.f32 %v2064, 1.442695
        %v2084 = vpow.pop %v2083
        %v2085 = vmul.f32 %v2065, 1.442695
        %v2086 = vpow.pop %v2085
        %v2087 = vmul.f32 %v2066, 1.442695
        %v2088 = vpow.pop %v2087
        %v2089 = vmul.f32 %v2067, 1.442695
        %v2090 = vpow.pop %v2089
        %v2091 = vmul.f32 %v2068, 1.442695
        %v2092 = vpow.pop %v2091
        %v2093 = vmul.f32 %v2069, 1.442695
        %v2094 = vpow.pop %v2093
        %v2095 = vmul.f32 %v2070, 1.442695
        %v2096 = vpow.pop %v2095
        %v2097 = vmul.f32 %v2071, 1.442695
        %v2098 = vpow.pop %v2097
        %v2099 = vmul.f32 %v2072, 1.442695
        %v2100 = vpow.pop %v2099
        %v2101 = vmul.f32 %v2073, 1.442695
        %v2102 = vpow.pop %v2101
        %v2103 = vmul.f32 %v2074, 1.442695
        %v2104 = vpow.pop %v2103
        %v2105 = vmul.f32 %v2075, 1.442695
        %v2106 = vpow.pop %v2105
        %v2107 = vmul.f32 %v2076, 1.442695
        %v2108 = vpow.pop %v2107
        %2109 = vst.msk [vmem:[%s136 + $0x580] sm:$0xff] %vm348, %v2078
        %2110 = vst.msk [vmem:[%s136 + $0x588] sm:$0xff] %vm348, %v2080
        %2111 = vst.msk [vmem:[%s136 + $0x590] sm:$0xff] %vm348, %v2082
        %2112 = vst.msk [vmem:[%s136 + $0x598] sm:$0xff] %vm348, %v2084
        %2113 = vst.msk [vmem:[%s136 + $0x5a0] sm:$0xff] %vm348, %v2086
        %2114 = vst.msk [vmem:[%s136 + $0x5a8] sm:$0xff] %vm348, %v2088
        %2115 = vst.msk [vmem:[%s136 + $0x5b0] sm:$0xff] %vm348, %v2090
        %2116 = vst.msk [vmem:[%s136 + $0x5b8] sm:$0xff] %vm348, %v2092
        %2117 = vst.msk [vmem:[%s136 + $0x5c0] sm:$0xff] %vm348, %v2094
        %2118 = vst.msk [vmem:[%s136 + $0x5c8] sm:$0xff] %vm348, %v2096
        %2119 = vst.msk [vmem:[%s136 + $0x5d0] sm:$0xff] %vm348, %v2098
        %2120 = vst.msk [vmem:[%s136 + $0x5d8] sm:$0xff] %vm348, %v2100
        %2121 = vst.msk [vmem:[%s136 + $0x5e0] sm:$0xff] %vm348, %v2102
        %2122 = vst.msk [vmem:[%s136 + $0x5e8] sm:$0xff] %vm348, %v2104
        %2123 = vst.msk [vmem:[%s136 + $0x5f0] sm:$0xff] %vm348, %v2106
        %2124 = vst.msk [vmem:[%s136 + $0x5f8] sm:$0xff] %vm348, %v2108
        %2125 = vset.pattern.permute.xlu0 12
        %2126 = vperm.xlu0 %2125, %v172
        %v2127 = vpop.permute.xlu0 %2126
        %2129 = vset.pattern.permute.xlu0 12
        %2130 = vperm.xlu0 %2129, %v173
        %v2131 = vpop.permute.xlu0 %2130
        %2133 = vset.pattern.permute.xlu0 12
        %2134 = vperm.xlu0 %2133, %v174
        %v2135 = vpop.permute.xlu0 %2134
        %2137 = vset.pattern.permute.xlu0 12
        %2138 = vperm.xlu0 %2137, %v175
        %v2139 = vpop.permute.xlu0 %2138
        %2141 = vset.pattern.permute.xlu0 12
        %2142 = vperm.xlu0 %2141, %v176
        %v2143 = vpop.permute.xlu0 %2142
        %2145 = vset.pattern.permute.xlu0 12
        %2146 = vperm.xlu0 %2145, %v177
        %v2147 = vpop.permute.xlu0 %2146
        %2149 = vset.pattern.permute.xlu0 12
        %2150 = vperm.xlu0 %2149, %v178
        %v2151 = vpop.permute.xlu0 %2150
        %2153 = vset.pattern.permute.xlu0 12
        %2154 = vperm.xlu0 %2153, %v179
        %v2155 = vpop.permute.xlu0 %2154
        %2157 = vset.pattern.permute.xlu0 12
        %2158 = vperm.xlu0 %2157, %v180
        %v2159 = vpop.permute.xlu0 %2158
        %2161 = vset.pattern.permute.xlu0 12
        %2162 = vperm.xlu0 %2161, %v181
        %v2163 = vpop.permute.xlu0 %2162
        %2165 = vset.pattern.permute.xlu0 12
        %2166 = vperm.xlu0 %2165, %v182
        %v2167 = vpop.permute.xlu0 %2166
        %2169 = vset.pattern.permute.xlu0 12
        %2170 = vperm.xlu0 %2169, %v183
        %v2171 = vpop.permute.xlu0 %2170
        %2173 = vset.pattern.permute.xlu0 12
        %2174 = vperm.xlu0 %2173, %v184
        %v2175 = vpop.permute.xlu0 %2174
        %2177 = vset.pattern.permute.xlu0 12
        %2178 = vperm.xlu0 %2177, %v185
        %v2179 = vpop.permute.xlu0 %2178
        %2181 = vset.pattern.permute.xlu0 12
        %2182 = vperm.xlu0 %2181, %v186
        %v2183 = vpop.permute.xlu0 %2182
        %2185 = vset.pattern.permute.xlu0 12
        %2186 = vperm.xlu0 %2185, %v187
        %v2187 = vpop.permute.xlu0 %2186
        %v2189 = vsub.f32 %v2127, %v151
        %v2190 = vsub.f32 %v2131, %v151
        %v2191 = vsub.f32 %v2135, %v151
        %v2192 = vsub.f32 %v2139, %v151
        %v2193 = vsub.f32 %v2143, %v151
        %v2194 = vsub.f32 %v2147, %v151
        %v2195 = vsub.f32 %v2151, %v151
        %v2196 = vsub.f32 %v2155, %v151
        %v2197 = vsub.f32 %v2159, %v151
        %v2198 = vsub.f32 %v2163, %v151
        %v2199 = vsub.f32 %v2167, %v151
        %v2200 = vsub.f32 %v2171, %v151
        %v2201 = vsub.f32 %v2175, %v151
        %v2202 = vsub.f32 %v2179, %v151
        %v2203 = vsub.f32 %v2183, %v151
        %v2204 = vsub.f32 %v2187, %v151
        %v2205 = vmul.f32 %v2189, %v2189
        %v2206 = vmul.f32 %v2190, %v2190
        %v2207 = vmul.f32 %v2191, %v2191
        %v2208 = vmul.f32 %v2192, %v2192
        %v2209 = vmul.f32 %v2193, %v2193
        %v2210 = vmul.f32 %v2194, %v2194
        %v2211 = vmul.f32 %v2195, %v2195
        %v2212 = vmul.f32 %v2196, %v2196
        %v2213 = vmul.f32 %v2197, %v2197
        %v2214 = vmul.f32 %v2198, %v2198
        %v2215 = vmul.f32 %v2199, %v2199
        %v2216 = vmul.f32 %v2200, %v2200
        %v2217 = vmul.f32 %v2201, %v2201
        %v2218 = vmul.f32 %v2202, %v2202
        %v2219 = vmul.f32 %v2203, %v2203
        %v2220 = vmul.f32 %v2204, %v2204
        %v2221 = vsub.f32 0.0, %v2205
        %v2222 = vsub.f32 0.0, %v2206
        %v2223 = vsub.f32 0.0, %v2207
        %v2224 = vsub.f32 0.0, %v2208
        %v2225 = vsub.f32 0.0, %v2209
        %v2226 = vsub.f32 0.0, %v2210
        %v2227 = vsub.f32 0.0, %v2211
        %v2228 = vsub.f32 0.0, %v2212
        %v2229 = vsub.f32 0.0, %v2213
        %v2230 = vsub.f32 0.0, %v2214
        %v2231 = vsub.f32 0.0, %v2215
        %v2232 = vsub.f32 0.0, %v2216
        %v2233 = vsub.f32 0.0, %v2217
        %v2234 = vsub.f32 0.0, %v2218
        %v2235 = vsub.f32 0.0, %v2219
        %v2236 = vsub.f32 0.0, %v2220
        %v2237 = vmul.f32 %v2221, 1.442695
        %v2238 = vpow.pop %v2237
        %v2239 = vmul.f32 %v2222, 1.442695
        %v2240 = vpow.pop %v2239
        %v2241 = vmul.f32 %v2223, 1.442695
        %v2242 = vpow.pop %v2241
        %v2243 = vmul.f32 %v2224, 1.442695
        %v2244 = vpow.pop %v2243
        %v2245 = vmul.f32 %v2225, 1.442695
        %v2246 = vpow.pop %v2245
        %v2247 = vmul.f32 %v2226, 1.442695
        %v2248 = vpow.pop %v2247
        %v2249 = vmul.f32 %v2227, 1.442695
        %v2250 = vpow.pop %v2249
        %v2251 = vmul.f32 %v2228, 1.442695
        %v2252 = vpow.pop %v2251
        %v2253 = vmul.f32 %v2229, 1.442695
        %v2254 = vpow.pop %v2253
        %v2255 = vmul.f32 %v2230, 1.442695
        %v2256 = vpow.pop %v2255
        %v2257 = vmul.f32 %v2231, 1.442695
        %v2258 = vpow.pop %v2257
        %v2259 = vmul.f32 %v2232, 1.442695
        %v2260 = vpow.pop %v2259
        %v2261 = vmul.f32 %v2233, 1.442695
        %v2262 = vpow.pop %v2261
        %v2263 = vmul.f32 %v2234, 1.442695
        %v2264 = vpow.pop %v2263
        %v2265 = vmul.f32 %v2235, 1.442695
        %v2266 = vpow.pop %v2265
        %v2267 = vmul.f32 %v2236, 1.442695
        %v2268 = vpow.pop %v2267
        %2269 = vst.msk [vmem:[%s136 + $0x600] sm:$0xff] %vm348, %v2238
        %2270 = vst.msk [vmem:[%s136 + $0x608] sm:$0xff] %vm348, %v2240
        %2271 = vst.msk [vmem:[%s136 + $0x610] sm:$0xff] %vm348, %v2242
        %2272 = vst.msk [vmem:[%s136 + $0x618] sm:$0xff] %vm348, %v2244
        %2273 = vst.msk [vmem:[%s136 + $0x620] sm:$0xff] %vm348, %v2246
        %2274 = vst.msk [vmem:[%s136 + $0x628] sm:$0xff] %vm348, %v2248
        %2275 = vst.msk [vmem:[%s136 + $0x630] sm:$0xff] %vm348, %v2250
        %2276 = vst.msk [vmem:[%s136 + $0x638] sm:$0xff] %vm348, %v2252
        %2277 = vst.msk [vmem:[%s136 + $0x640] sm:$0xff] %vm348, %v2254
        %2278 = vst.msk [vmem:[%s136 + $0x648] sm:$0xff] %vm348, %v2256
        %2279 = vst.msk [vmem:[%s136 + $0x650] sm:$0xff] %vm348, %v2258
        %2280 = vst.msk [vmem:[%s136 + $0x658] sm:$0xff] %vm348, %v2260
        %2281 = vst.msk [vmem:[%s136 + $0x660] sm:$0xff] %vm348, %v2262
        %2282 = vst.msk [vmem:[%s136 + $0x668] sm:$0xff] %vm348, %v2264
        %2283 = vst.msk [vmem:[%s136 + $0x670] sm:$0xff] %vm348, %v2266
        %2284 = vst.msk [vmem:[%s136 + $0x678] sm:$0xff] %vm348, %v2268
        %2285 = vset.pattern.permute.xlu0 13
        %2286 = vperm.xlu0 %2285, %v172
        %v2287 = vpop.permute.xlu0 %2286
        %2289 = vset.pattern.permute.xlu0 13
        %2290 = vperm.xlu0 %2289, %v173
        %v2291 = vpop.permute.xlu0 %2290
        %2293 = vset.pattern.permute.xlu0 13
        %2294 = vperm.xlu0 %2293, %v174
        %v2295 = vpop.permute.xlu0 %2294
        %2297 = vset.pattern.permute.xlu0 13
        %2298 = vperm.xlu0 %2297, %v175
        %v2299 = vpop.permute.xlu0 %2298
        %2301 = vset.pattern.permute.xlu0 13
        %2302 = vperm.xlu0 %2301, %v176
        %v2303 = vpop.permute.xlu0 %2302
        %2305 = vset.pattern.permute.xlu0 13
        %2306 = vperm.xlu0 %2305, %v177
        %v2307 = vpop.permute.xlu0 %2306
        %2309 = vset.pattern.permute.xlu0 13
        %2310 = vperm.xlu0 %2309, %v178
        %v2311 = vpop.permute.xlu0 %2310
        %2313 = vset.pattern.permute.xlu0 13
        %2314 = vperm.xlu0 %2313, %v179
        %v2315 = vpop.permute.xlu0 %2314
        %2317 = vset.pattern.permute.xlu0 13
        %2318 = vperm.xlu0 %2317, %v180
        %v2319 = vpop.permute.xlu0 %2318
        %2321 = vset.pattern.permute.xlu0 13
        %2322 = vperm.xlu0 %2321, %v181
        %v2323 = vpop.permute.xlu0 %2322
        %2325 = vset.pattern.permute.xlu0 13
        %2326 = vperm.xlu0 %2325, %v182
        %v2327 = vpop.permute.xlu0 %2326
        %2329 = vset.pattern.permute.xlu0 13
        %2330 = vperm.xlu0 %2329, %v183
        %v2331 = vpop.permute.xlu0 %2330
        %2333 = vset.pattern.permute.xlu0 13
        %2334 = vperm.xlu0 %2333, %v184
        %v2335 = vpop.permute.xlu0 %2334
        %2337 = vset.pattern.permute.xlu0 13
        %2338 = vperm.xlu0 %2337, %v185
        %v2339 = vpop.permute.xlu0 %2338
        %2341 = vset.pattern.permute.xlu0 13
        %2342 = vperm.xlu0 %2341, %v186
        %v2343 = vpop.permute.xlu0 %2342
        %2345 = vset.pattern.permute.xlu0 13
        %2346 = vperm.xlu0 %2345, %v187
        %v2347 = vpop.permute.xlu0 %2346
        %v2349 = vsub.f32 %v2287, %v151
        %v2350 = vsub.f32 %v2291, %v151
        %v2351 = vsub.f32 %v2295, %v151
        %v2352 = vsub.f32 %v2299, %v151
        %v2353 = vsub.f32 %v2303, %v151
        %v2354 = vsub.f32 %v2307, %v151
        %v2355 = vsub.f32 %v2311, %v151
        %v2356 = vsub.f32 %v2315, %v151
        %v2357 = vsub.f32 %v2319, %v151
        %v2358 = vsub.f32 %v2323, %v151
        %v2359 = vsub.f32 %v2327, %v151
        %v2360 = vsub.f32 %v2331, %v151
        %v2361 = vsub.f32 %v2335, %v151
        %v2362 = vsub.f32 %v2339, %v151
        %v2363 = vsub.f32 %v2343, %v151
        %v2364 = vsub.f32 %v2347, %v151
        %v2365 = vmul.f32 %v2349, %v2349
        %v2366 = vmul.f32 %v2350, %v2350
        %v2367 = vmul.f32 %v2351, %v2351
        %v2368 = vmul.f32 %v2352, %v2352
        %v2369 = vmul.f32 %v2353, %v2353
        %v2370 = vmul.f32 %v2354, %v2354
        %v2371 = vmul.f32 %v2355, %v2355
        %v2372 = vmul.f32 %v2356, %v2356
        %v2373 = vmul.f32 %v2357, %v2357
        %v2374 = vmul.f32 %v2358, %v2358
        %v2375 = vmul.f32 %v2359, %v2359
        %v2376 = vmul.f32 %v2360, %v2360
        %v2377 = vmul.f32 %v2361, %v2361
        %v2378 = vmul.f32 %v2362, %v2362
        %v2379 = vmul.f32 %v2363, %v2363
        %v2380 = vmul.f32 %v2364, %v2364
        %v2381 = vsub.f32 0.0, %v2365
        %v2382 = vsub.f32 0.0, %v2366
        %v2383 = vsub.f32 0.0, %v2367
        %v2384 = vsub.f32 0.0, %v2368
        %v2385 = vsub.f32 0.0, %v2369
        %v2386 = vsub.f32 0.0, %v2370
        %v2387 = vsub.f32 0.0, %v2371
        %v2388 = vsub.f32 0.0, %v2372
        %v2389 = vsub.f32 0.0, %v2373
        %v2390 = vsub.f32 0.0, %v2374
        %v2391 = vsub.f32 0.0, %v2375
        %v2392 = vsub.f32 0.0, %v2376
        %v2393 = vsub.f32 0.0, %v2377
        %v2394 = vsub.f32 0.0, %v2378
        %v2395 = vsub.f32 0.0, %v2379
        %v2396 = vsub.f32 0.0, %v2380
        %v2397 = vmul.f32 %v2381, 1.442695
        %v2398 = vpow.pop %v2397
        %v2399 = vmul.f32 %v2382, 1.442695
        %v2400 = vpow.pop %v2399
        %v2401 = vmul.f32 %v2383, 1.442695
        %v2402 = vpow.pop %v2401
        %v2403 = vmul.f32 %v2384, 1.442695
        %v2404 = vpow.pop %v2403
        %v2405 = vmul.f32 %v2385, 1.442695
        %v2406 = vpow.pop %v2405
        %v2407 = vmul.f32 %v2386, 1.442695
        %v2408 = vpow.pop %v2407
        %v2409 = vmul.f32 %v2387, 1.442695
        %v2410 = vpow.pop %v2409
        %v2411 = vmul.f32 %v2388, 1.442695
        %v2412 = vpow.pop %v2411
        %v2413 = vmul.f32 %v2389, 1.442695
        %v2414 = vpow.pop %v2413
        %v2415 = vmul.f32 %v2390, 1.442695
        %v2416 = vpow.pop %v2415
        %v2417 = vmul.f32 %v2391, 1.442695
        %v2418 = vpow.pop %v2417
        %v2419 = vmul.f32 %v2392, 1.442695
        %v2420 = vpow.pop %v2419
        %v2421 = vmul.f32 %v2393, 1.442695
        %v2422 = vpow.pop %v2421
        %v2423 = vmul.f32 %v2394, 1.442695
        %v2424 = vpow.pop %v2423
        %v2425 = vmul.f32 %v2395, 1.442695
        %v2426 = vpow.pop %v2425
        %v2427 = vmul.f32 %v2396, 1.442695
        %v2428 = vpow.pop %v2427
        %2429 = vst.msk [vmem:[%s136 + $0x680] sm:$0xff] %vm348, %v2398
        %2430 = vst.msk [vmem:[%s136 + $0x688] sm:$0xff] %vm348, %v2400
        %2431 = vst.msk [vmem:[%s136 + $0x690] sm:$0xff] %vm348, %v2402
        %2432 = vst.msk [vmem:[%s136 + $0x698] sm:$0xff] %vm348, %v2404
        %2433 = vst.msk [vmem:[%s136 + $0x6a0] sm:$0xff] %vm348, %v2406
        %2434 = vst.msk [vmem:[%s136 + $0x6a8] sm:$0xff] %vm348, %v2408
        %2435 = vst.msk [vmem:[%s136 + $0x6b0] sm:$0xff] %vm348, %v2410
        %2436 = vst.msk [vmem:[%s136 + $0x6b8] sm:$0xff] %vm348, %v2412
        %2437 = vst.msk [vmem:[%s136 + $0x6c0] sm:$0xff] %vm348, %v2414
        %2438 = vst.msk [vmem:[%s136 + $0x6c8] sm:$0xff] %vm348, %v2416
        %2439 = vst.msk [vmem:[%s136 + $0x6d0] sm:$0xff] %vm348, %v2418
        %2440 = vst.msk [vmem:[%s136 + $0x6d8] sm:$0xff] %vm348, %v2420
        %2441 = vst.msk [vmem:[%s136 + $0x6e0] sm:$0xff] %vm348, %v2422
        %2442 = vst.msk [vmem:[%s136 + $0x6e8] sm:$0xff] %vm348, %v2424
        %2443 = vst.msk [vmem:[%s136 + $0x6f0] sm:$0xff] %vm348, %v2426
        %2444 = vst.msk [vmem:[%s136 + $0x6f8] sm:$0xff] %vm348, %v2428
        %2445 = vset.pattern.permute.xlu0 14
        %2446 = vperm.xlu0 %2445, %v172
        %v2447 = vpop.permute.xlu0 %2446
        %2449 = vset.pattern.permute.xlu0 14
        %2450 = vperm.xlu0 %2449, %v173
        %v2451 = vpop.permute.xlu0 %2450
        %2453 = vset.pattern.permute.xlu0 14
        %2454 = vperm.xlu0 %2453, %v174
        %v2455 = vpop.permute.xlu0 %2454
        %2457 = vset.pattern.permute.xlu0 14
        %2458 = vperm.xlu0 %2457, %v175
        %v2459 = vpop.permute.xlu0 %2458
        %2461 = vset.pattern.permute.xlu0 14
        %2462 = vperm.xlu0 %2461, %v176
        %v2463 = vpop.permute.xlu0 %2462
        %2465 = vset.pattern.permute.xlu0 14
        %2466 = vperm.xlu0 %2465, %v177
        %v2467 = vpop.permute.xlu0 %2466
        %2469 = vset.pattern.permute.xlu0 14
        %2470 = vperm.xlu0 %2469, %v178
        %v2471 = vpop.permute.xlu0 %2470
        %2473 = vset.pattern.permute.xlu0 14
        %2474 = vperm.xlu0 %2473, %v179
        %v2475 = vpop.permute.xlu0 %2474
        %2477 = vset.pattern.permute.xlu0 14
        %2478 = vperm.xlu0 %2477, %v180
        %v2479 = vpop.permute.xlu0 %2478
        %2481 = vset.pattern.permute.xlu0 14
        %2482 = vperm.xlu0 %2481, %v181
        %v2483 = vpop.permute.xlu0 %2482
        %2485 = vset.pattern.permute.xlu0 14
        %2486 = vperm.xlu0 %2485, %v182
        %v2487 = vpop.permute.xlu0 %2486
        %2489 = vset.pattern.permute.xlu0 14
        %2490 = vperm.xlu0 %2489, %v183
        %v2491 = vpop.permute.xlu0 %2490
        %2493 = vset.pattern.permute.xlu0 14
        %2494 = vperm.xlu0 %2493, %v184
        %v2495 = vpop.permute.xlu0 %2494
        %2497 = vset.pattern.permute.xlu0 14
        %2498 = vperm.xlu0 %2497, %v185
        %v2499 = vpop.permute.xlu0 %2498
        %2501 = vset.pattern.permute.xlu0 14
        %2502 = vperm.xlu0 %2501, %v186
        %v2503 = vpop.permute.xlu0 %2502
        %2505 = vset.pattern.permute.xlu0 14
        %2506 = vperm.xlu0 %2505, %v187
        %v2507 = vpop.permute.xlu0 %2506
        %v2509 = vsub.f32 %v2447, %v151
        %v2510 = vsub.f32 %v2451, %v151
        %v2511 = vsub.f32 %v2455, %v151
        %v2512 = vsub.f32 %v2459, %v151
        %v2513 = vsub.f32 %v2463, %v151
        %v2514 = vsub.f32 %v2467, %v151
        %v2515 = vsub.f32 %v2471, %v151
        %v2516 = vsub.f32 %v2475, %v151
        %v2517 = vsub.f32 %v2479, %v151
        %v2518 = vsub.f32 %v2483, %v151
        %v2519 = vsub.f32 %v2487, %v151
        %v2520 = vsub.f32 %v2491, %v151
        %v2521 = vsub.f32 %v2495, %v151
        %v2522 = vsub.f32 %v2499, %v151
        %v2523 = vsub.f32 %v2503, %v151
        %v2524 = vsub.f32 %v2507, %v151
        %v2525 = vmul.f32 %v2509, %v2509
        %v2526 = vmul.f32 %v2510, %v2510
        %v2527 = vmul.f32 %v2511, %v2511
        %v2528 = vmul.f32 %v2512, %v2512
        %v2529 = vmul.f32 %v2513, %v2513
        %v2530 = vmul.f32 %v2514, %v2514
        %v2531 = vmul.f32 %v2515, %v2515
        %v2532 = vmul.f32 %v2516, %v2516
        %v2533 = vmul.f32 %v2517, %v2517
        %v2534 = vmul.f32 %v2518, %v2518
        %v2535 = vmul.f32 %v2519, %v2519
        %v2536 = vmul.f32 %v2520, %v2520
        %v2537 = vmul.f32 %v2521, %v2521
        %v2538 = vmul.f32 %v2522, %v2522
        %v2539 = vmul.f32 %v2523, %v2523
        %v2540 = vmul.f32 %v2524, %v2524
        %v2541 = vsub.f32 0.0, %v2525
        %v2542 = vsub.f32 0.0, %v2526
        %v2543 = vsub.f32 0.0, %v2527
        %v2544 = vsub.f32 0.0, %v2528
        %v2545 = vsub.f32 0.0, %v2529
        %v2546 = vsub.f32 0.0, %v2530
        %v2547 = vsub.f32 0.0, %v2531
        %v2548 = vsub.f32 0.0, %v2532
        %v2549 = vsub.f32 0.0, %v2533
        %v2550 = vsub.f32 0.0, %v2534
        %v2551 = vsub.f32 0.0, %v2535
        %v2552 = vsub.f32 0.0, %v2536
        %v2553 = vsub.f32 0.0, %v2537
        %v2554 = vsub.f32 0.0, %v2538
        %v2555 = vsub.f32 0.0, %v2539
        %v2556 = vsub.f32 0.0, %v2540
        %v2557 = vmul.f32 %v2541, 1.442695
        %v2558 = vpow.pop %v2557
        %v2559 = vmul.f32 %v2542, 1.442695
        %v2560 = vpow.pop %v2559
        %v2561 = vmul.f32 %v2543, 1.442695
        %v2562 = vpow.pop %v2561
        %v2563 = vmul.f32 %v2544, 1.442695
        %v2564 = vpow.pop %v2563
        %v2565 = vmul.f32 %v2545, 1.442695
        %v2566 = vpow.pop %v2565
        %v2567 = vmul.f32 %v2546, 1.442695
        %v2568 = vpow.pop %v2567
        %v2569 = vmul.f32 %v2547, 1.442695
        %v2570 = vpow.pop %v2569
        %v2571 = vmul.f32 %v2548, 1.442695
        %v2572 = vpow.pop %v2571
        %v2573 = vmul.f32 %v2549, 1.442695
        %v2574 = vpow.pop %v2573
        %v2575 = vmul.f32 %v2550, 1.442695
        %v2576 = vpow.pop %v2575
        %v2577 = vmul.f32 %v2551, 1.442695
        %v2578 = vpow.pop %v2577
        %v2579 = vmul.f32 %v2552, 1.442695
        %v2580 = vpow.pop %v2579
        %v2581 = vmul.f32 %v2553, 1.442695
        %v2582 = vpow.pop %v2581
        %v2583 = vmul.f32 %v2554, 1.442695
        %v2584 = vpow.pop %v2583
        %v2585 = vmul.f32 %v2555, 1.442695
        %v2586 = vpow.pop %v2585
        %v2587 = vmul.f32 %v2556, 1.442695
        %v2588 = vpow.pop %v2587
        %2589 = vst.msk [vmem:[%s136 + $0x700] sm:$0xff] %vm348, %v2558
        %2590 = vst.msk [vmem:[%s136 + $0x708] sm:$0xff] %vm348, %v2560
        %2591 = vst.msk [vmem:[%s136 + $0x710] sm:$0xff] %vm348, %v2562
        %2592 = vst.msk [vmem:[%s136 + $0x718] sm:$0xff] %vm348, %v2564
        %2593 = vst.msk [vmem:[%s136 + $0x720] sm:$0xff] %vm348, %v2566
        %2594 = vst.msk [vmem:[%s136 + $0x728] sm:$0xff] %vm348, %v2568
        %2595 = vst.msk [vmem:[%s136 + $0x730] sm:$0xff] %vm348, %v2570
        %2596 = vst.msk [vmem:[%s136 + $0x738] sm:$0xff] %vm348, %v2572
        %2597 = vst.msk [vmem:[%s136 + $0x740] sm:$0xff] %vm348, %v2574
        %2598 = vst.msk [vmem:[%s136 + $0x748] sm:$0xff] %vm348, %v2576
        %2599 = vst.msk [vmem:[%s136 + $0x750] sm:$0xff] %vm348, %v2578
        %2600 = vst.msk [vmem:[%s136 + $0x758] sm:$0xff] %vm348, %v2580
        %2601 = vst.msk [vmem:[%s136 + $0x760] sm:$0xff] %vm348, %v2582
        %2602 = vst.msk [vmem:[%s136 + $0x768] sm:$0xff] %vm348, %v2584
        %2603 = vst.msk [vmem:[%s136 + $0x770] sm:$0xff] %vm348, %v2586
        %2604 = vst.msk [vmem:[%s136 + $0x778] sm:$0xff] %vm348, %v2588
        %2605 = vset.pattern.permute.xlu0 15
        %2606 = vperm.xlu0 %2605, %v172
        %v2607 = vpop.permute.xlu0 %2606
        %2609 = vset.pattern.permute.xlu0 15
        %2610 = vperm.xlu0 %2609, %v173
        %v2611 = vpop.permute.xlu0 %2610
        %2613 = vset.pattern.permute.xlu0 15
        %2614 = vperm.xlu0 %2613, %v174
        %v2615 = vpop.permute.xlu0 %2614
        %2617 = vset.pattern.permute.xlu0 15
        %2618 = vperm.xlu0 %2617, %v175
        %v2619 = vpop.permute.xlu0 %2618
        %2621 = vset.pattern.permute.xlu0 15
        %2622 = vperm.xlu0 %2621, %v176
        %v2623 = vpop.permute.xlu0 %2622
        %2625 = vset.pattern.permute.xlu0 15
        %2626 = vperm.xlu0 %2625, %v177
        %v2627 = vpop.permute.xlu0 %2626
        %2629 = vset.pattern.permute.xlu0 15
        %2630 = vperm.xlu0 %2629, %v178
        %v2631 = vpop.permute.xlu0 %2630
        %2633 = vset.pattern.permute.xlu0 15
        %2634 = vperm.xlu0 %2633, %v179
        %v2635 = vpop.permute.xlu0 %2634
        %2637 = vset.pattern.permute.xlu0 15
        %2638 = vperm.xlu0 %2637, %v180
        %v2639 = vpop.permute.xlu0 %2638
        %2641 = vset.pattern.permute.xlu0 15
        %2642 = vperm.xlu0 %2641, %v181
        %v2643 = vpop.permute.xlu0 %2642
        %2645 = vset.pattern.permute.xlu0 15
        %2646 = vperm.xlu0 %2645, %v182
        %v2647 = vpop.permute.xlu0 %2646
        %2649 = vset.pattern.permute.xlu0 15
        %2650 = vperm.xlu0 %2649, %v183
        %v2651 = vpop.permute.xlu0 %2650
        %2653 = vset.pattern.permute.xlu0 15
        %2654 = vperm.xlu0 %2653, %v184
        %v2655 = vpop.permute.xlu0 %2654
        %2657 = vset.pattern.permute.xlu0 15
        %2658 = vperm.xlu0 %2657, %v185
        %v2659 = vpop.permute.xlu0 %2658
        %2661 = vset.pattern.permute.xlu0 15
        %2662 = vperm.xlu0 %2661, %v186
        %v2663 = vpop.permute.xlu0 %2662
        %2665 = vset.pattern.permute.xlu0 15
        %2666 = vperm.xlu0 %2665, %v187
        %v2667 = vpop.permute.xlu0 %2666
        %v2669 = vsub.f32 %v2607, %v151
        %v2670 = vsub.f32 %v2611, %v151
        %v2671 = vsub.f32 %v2615, %v151
        %v2672 = vsub.f32 %v2619, %v151
        %v2673 = vsub.f32 %v2623, %v151
        %v2674 = vsub.f32 %v2627, %v151
        %v2675 = vsub.f32 %v2631, %v151
        %v2676 = vsub.f32 %v2635, %v151
        %v2677 = vsub.f32 %v2639, %v151
        %v2678 = vsub.f32 %v2643, %v151
        %v2679 = vsub.f32 %v2647, %v151
        %v2680 = vsub.f32 %v2651, %v151
        %v2681 = vsub.f32 %v2655, %v151
        %v2682 = vsub.f32 %v2659, %v151
        %v2683 = vsub.f32 %v2663, %v151
        %v2684 = vsub.f32 %v2667, %v151
        %v2685 = vmul.f32 %v2669, %v2669
        %v2686 = vmul.f32 %v2670, %v2670
        %v2687 = vmul.f32 %v2671, %v2671
        %v2688 = vmul.f32 %v2672, %v2672
        %v2689 = vmul.f32 %v2673, %v2673
        %v2690 = vmul.f32 %v2674, %v2674
        %v2691 = vmul.f32 %v2675, %v2675
        %v2692 = vmul.f32 %v2676, %v2676
        %v2693 = vmul.f32 %v2677, %v2677
        %v2694 = vmul.f32 %v2678, %v2678
        %v2695 = vmul.f32 %v2679, %v2679
        %v2696 = vmul.f32 %v2680, %v2680
        %v2697 = vmul.f32 %v2681, %v2681
        %v2698 = vmul.f32 %v2682, %v2682
        %v2699 = vmul.f32 %v2683, %v2683
        %v2700 = vmul.f32 %v2684, %v2684
        %v2701 = vsub.f32 0.0, %v2685
        %v2702 = vsub.f32 0.0, %v2686
        %v2703 = vsub.f32 0.0, %v2687
        %v2704 = vsub.f32 0.0, %v2688
        %v2705 = vsub.f32 0.0, %v2689
        %v2706 = vsub.f32 0.0, %v2690
        %v2707 = vsub.f32 0.0, %v2691
        %v2708 = vsub.f32 0.0, %v2692
        %v2709 = vsub.f32 0.0, %v2693
        %v2710 = vsub.f32 0.0, %v2694
        %v2711 = vsub.f32 0.0, %v2695
        %v2712 = vsub.f32 0.0, %v2696
        %v2713 = vsub.f32 0.0, %v2697
        %v2714 = vsub.f32 0.0, %v2698
        %v2715 = vsub.f32 0.0, %v2699
        %v2716 = vsub.f32 0.0, %v2700
        %v2717 = vmul.f32 %v2701, 1.442695
        %v2718 = vpow.pop %v2717
        %v2719 = vmul.f32 %v2702, 1.442695
        %v2720 = vpow.pop %v2719
        %v2721 = vmul.f32 %v2703, 1.442695
        %v2722 = vpow.pop %v2721
        %v2723 = vmul.f32 %v2704, 1.442695
        %v2724 = vpow.pop %v2723
        %v2725 = vmul.f32 %v2705, 1.442695
        %v2726 = vpow.pop %v2725
        %v2727 = vmul.f32 %v2706, 1.442695
        %v2728 = vpow.pop %v2727
        %v2729 = vmul.f32 %v2707, 1.442695
        %v2730 = vpow.pop %v2729
        %v2731 = vmul.f32 %v2708, 1.442695
        %v2732 = vpow.pop %v2731
        %v2733 = vmul.f32 %v2709, 1.442695
        %v2734 = vpow.pop %v2733
        %v2735 = vmul.f32 %v2710, 1.442695
        %v2736 = vpow.pop %v2735
        %v2737 = vmul.f32 %v2711, 1.442695
        %v2738 = vpow.pop %v2737
        %v2739 = vmul.f32 %v2712, 1.442695
        %v2740 = vpow.pop %v2739
        %v2741 = vmul.f32 %v2713, 1.442695
        %v2742 = vpow.pop %v2741
        %v2743 = vmul.f32 %v2714, 1.442695
        %v2744 = vpow.pop %v2743
        %v2745 = vmul.f32 %v2715, 1.442695
        %v2746 = vpow.pop %v2745
        %v2747 = vmul.f32 %v2716, 1.442695
        %v2748 = vpow.pop %v2747
        %2749 = vst.msk [vmem:[%s136 + $0x780] sm:$0xff] %vm348, %v2718
        %2750 = vst.msk [vmem:[%s136 + $0x788] sm:$0xff] %vm348, %v2720
        %2751 = vst.msk [vmem:[%s136 + $0x790] sm:$0xff] %vm348, %v2722
        %2752 = vst.msk [vmem:[%s136 + $0x798] sm:$0xff] %vm348, %v2724
        %2753 = vst.msk [vmem:[%s136 + $0x7a0] sm:$0xff] %vm348, %v2726
        %2754 = vst.msk [vmem:[%s136 + $0x7a8] sm:$0xff] %vm348, %v2728
        %2755 = vst.msk [vmem:[%s136 + $0x7b0] sm:$0xff] %vm348, %v2730
        %2756 = vst.msk [vmem:[%s136 + $0x7b8] sm:$0xff] %vm348, %v2732
        %2757 = vst.msk [vmem:[%s136 + $0x7c0] sm:$0xff] %vm348, %v2734
        %2758 = vst.msk [vmem:[%s136 + $0x7c8] sm:$0xff] %vm348, %v2736
        %2759 = vst.msk [vmem:[%s136 + $0x7d0] sm:$0xff] %vm348, %v2738
        %2760 = vst.msk [vmem:[%s136 + $0x7d8] sm:$0xff] %vm348, %v2740
        %2761 = vst.msk [vmem:[%s136 + $0x7e0] sm:$0xff] %vm348, %v2742
        %2762 = vst.msk [vmem:[%s136 + $0x7e8] sm:$0xff] %vm348, %v2744
        %2763 = vst.msk [vmem:[%s136 + $0x7f0] sm:$0xff] %vm348, %v2746
        %2764 = vst.msk [vmem:[%s136 + $0x7f8] sm:$0xff] %vm348, %v2748
        %s2765 = sand.u32 %s49, 1
        %s2766 = sand.u32 %s49, 1
        %s2767 = smul.addr %s2766, 2048
        %s2768 = scalar_lea.vmem [#allocation4], %s2767
        // Predicated region
        $region29: #{tpu_custom_call.1} parent=23 // pred_check
          %p2769 = pneg %p59
        $region30: #{tpu_custom_call.1} parent=23 // pred_check_branch
          %2771 = sbr.rel (%p2769) target = $region32
        $region31: #{tpu_custom_call.1} parent=23 // pred_region
          %s2772 = smul.u32 256, %s15
          %s2773 = ssub.s32 260, %s2772
          %p2774 = scmp.lt.s32.totalorder %s2773, 256
          %s2775 = scalar_select %p2774, %s2773, 256
          %s2776 = smul.u32 128, %s2775
          %p2777 = scmp.ne.s32.totalorder 0, %s2776
          %s2778 = smul.addr %s2772, 8
          %s2779 = scalar_lea.vmem %s1, %s2778
          // Predicated region
          $region33: #{tpu_custom_call.1} parent=31 // pred_check
            %p2780 = pneg %p2777
          $region34: #{tpu_custom_call.1} parent=31 // pred_check_branch
            %2782 = sbr.rel (%p2780) target = $region36
          $region35: #{tpu_custom_call.1} parent=31 // pred_region
            // Predicated region
            $region37: #{tpu_custom_call.1} parent=35 // pred_check
              _
            $region38: #{tpu_custom_call.1} parent=35 // pred_check_branch
              %2784 = sbr.rel (0) target = $region40
            $region39: #{tpu_custom_call.1} parent=35 // pred_region
              // Predicated region
              $region59: #{tpu_custom_call.1} parent=39 // pred_check
                _
              $region60: #{tpu_custom_call.1} parent=39 // pred_check_branch
                %2960 = sbr.rel (0) target = $region62
              $region61: #{tpu_custom_call.1} parent=39 // pred_region
                %s2961 = sshrl.u32 %s2775, 6
                // While loop
                $region63: #{tpu_custom_call.1} parent=61 // loop_pre_header
                  _
                $region64: #{tpu_custom_call.1} parent=61 // loop_header
                  %s2963 = sphi 0, %s2965
                  %p2964 = scmp.ge.s32.totalorder %s2963, %s2961
                  %s2968 = sphi 0, %s3101
                  %s2969 = sphi %s2768, %s3104
                  %s2970 = sphi %s2779, %s3105
                $region65: #{tpu_custom_call.1} parent=61 // loop_header_branch
                  %2967 = sbr.rel (%p2964) target = $region69
                $region66: #{tpu_custom_call.1} parent=61 // loop_body
                  %v2971 = vld [vmem:[%s2969] sm:$0xff]
                  %2972 = vst [vmem:[%s2970] sm:$0xff] %v2971
                  %v2973 = vld [vmem:[%s2969 + $0x8] sm:$0xff]
                  %2974 = vst [vmem:[%s2970 + $0x8] sm:$0xff] %v2973
                  %v2975 = vld [vmem:[%s2969 + $0x10] sm:$0xff]
                  %2976 = vst [vmem:[%s2970 + $0x10] sm:$0xff] %v2975
                  %v2977 = vld [vmem:[%s2969 + $0x18] sm:$0xff]
                  %2978 = vst [vmem:[%s2970 + $0x18] sm:$0xff] %v2977
                  %v2979 = vld [vmem:[%s2969 + $0x20] sm:$0xff]
                  %2980 = vst [vmem:[%s2970 + $0x20] sm:$0xff] %v2979
                  %v2981 = vld [vmem:[%s2969 + $0x28] sm:$0xff]
                  %2982 = vst [vmem:[%s2970 + $0x28] sm:$0xff] %v2981
                  %v2983 = vld [vmem:[%s2969 + $0x30] sm:$0xff]
                  %2984 = vst [vmem:[%s2970 + $0x30] sm:$0xff] %v2983
                  %v2985 = vld [vmem:[%s2969 + $0x38] sm:$0xff]
                  %2986 = vst [vmem:[%s2970 + $0x38] sm:$0xff] %v2985
                  %v2987 = vld [vmem:[%s2969 + $0x40] sm:$0xff]
                  %2988 = vst [vmem:[%s2970 + $0x40] sm:$0xff] %v2987
                  %v2989 = vld [vmem:[%s2969 + $0x48] sm:$0xff]
                  %2990 = vst [vmem:[%s2970 + $0x48] sm:$0xff] %v2989
                  %v2991 = vld [vmem:[%s2969 + $0x50] sm:$0xff]
                  %2992 = vst [vmem:[%s2970 + $0x50] sm:$0xff] %v2991
                  %v2993 = vld [vmem:[%s2969 + $0x58] sm:$0xff]
                  %2994 = vst [vmem:[%s2970 + $0x58] sm:$0xff] %v2993
                  %v2995 = vld [vmem:[%s2969 + $0x60] sm:$0xff]
                  %2996 = vst [vmem:[%s2970 + $0x60] sm:$0xff] %v2995
                  %v2997 = vld [vmem:[%s2969 + $0x68] sm:$0xff]
                  %2998 = vst [vmem:[%s2970 + $0x68] sm:$0xff] %v2997
                  %v2999 = vld [vmem:[%s2969 + $0x70] sm:$0xff]
                  %3000 = vst [vmem:[%s2970 + $0x70] sm:$0xff] %v2999
                  %v3001 = vld [vmem:[%s2969 + $0x78] sm:$0xff]
                  %3002 = vst [vmem:[%s2970 + $0x78] sm:$0xff] %v3001
                  %v3003 = vld [vmem:[%s2969 + $0x80] sm:$0xff]
                  %3004 = vst [vmem:[%s2970 + $0x80] sm:$0xff] %v3003
                  %v3005 = vld [vmem:[%s2969 + $0x88] sm:$0xff]
                  %3006 = vst [vmem:[%s2970 + $0x88] sm:$0xff] %v3005
                  %v3007 = vld [vmem:[%s2969 + $0x90] sm:$0xff]
                  %3008 = vst [vmem:[%s2970 + $0x90] sm:$0xff] %v3007
                  %v3009 = vld [vmem:[%s2969 + $0x98] sm:$0xff]
                  %3010 = vst [vmem:[%s2970 + $0x98] sm:$0xff] %v3009
                  %v3011 = vld [vmem:[%s2969 + $0xa0] sm:$0xff]
                  %3012 = vst [vmem:[%s2970 + $0xa0] sm:$0xff] %v3011
                  %v3013 = vld [vmem:[%s2969 + $0xa8] sm:$0xff]
                  %3014 = vst [vmem:[%s2970 + $0xa8] sm:$0xff] %v3013
                  %v3015 = vld [vmem:[%s2969 + $0xb0] sm:$0xff]
                  %3016 = vst [vmem:[%s2970 + $0xb0] sm:$0xff] %v3015
                  %v3017 = vld [vmem:[%s2969 + $0xb8] sm:$0xff]
                  %3018 = vst [vmem:[%s2970 + $0xb8] sm:$0xff] %v3017
                  %v3019 = vld [vmem:[%s2969 + $0xc0] sm:$0xff]
                  %3020 = vst [vmem:[%s2970 + $0xc0] sm:$0xff] %v3019
                  %v3021 = vld [vmem:[%s2969 + $0xc8] sm:$0xff]
                  %3022 = vst [vmem:[%s2970 + $0xc8] sm:$0xff] %v3021
                  %v3023 = vld [vmem:[%s2969 + $0xd0] sm:$0xff]
                  %3024 = vst [vmem:[%s2970 + $0xd0] sm:$0xff] %v3023
                  %v3025 = vld [vmem:[%s2969 + $0xd8] sm:$0xff]
                  %3026 = vst [vmem:[%s2970 + $0xd8] sm:$0xff] %v3025
                  %v3027 = vld [vmem:[%s2969 + $0xe0] sm:$0xff]
                  %3028 = vst [vmem:[%s2970 + $0xe0] sm:$0xff] %v3027
                  %v3029 = vld [vmem:[%s2969 + $0xe8] sm:$0xff]
                  %3030 = vst [vmem:[%s2970 + $0xe8] sm:$0xff] %v3029
                  %v3031 = vld [vmem:[%s2969 + $0xf0] sm:$0xff]
                  %3032 = vst [vmem:[%s2970 + $0xf0] sm:$0xff] %v3031
                  %v3033 = vld [vmem:[%s2969 + $0xf8] sm:$0xff]
                  %3034 = vst [vmem:[%s2970 + $0xf8] sm:$0xff] %v3033
                  %v3035 = vld [vmem:[%s2969 + $0x100] sm:$0xff]
                  %3036 = vst [vmem:[%s2970 + $0x100] sm:$0xff] %v3035
                  %v3037 = vld [vmem:[%s2969 + $0x108] sm:$0xff]
                  %3038 = vst [vmem:[%s2970 + $0x108] sm:$0xff] %v3037
                  %v3039 = vld [vmem:[%s2969 + $0x110] sm:$0xff]
                  %3040 = vst [vmem:[%s2970 + $0x110] sm:$0xff] %v3039
                  %v3041 = vld [vmem:[%s2969 + $0x118] sm:$0xff]
                  %3042 = vst [vmem:[%s2970 + $0x118] sm:$0xff] %v3041
                  %v3043 = vld [vmem:[%s2969 + $0x120] sm:$0xff]
                  %3044 = vst [vmem:[%s2970 + $0x120] sm:$0xff] %v3043
                  %v3045 = vld [vmem:[%s2969 + $0x128] sm:$0xff]
                  %3046 = vst [vmem:[%s2970 + $0x128] sm:$0xff] %v3045
                  %v3047 = vld [vmem:[%s2969 + $0x130] sm:$0xff]
                  %3048 = vst [vmem:[%s2970 + $0x130] sm:$0xff] %v3047
                  %v3049 = vld [vmem:[%s2969 + $0x138] sm:$0xff]
                  %3050 = vst [vmem:[%s2970 + $0x138] sm:$0xff] %v3049
                  %v3051 = vld [vmem:[%s2969 + $0x140] sm:$0xff]
                  %3052 = vst [vmem:[%s2970 + $0x140] sm:$0xff] %v3051
                  %v3053 = vld [vmem:[%s2969 + $0x148] sm:$0xff]
                  %3054 = vst [vmem:[%s2970 + $0x148] sm:$0xff] %v3053
                  %v3055 = vld [vmem:[%s2969 + $0x150] sm:$0xff]
                  %3056 = vst [vmem:[%s2970 + $0x150] sm:$0xff] %v3055
                  %v3057 = vld [vmem:[%s2969 + $0x158] sm:$0xff]
                  %3058 = vst [vmem:[%s2970 + $0x158] sm:$0xff] %v3057
                  %v3059 = vld [vmem:[%s2969 + $0x160] sm:$0xff]
                  %3060 = vst [vmem:[%s2970 + $0x160] sm:$0xff] %v3059
                  %v3061 = vld [vmem:[%s2969 + $0x168] sm:$0xff]
                  %3062 = vst [vmem:[%s2970 + $0x168] sm:$0xff] %v3061
                  %v3063 = vld [vmem:[%s2969 + $0x170] sm:$0xff]
                  %3064 = vst [vmem:[%s2970 + $0x170] sm:$0xff] %v3063
                  %v3065 = vld [vmem:[%s2969 + $0x178] sm:$0xff]
                  %3066 = vst [vmem:[%s2970 + $0x178] sm:$0xff] %v3065
                  %v3067 = vld [vmem:[%s2969 + $0x180] sm:$0xff]
                  %3068 = vst [vmem:[%s2970 + $0x180] sm:$0xff] %v3067
                  %v3069 = vld [vmem:[%s2969 + $0x188] sm:$0xff]
                  %3070 = vst [vmem:[%s2970 + $0x188] sm:$0xff] %v3069
                  %v3071 = vld [vmem:[%s2969 + $0x190] sm:$0xff]
                  %3072 = vst [vmem:[%s2970 + $0x190] sm:$0xff] %v3071
                  %v3073 = vld [vmem:[%s2969 + $0x198] sm:$0xff]
                  %3074 = vst [vmem:[%s2970 + $0x198] sm:$0xff] %v3073
                  %v3075 = vld [vmem:[%s2969 + $0x1a0] sm:$0xff]
                  %3076 = vst [vmem:[%s2970 + $0x1a0] sm:$0xff] %v3075
                  %v3077 = vld [vmem:[%s2969 + $0x1a8] sm:$0xff]
                  %3078 = vst [vmem:[%s2970 + $0x1a8] sm:$0xff] %v3077
                  %v3079 = vld [vmem:[%s2969 + $0x1b0] sm:$0xff]
                  %3080 = vst [vmem:[%s2970 + $0x1b0] sm:$0xff] %v3079
                  %v3081 = vld [vmem:[%s2969 + $0x1b8] sm:$0xff]
                  %3082 = vst [vmem:[%s2970 + $0x1b8] sm:$0xff] %v3081
                  %v3083 = vld [vmem:[%s2969 + $0x1c0] sm:$0xff]
                  %3084 = vst [vmem:[%s2970 + $0x1c0] sm:$0xff] %v3083
                  %v3085 = vld [vmem:[%s2969 + $0x1c8] sm:$0xff]
                  %3086 = vst [vmem:[%s2970 + $0x1c8] sm:$0xff] %v3085
                  %v3087 = vld [vmem:[%s2969 + $0x1d0] sm:$0xff]
                  %3088 = vst [vmem:[%s2970 + $0x1d0] sm:$0xff] %v3087
                  %v3089 = vld [vmem:[%s2969 + $0x1d8] sm:$0xff]
                  %3090 = vst [vmem:[%s2970 + $0x1d8] sm:$0xff] %v3089
                  %v3091 = vld [vmem:[%s2969 + $0x1e0] sm:$0xff]
                  %3092 = vst [vmem:[%s2970 + $0x1e0] sm:$0xff] %v3091
                  %v3093 = vld [vmem:[%s2969 + $0x1e8] sm:$0xff]
                  %3094 = vst [vmem:[%s2970 + $0x1e8] sm:$0xff] %v3093
                  %v3095 = vld [vmem:[%s2969 + $0x1f0] sm:$0xff]
                  %3096 = vst [vmem:[%s2970 + $0x1f0] sm:$0xff] %v3095
                  %v3097 = vld [vmem:[%s2969 + $0x1f8] sm:$0xff]
                  %3098 = vst [vmem:[%s2970 + $0x1f8] sm:$0xff] %v3097
                  %s3099 = sadd.s32 1, %s2968
                  %p3100 = scmp.ge.s32.totalorder %s3099, %s2961
                  %s3101 = scalar_select %p3100, 0, %s3099
                  %s3102 = smul.u32 %s3101, 512
                  %s3103 = smul.u32 %s3101, 512
                  %s3104 = scalar_lea.vmem %s2768, %s3102 [#allocation4]
                  %s3105 = scalar_lea.vmem %s2779, %s3103
                $region67: #{tpu_custom_call.1} parent=61 // loop_footer
                  %s2965 = sadd.s32 %s2963, 1
                $region68: #{tpu_custom_call.1} parent=61 // loop_footer_branch
                  %2962 = sbr.rel target = $region64
                $region69: #{tpu_custom_call.1} parent=61 // loop_exit
                  _
                %s3106 = sshrl.u32 %s2775, 6
                %s3107 = sand.u32 %s2775, 63
                %s3108 = smul.u32 %s3106, 64
                %s3109 = smul.u32 8, %s3108
                %s3110 = scalar_lea.vmem %s2768, %s3109 [#allocation4]
                %s3111 = smul.u32 8, %s3108
                %s3112 = scalar_lea.vmem %s2779, %s3111
                // While loop
                $region70: #{tpu_custom_call.1} parent=61 // loop_pre_header
                  _
                $region71: #{tpu_custom_call.1} parent=61 // loop_header
                  %s3114 = sphi 0, %s3116
                  %p3115 = scmp.ge.s32.totalorder %s3114, %s3107
                  %s3119 = sphi 0, %s3126
                  %s3120 = sphi %s3110, %s3129
                  %s3121 = sphi %s3112, %s3130
                $region72: #{tpu_custom_call.1} parent=61 // loop_header_branch
                  %3118 = sbr.rel (%p3115) target = $region76
                $region73: #{tpu_custom_call.1} parent=61 // loop_body
                  %v3122 = vld [vmem:[%s3120] sm:$0xff]
                  %3123 = vst [vmem:[%s3121] sm:$0xff] %v3122
                  %s3124 = sadd.s32 1, %s3119
                  %p3125 = scmp.ge.s32.totalorder %s3124, %s3107
                  %s3126 = scalar_select %p3125, 0, %s3124
                  %s3127 = smul.u32 %s3126, 8
                  %s3128 = smul.u32 %s3126, 8
                  %s3129 = scalar_lea.vmem %s3110, %s3127 [#allocation4]
                  %s3130 = scalar_lea.vmem %s3112, %s3128
                $region74: #{tpu_custom_call.1} parent=61 // loop_footer
                  %s3116 = sadd.s32 %s3114, 1
                $region75: #{tpu_custom_call.1} parent=61 // loop_footer_branch
                  %3113 = sbr.rel target = $region71
                $region76: #{tpu_custom_call.1} parent=61 // loop_exit
                  _
              $region62: #{tpu_custom_call.1} parent=39 // pred_fallthru
                _
              // Predicated region
              $region77: #{tpu_custom_call.1} parent=39 // pred_check
                _
              $region78: #{tpu_custom_call.1} parent=39 // pred_check_branch
                %3132 = sbr.rel target = $region80
              $region79: #{tpu_custom_call.1} parent=39 // pred_region
                _
              $region80: #{tpu_custom_call.1} parent=39 // pred_fallthru
                _
            $region40: #{tpu_custom_call.1} parent=35 // pred_fallthru
              _
            // Predicated region
            $region41: #{tpu_custom_call.1} parent=35 // pred_check
              _
            $region42: #{tpu_custom_call.1} parent=35 // pred_check_branch
              %2786 = sbr.rel target = $region44
            $region43: #{tpu_custom_call.1} parent=35 // pred_region
              %s2788 = ssub.s32 256, 1
              %s2789 = sshrl.u32 %s2775, 6
              // While loop
              $region45: #{tpu_custom_call.1} parent=43 // loop_pre_header
                _
              $region46: #{tpu_custom_call.1} parent=43 // loop_header
                %s2791 = sphi 0, %s2793
                %p2792 = scmp.ge.s32.totalorder %s2791, %s2789
                %s2796 = sphi 0, %s2929
                %s2797 = sphi %s2768, %s2932
                %s2798 = sphi %s2779, %s2933
              $region47: #{tpu_custom_call.1} parent=43 // loop_header_branch
                %2795 = sbr.rel (%p2792) target = $region51
              $region48: #{tpu_custom_call.1} parent=43 // loop_body
                %v2799 = vld [vmem:[%s2797] sm:%s2788]
                %2800 = vst [vmem:[%s2798] sm:%s2788] %v2799
                %v2801 = vld [vmem:[%s2797 + $0x8] sm:%s2788]
                %2802 = vst [vmem:[%s2798 + $0x8] sm:%s2788] %v2801
                %v2803 = vld [vmem:[%s2797 + $0x10] sm:%s2788]
                %2804 = vst [vmem:[%s2798 + $0x10] sm:%s2788] %v2803
                %v2805 = vld [vmem:[%s2797 + $0x18] sm:%s2788]
                %2806 = vst [vmem:[%s2798 + $0x18] sm:%s2788] %v2805
                %v2807 = vld [vmem:[%s2797 + $0x20] sm:%s2788]
                %2808 = vst [vmem:[%s2798 + $0x20] sm:%s2788] %v2807
                %v2809 = vld [vmem:[%s2797 + $0x28] sm:%s2788]
                %2810 = vst [vmem:[%s2798 + $0x28] sm:%s2788] %v2809
                %v2811 = vld [vmem:[%s2797 + $0x30] sm:%s2788]
                %2812 = vst [vmem:[%s2798 + $0x30] sm:%s2788] %v2811
                %v2813 = vld [vmem:[%s2797 + $0x38] sm:%s2788]
                %2814 = vst [vmem:[%s2798 + $0x38] sm:%s2788] %v2813
                %v2815 = vld [vmem:[%s2797 + $0x40] sm:%s2788]
                %2816 = vst [vmem:[%s2798 + $0x40] sm:%s2788] %v2815
                %v2817 = vld [vmem:[%s2797 + $0x48] sm:%s2788]
                %2818 = vst [vmem:[%s2798 + $0x48] sm:%s2788] %v2817
                %v2819 = vld [vmem:[%s2797 + $0x50] sm:%s2788]
                %2820 = vst [vmem:[%s2798 + $0x50] sm:%s2788] %v2819
                %v2821 = vld [vmem:[%s2797 + $0x58] sm:%s2788]
                %2822 = vst [vmem:[%s2798 + $0x58] sm:%s2788] %v2821
                %v2823 = vld [vmem:[%s2797 + $0x60] sm:%s2788]
                %2824 = vst [vmem:[%s2798 + $0x60] sm:%s2788] %v2823
                %v2825 = vld [vmem:[%s2797 + $0x68] sm:%s2788]
                %2826 = vst [vmem:[%s2798 + $0x68] sm:%s2788] %v2825
                %v2827 = vld [vmem:[%s2797 + $0x70] sm:%s2788]
                %2828 = vst [vmem:[%s2798 + $0x70] sm:%s2788] %v2827
                %v2829 = vld [vmem:[%s2797 + $0x78] sm:%s2788]
                %2830 = vst [vmem:[%s2798 + $0x78] sm:%s2788] %v2829
                %v2831 = vld [vmem:[%s2797 + $0x80] sm:%s2788]
                %2832 = vst [vmem:[%s2798 + $0x80] sm:%s2788] %v2831
                %v2833 = vld [vmem:[%s2797 + $0x88] sm:%s2788]
                %2834 = vst [vmem:[%s2798 + $0x88] sm:%s2788] %v2833
                %v2835 = vld [vmem:[%s2797 + $0x90] sm:%s2788]
                %2836 = vst [vmem:[%s2798 + $0x90] sm:%s2788] %v2835
                %v2837 = vld [vmem:[%s2797 + $0x98] sm:%s2788]
                %2838 = vst [vmem:[%s2798 + $0x98] sm:%s2788] %v2837
                %v2839 = vld [vmem:[%s2797 + $0xa0] sm:%s2788]
                %2840 = vst [vmem:[%s2798 + $0xa0] sm:%s2788] %v2839
                %v2841 = vld [vmem:[%s2797 + $0xa8] sm:%s2788]
                %2842 = vst [vmem:[%s2798 + $0xa8] sm:%s2788] %v2841
                %v2843 = vld [vmem:[%s2797 + $0xb0] sm:%s2788]
                %2844 = vst [vmem:[%s2798 + $0xb0] sm:%s2788] %v2843
                %v2845 = vld [vmem:[%s2797 + $0xb8] sm:%s2788]
                %2846 = vst [vmem:[%s2798 + $0xb8] sm:%s2788] %v2845
                %v2847 = vld [vmem:[%s2797 + $0xc0] sm:%s2788]
                %2848 = vst [vmem:[%s2798 + $0xc0] sm:%s2788] %v2847
                %v2849 = vld [vmem:[%s2797 + $0xc8] sm:%s2788]
                %2850 = vst [vmem:[%s2798 + $0xc8] sm:%s2788] %v2849
                %v2851 = vld [vmem:[%s2797 + $0xd0] sm:%s2788]
                %2852 = vst [vmem:[%s2798 + $0xd0] sm:%s2788] %v2851
                %v2853 = vld [vmem:[%s2797 + $0xd8] sm:%s2788]
                %2854 = vst [vmem:[%s2798 + $0xd8] sm:%s2788] %v2853
                %v2855 = vld [vmem:[%s2797 + $0xe0] sm:%s2788]
                %2856 = vst [vmem:[%s2798 + $0xe0] sm:%s2788] %v2855
                %v2857 = vld [vmem:[%s2797 + $0xe8] sm:%s2788]
                %2858 = vst [vmem:[%s2798 + $0xe8] sm:%s2788] %v2857
                %v2859 = vld [vmem:[%s2797 + $0xf0] sm:%s2788]
                %2860 = vst [vmem:[%s2798 + $0xf0] sm:%s2788] %v2859
                %v2861 = vld [vmem:[%s2797 + $0xf8] sm:%s2788]
                %2862 = vst [vmem:[%s2798 + $0xf8] sm:%s2788] %v2861
                %v2863 = vld [vmem:[%s2797 + $0x100] sm:%s2788]
                %2864 = vst [vmem:[%s2798 + $0x100] sm:%s2788] %v2863
                %v2865 = vld [vmem:[%s2797 + $0x108] sm:%s2788]
                %2866 = vst [vmem:[%s2798 + $0x108] sm:%s2788] %v2865
                %v2867 = vld [vmem:[%s2797 + $0x110] sm:%s2788]
                %2868 = vst [vmem:[%s2798 + $0x110] sm:%s2788] %v2867
                %v2869 = vld [vmem:[%s2797 + $0x118] sm:%s2788]
                %2870 = vst [vmem:[%s2798 + $0x118] sm:%s2788] %v2869
                %v2871 = vld [vmem:[%s2797 + $0x120] sm:%s2788]
                %2872 = vst [vmem:[%s2798 + $0x120] sm:%s2788] %v2871
                %v2873 = vld [vmem:[%s2797 + $0x128] sm:%s2788]
                %2874 = vst [vmem:[%s2798 + $0x128] sm:%s2788] %v2873
                %v2875 = vld [vmem:[%s2797 + $0x130] sm:%s2788]
                %2876 = vst [vmem:[%s2798 + $0x130] sm:%s2788] %v2875
                %v2877 = vld [vmem:[%s2797 + $0x138] sm:%s2788]
                %2878 = vst [vmem:[%s2798 + $0x138] sm:%s2788] %v2877
                %v2879 = vld [vmem:[%s2797 + $0x140] sm:%s2788]
                %2880 = vst [vmem:[%s2798 + $0x140] sm:%s2788] %v2879
                %v2881 = vld [vmem:[%s2797 + $0x148] sm:%s2788]
                %2882 = vst [vmem:[%s2798 + $0x148] sm:%s2788] %v2881
                %v2883 = vld [vmem:[%s2797 + $0x150] sm:%s2788]
                %2884 = vst [vmem:[%s2798 + $0x150] sm:%s2788] %v2883
                %v2885 = vld [vmem:[%s2797 + $0x158] sm:%s2788]
                %2886 = vst [vmem:[%s2798 + $0x158] sm:%s2788] %v2885
                %v2887 = vld [vmem:[%s2797 + $0x160] sm:%s2788]
                %2888 = vst [vmem:[%s2798 + $0x160] sm:%s2788] %v2887
                %v2889 = vld [vmem:[%s2797 + $0x168] sm:%s2788]
                %2890 = vst [vmem:[%s2798 + $0x168] sm:%s2788] %v2889
                %v2891 = vld [vmem:[%s2797 + $0x170] sm:%s2788]
                %2892 = vst [vmem:[%s2798 + $0x170] sm:%s2788] %v2891
                %v2893 = vld [vmem:[%s2797 + $0x178] sm:%s2788]
                %2894 = vst [vmem:[%s2798 + $0x178] sm:%s2788] %v2893
                %v2895 = vld [vmem:[%s2797 + $0x180] sm:%s2788]
                %2896 = vst [vmem:[%s2798 + $0x180] sm:%s2788] %v2895
                %v2897 = vld [vmem:[%s2797 + $0x188] sm:%s2788]
                %2898 = vst [vmem:[%s2798 + $0x188] sm:%s2788] %v2897
                %v2899 = vld [vmem:[%s2797 + $0x190] sm:%s2788]
                %2900 = vst [vmem:[%s2798 + $0x190] sm:%s2788] %v2899
                %v2901 = vld [vmem:[%s2797 + $0x198] sm:%s2788]
                %2902 = vst [vmem:[%s2798 + $0x198] sm:%s2788] %v2901
                %v2903 = vld [vmem:[%s2797 + $0x1a0] sm:%s2788]
                %2904 = vst [vmem:[%s2798 + $0x1a0] sm:%s2788] %v2903
                %v2905 = vld [vmem:[%s2797 + $0x1a8] sm:%s2788]
                %2906 = vst [vmem:[%s2798 + $0x1a8] sm:%s2788] %v2905
                %v2907 = vld [vmem:[%s2797 + $0x1b0] sm:%s2788]
                %2908 = vst [vmem:[%s2798 + $0x1b0] sm:%s2788] %v2907
                %v2909 = vld [vmem:[%s2797 + $0x1b8] sm:%s2788]
                %2910 = vst [vmem:[%s2798 + $0x1b8] sm:%s2788] %v2909
                %v2911 = vld [vmem:[%s2797 + $0x1c0] sm:%s2788]
                %2912 = vst [vmem:[%s2798 + $0x1c0] sm:%s2788] %v2911
                %v2913 = vld [vmem:[%s2797 + $0x1c8] sm:%s2788]
                %2914 = vst [vmem:[%s2798 + $0x1c8] sm:%s2788] %v2913
                %v2915 = vld [vmem:[%s2797 + $0x1d0] sm:%s2788]
                %2916 = vst [vmem:[%s2798 + $0x1d0] sm:%s2788] %v2915
                %v2917 = vld [vmem:[%s2797 + $0x1d8] sm:%s2788]
                %2918 = vst [vmem:[%s2798 + $0x1d8] sm:%s2788] %v2917
                %v2919 = vld [vmem:[%s2797 + $0x1e0] sm:%s2788]
                %2920 = vst [vmem:[%s2798 + $0x1e0] sm:%s2788] %v2919
                %v2921 = vld [vmem:[%s2797 + $0x1e8] sm:%s2788]
                %2922 = vst [vmem:[%s2798 + $0x1e8] sm:%s2788] %v2921
                %v2923 = vld [vmem:[%s2797 + $0x1f0] sm:%s2788]
                %2924 = vst [vmem:[%s2798 + $0x1f0] sm:%s2788] %v2923
                %v2925 = vld [vmem:[%s2797 + $0x1f8] sm:%s2788]
                %2926 = vst [vmem:[%s2798 + $0x1f8] sm:%s2788] %v2925
                %s2927 = sadd.s32 1, %s2796
                %p2928 = scmp.ge.s32.totalorder %s2927, %s2789
                %s2929 = scalar_select %p2928, 0, %s2927
                %s2930 = smul.u32 %s2929, 512
                %s2931 = smul.u32 %s2929, 512
                %s2932 = scalar_lea.vmem %s2768, %s2930 [#allocation4]
                %s2933 = scalar_lea.vmem %s2779, %s2931
              $region49: #{tpu_custom_call.1} parent=43 // loop_footer
                %s2793 = sadd.s32 %s2791, 1
              $region50: #{tpu_custom_call.1} parent=43 // loop_footer_branch
                %2790 = sbr.rel target = $region46
              $region51: #{tpu_custom_call.1} parent=43 // loop_exit
                _
              %s2934 = sshrl.u32 %s2775, 6
              %s2935 = sand.u32 %s2775, 63
              %s2936 = smul.u32 %s2934, 64
              %s2937 = smul.u32 8, %s2936
              %s2938 = scalar_lea.vmem %s2768, %s2937 [#allocation4]
              %s2939 = smul.u32 8, %s2936
              %s2940 = scalar_lea.vmem %s2779, %s2939
              // While loop
              $region52: #{tpu_custom_call.1} parent=43 // loop_pre_header
                _
              $region53: #{tpu_custom_call.1} parent=43 // loop_header
                %s2942 = sphi 0, %s2944
                %p2943 = scmp.ge.s32.totalorder %s2942, %s2935
                %s2947 = sphi 0, %s2954
                %s2948 = sphi %s2938, %s2957
                %s2949 = sphi %s2940, %s2958
              $region54: #{tpu_custom_call.1} parent=43 // loop_header_branch
                %2946 = sbr.rel (%p2943) target = $region58
              $region55: #{tpu_custom_call.1} parent=43 // loop_body
                %v2950 = vld [vmem:[%s2948] sm:%s2788]
                %2951 = vst [vmem:[%s2949] sm:%s2788] %v2950
                %s2952 = sadd.s32 1, %s2947
                %p2953 = scmp.ge.s32.totalorder %s2952, %s2935
                %s2954 = scalar_select %p2953, 0, %s2952
                %s2955 = smul.u32 %s2954, 8
                %s2956 = smul.u32 %s2954, 8
                %s2957 = scalar_lea.vmem %s2938, %s2955 [#allocation4]
                %s2958 = scalar_lea.vmem %s2940, %s2956
              $region56: #{tpu_custom_call.1} parent=43 // loop_footer
                %s2944 = sadd.s32 %s2942, 1
              $region57: #{tpu_custom_call.1} parent=43 // loop_footer_branch
                %2941 = sbr.rel target = $region53
              $region58: #{tpu_custom_call.1} parent=43 // loop_exit
                _
            $region44: #{tpu_custom_call.1} parent=35 // pred_fallthru
              _
          $region36: #{tpu_custom_call.1} parent=31 // pred_fallthru
            _
          %3133 = vnop
        $region32: #{tpu_custom_call.1} parent=23 // pred_fallthru
          _
      $region24: #{tpu_custom_call.1} parent=5 // pred_fallthru
        _
      %p3134 = scmp.le.s32.totalorder 2, %s10
      // Predicated region
      $region81: #{tpu_custom_call.1} parent=5 // pred_check
        %p3135 = pneg %p3134
      $region82: #{tpu_custom_call.1} parent=5 // pred_check_branch
        %3137 = sbr.rel (%p3135) target = $region84
      $region83: #{tpu_custom_call.1} parent=5 // pred_region
        %s3138 = ssub.s32 %s10, 2
        // Predicated region
        $region85: #{tpu_custom_call.1} parent=83 // pred_check
          %p3139 = pneg %p65
        $region86: #{tpu_custom_call.1} parent=83 // pred_check_branch
          %3141 = sbr.rel (%p3139) target = $region88
        $region87: #{tpu_custom_call.1} parent=83 // pred_region
          %s3142 = sand.u32 %s50, 1
          %s3143 = sand.u32 %s50, 1
          %s3144 = smul.addr %s3143, 2048
          %s3145 = scalar_lea.vmem [#allocation4], %s3144
        $region88: #{tpu_custom_call.1} parent=83 // pred_fallthru
          _
      $region84: #{tpu_custom_call.1} parent=5 // pred_fallthru
        _
    $region6: #{tpu_custom_call.1} parent=1 // loop_footer
      %s14 = sadd.s32 1, %s10
    $region7: #{tpu_custom_call.1} parent=1 // loop_footer_branch
      %9 = sbr.rel target = $region3
    $region8: #{tpu_custom_call.1} parent=1 // loop_exit
      _
    %3146 = vsyncpa [#allocation3], 1
    %s3147 = scalar_lea.sflag [#allocation3], 1
    %3148 = vsyncpa %s3147, 1

</llo_original>
